<compile_context>
chip_gen: v7x
topology: tpu7x:2x2x1
jax: 0.10.0
libtpu: 0.0.40
codegen_flags: <defaults>
</compile_context>

<pallas_src>
import functools

import jax
import jax.numpy as jnp
from jax.experimental import pallas as pl
from jax.experimental.pallas import tpu as pltpu

EPS = 1e-5  # nn.LayerNorm default eps


# --------------------------- device-aware config ----------------------------

def _device_kind() -> str:
    try:
        return jax.devices()[0].device_kind.lower()
    except Exception:
        return ""


_KIND = _device_kind()
_IS_V7 = ("v7" in _KIND) or ("7x" in _KIND)
_IS_V6_PLUS = _IS_V7 or ("v6" in _KIND)

# v6e/v7x have bf16 VPU/EUP: compute the softmax exp numerator in bf16 there
# (halves EUP work and the (Tq,Tk) e-tile footprint); keep f32 on v5e/older.
_EXP_DTYPE = jnp.bfloat16 if _IS_V6_PLUS else jnp.float32

# v7x MRB supports cheap in-place MXU accumulation: replace concat(heads)@wo
# with an accumulated sum of o_h @ wo[h*hd:(h+1)*hd, :]; keep the single wide
# (D,D) matmul on v5e/v6e (sequential MRF).
_ACCUM_PROJ = _IS_V7


def _vmem_limit_bytes() -> int:
    """Generation-aware VMEM budget: ~75% of physical, capped at 100 MiB."""
    try:
        cap = int(pltpu.get_tpu_info().vmem_capacity_bytes)
    except Exception:
        cap = (64 if _IS_V7 else 128) * 1024 * 1024
    return int(min(cap - cap // 4, 100 * 1024 * 1024))


_VMEM_LIMIT = _vmem_limit_bytes()


# ----------------------------- kernel helpers -------------------------------

def _ln(x, g, b):
    """LayerNorm over the last dim (biased variance, PyTorch semantics), f32."""
    mu = jnp.mean(x, axis=-1, keepdims=True)
    var = jnp.mean(jnp.square(x - mu), axis=-1, keepdims=True)
    return (x - mu) * jax.lax.rsqrt(var + EPS) * g + b


def _mha(q, kv_blocks, wo_ref, bo_ref, *, num_heads, head_dim, exp_dtype,
         accum_proj):
    """Per-head scores/softmax/PV + output projection.

    q: (Tq, D) bf16 (head_dim**-0.5 already folded into the Q weights).
    kv_blocks: tuple of (k, v) pairs, each (Tk_i, D) bf16.  Multi-block
      softmax (shared row max / denominator) — used by PWCA so the row concat
      cat(primary, secondary) is never materialized.
    Returns (Tq, D) f32.
    """
    proj = None
    head_outs = []
    for h in range(num_heads):               # static unroll; H is small
        sl = slice(h * head_dim, (h + 1) * head_dim)   # static lane slice
        qh = q[:, sl]
        # per-block scores, f32 accumulation on the MXU
        s_blocks = [
            jax.lax.dot_general(qh, k[:, sl], (((1,), (1,)), ((), ())),
                                preferred_element_type=jnp.float32)
            for k, _ in kv_blocks
        ]
        m = s_blocks[0].max(axis=-1, keepdims=True)
        for s in s_blocks[1:]:
            m = jnp.maximum(m, s.max(axis=-1, keepdims=True))
        # exp numerator in bf16 on v6e/v7x, f32 on v5e; denominator stays f32
        e_blocks = [jnp.exp((s - m).astype(exp_dtype)) for s in s_blocks]
        denom = jnp.sum(e_blocks[0], axis=-1, keepdims=True, dtype=jnp.float32)
        for e in e_blocks[1:]:
            denom = denom + jnp.sum(e, axis=-1, keepdims=True,
                                    dtype=jnp.float32)
        o = jnp.dot(e_blocks[0].astype(jnp.bfloat16), kv_blocks[0][1][:, sl],
                    preferred_element_type=jnp.float32)
        for e, (_, v) in zip(e_blocks[1:], kv_blocks[1:]):
            o = o + jnp.dot(e.astype(jnp.bfloat16), v[:, sl],
                            preferred_element_type=jnp.float32)
        # exact 1/denom, folded into the small (Tq, head_dim) output
        o = o * pl.reciprocal(denom, approx=False)
        if accum_proj:
            # v7x: accumulate per-head contribution through wo row blocks
            c = jnp.dot(o.astype(jnp.bfloat16),
                        wo_ref[h * head_dim:(h + 1) * head_dim, :],
                        preferred_element_type=jnp.float32)
            proj = c if proj is None else proj + c
        else:
            head_outs.append(o)
    if not accum_proj:
        concat = jnp.concatenate(head_outs, axis=-1).astype(jnp.bfloat16)
        proj = jnp.dot(concat, wo_ref[...], preferred_element_type=jnp.float32)
    return proj + bo_ref[...]


def _mlp(h, g2_ref, b2_ref, w1_ref, bf1_ref, w2_ref, bf2_ref):
    """MLP(LayerNorm2(h)); bf16 matmul inputs, f32 accumulation."""
    hn = _ln(h, g2_ref[...], b2_ref[...]).astype(jnp.bfloat16)
    z = jnp.dot(hn, w1_ref[...], preferred_element_type=jnp.float32) + bf1_ref[...]
    z = jax.nn.gelu(z, approximate=True).astype(jnp.bfloat16)
    return jnp.dot(z, w2_ref[...], preferred_element_type=jnp.float32) + bf2_ref[...]


def _sa_branch(x, g1_ref, b1_ref, wqkv_ref, wo_ref, bo_ref,
               g2_ref, b2_ref, w1_ref, bf1_ref, w2_ref, bf2_ref,
               *, num_heads, head_dim, exp_dtype, accum_proj):
    d = num_heads * head_dim
    xn = _ln(x, g1_ref[...], b1_ref[...]).astype(jnp.bfloat16)
    # fused QKV projection: (T, D) @ (D, 3D), scale pre-folded into Q columns
    qkv = jnp.dot(xn, wqkv_ref[...], preferred_element_type=jnp.float32)
    q = qkv[:, :d].astype(jnp.bfloat16)
    k = qkv[:, d:2 * d].astype(jnp.bfloat16)
    v = qkv[:, 2 * d:].astype(jnp.bfloat16)
    attn = _mha(q, ((k, v),), wo_ref, bo_ref, num_heads=num_heads,
                head_dim=head_dim, exp_dtype=exp_dtype, accum_proj=accum_proj)
    h = x + attn                                       # residual 1, stays resident
    return h + _mlp(h, g2_ref, b2_ref, w1_ref, bf1_ref, w2_ref, bf2_ref)


def _pwca_branch(x, sec, gp_ref, bp_ref, gn_ref, bn_ref,
                 wq_ref, wkv_ref, wo_ref, bo_ref,
                 g2_ref, b2_ref, w1_ref, bf1_ref, w2_ref, bf2_ref,
                 *, num_heads, head_dim, exp_dtype, accum_proj):
    d = num_heads * head_dim
    primary = _ln(x, gp_ref[...], bp_ref[...])       # DCALBlock.norm_pwca(x)
    q_in = _ln(primary, gn_ref[...], bn_ref[...])    # PWCA.norm(primary)
    sec_n = _ln(sec, gn_ref[...], bn_ref[...])       # PWCA.norm(secondary)
    q = jnp.dot(q_in.astype(jnp.bfloat16), wq_ref[...],
                preferred_element_type=jnp.float32).astype(jnp.bfloat16)
    kv_blocks = []
    for blk in (q_in, sec_n):                        # two-block softmax, no row concat
        kv = jnp.dot(blk.astype(jnp.bfloat16), wkv_ref[...],
                     preferred_element_type=jnp.float32)   # fused (D, 2D) KV proj
        kv_blocks.append((kv[:, :d].astype(jnp.bfloat16),
                          kv[:, d:].astype(jnp.bfloat16)))
    attn = _mha(q, tuple(kv_blocks), wo_ref, bo_ref, num_heads=num_heads,
                head_dim=head_dim, exp_dtype=exp_dtype, accum_proj=accum_proj)
    h = x + attn
    return h + _mlp(h, g2_ref, b2_ref, w1_ref, bf1_ref, w2_ref, bf2_ref)


# --------------------------------- kernels ----------------------------------

def _sa_mlp_kernel(x_ref, g1_ref, b1_ref, wqkv_ref, wo_ref, bo_ref,
                   g2_ref, b2_ref, w1_ref, bf1_ref, w2_ref, bf2_ref,
                   out_ref, *, num_heads, head_dim, exp_dtype, accum_proj):
    """out = (x + SA(LN1(x))) + MLP(LN2(...)) — one batch element per grid step."""
    x = x_ref[0].astype(jnp.float32)                 # (T, D)
    out = _sa_branch(x, g1_ref, b1_ref, wqkv_ref, wo_ref, bo_ref,
                     g2_ref, b2_ref, w1_ref, bf1_ref, w2_ref, bf2_ref,
                     num_heads=num_heads, head_dim=head_dim,
                     exp_dtype=exp_dtype, accum_proj=accum_proj)
    out_ref[0] = out.astype(out_ref.dtype)


def _dual_kernel(x_ref, sec_ref,
                 g1_ref, b1_ref, wqkv_ref, wo_ref, bo_ref,
                 gp_ref, bp_ref, gn_ref, bn_ref,
                 pwq_ref, pwkv_ref, pwo_ref, pbo_ref,
                 g2_ref, b2_ref, w1_ref, bf1_ref, w2_ref, bf2_ref,
                 sa_out_ref, pw_out_ref,
                 *, num_heads, head_dim, exp_dtype, accum_proj):
    """Training-time fused call: SA and PWCA branches share x and the LN2/MLP
    weights, which are streamed into VMEM once instead of twice."""
    x = x_ref[0].astype(jnp.float32)                 # (T, D)
    sa = _sa_branch(x, g1_ref, b1_ref, wqkv_ref, wo_ref, bo_ref,
                    g2_ref, b2_ref, w1_ref, bf1_ref, w2_ref, bf2_ref,
                    num_heads=num_heads, head_dim=head_dim,
                    exp_dtype=exp_dtype, accum_proj=accum_proj)
    sa_out_ref[0] = sa.astype(sa_out_ref.dtype)

    sec = sec_ref[0].astype(jnp.float32)             # (T, D)
    pw = _pwca_branch(x, sec, gp_ref, bp_ref, gn_ref, bn_ref,
                      pwq_ref, pwkv_ref, pwo_ref, pbo_ref,
                      g2_ref, b2_ref, w1_ref, bf1_ref, w2_ref, bf2_ref,
                      num_heads=num_heads, head_dim=head_dim,
                      exp_dtype=exp_dtype, accum_proj=accum_proj)
    pw_out_ref[0] = pw.astype(pw_out_ref.dtype)


# ------------------------------ pallas wrappers ------------------------------

def _batch_spec(t, d):
    return pl.BlockSpec((1, t, d), lambda b: (b, 0, 0))


def _weight_spec(a):
    # Constant index_map -> fetched once across the grid; Buffered(1) avoids
    # the default double-buffering of grid-invariant weights (halves weight VMEM).
    nd = a.ndim
    return pl.BlockSpec(a.shape, lambda b, _n=nd: (0,) * _n,
                        pipeline_mode=pl.Buffered(1))


def _compiler_params():
    return pltpu.CompilerParams(
        dimension_semantics=("parallel",),     # batch axis -> both TCs on v7x
        vmem_limit_bytes=_VMEM_LIMIT)


def sa_block(x, kp, num_heads):
    """SA + MLP branch only (inference / no secondary image)."""
    b, t, d = x.shape
    hd = d // num_heads
    hidden = kp["w1"].shape[1]
    args = (x.astype(jnp.bfloat16),
            kp["g1"], kp["b1"], kp["wqkv"], kp["sa_wo"], kp["sa_bo"],
            kp["g2"], kp["b2"], kp["w1"], kp["bf1"], kp["w2"], kp["bf2"])
    in_specs = [_batch_spec(t, d)] + [_weight_spec(a) for a in args[1:]]
    flops = b * (6 * t * d * d + 4 * t * t * d + 2 * t * d * d
                 + 4 * t * d * hidden)
    trans = b * (num_heads * t * t + t * hidden)
    byts = 2 * b * t * d * 2 + 2 * (4 * d * d + 2 * d * hidden)
    kern = functools.partial(_sa_mlp_kernel, num_heads=num_heads, head_dim=hd,
                             exp_dtype=_EXP_DTYPE, accum_proj=_ACCUM_PROJ)
    return pl.pallas_call(
        kern,
        out_shape=jax.ShapeDtypeStruct((b, t, d), jnp.bfloat16),
        grid=(b,),
        in_specs=in_specs,
        out_specs=_batch_spec(t, d),
        compiler_params=_compiler_params(),
        cost_estimate=pl.CostEstimate(flops=int(flops),
                                      transcendentals=int(trans),
                                      bytes_accessed=int(byts)),
    )(*args)


def sa_pwca_block(x, secondary, kp, num_heads):
    """Training-time fused SA + PWCA call: two outputs, shared weights/x."""
    b, t, d = x.shape
    hd = d // num_heads
    hidden = kp["w1"].shape[1]
    args = (x.astype(jnp.bfloat16), secondary.astype(jnp.bfloat16),
            kp["g1"], kp["b1"], kp["wqkv"], kp["sa_wo"], kp["sa_bo"],
            kp["gp"], kp["bp"], kp["gn"], kp["bn"],
            kp["pw_wq"], kp["pw_wkv"], kp["pw_wo"], kp["pw_bo"],
            kp["g2"], kp["b2"], kp["w1"], kp["bf1"], kp["w2"], kp["bf2"])
    in_specs = [_batch_spec(t, d), _batch_spec(t, d)] + \
               [_weight_spec(a) for a in args[2:]]
    flops = b * ((6 * t * d * d + 4 * t * t * d + 2 * t * d * d
                  + 4 * t * d * hidden)
                 + (12 * t * d * d + 8 * t * t * d + 4 * t * d * hidden))
    trans = b * (3 * num_heads * t * t + 2 * t * hidden)
    byts = 4 * b * t * d * 2 + 2 * (9 * d * d + 2 * d * hidden)
    kern = functools.partial(_dual_kernel, num_heads=num_heads, head_dim=hd,
                             exp_dtype=_EXP_DTYPE, accum_proj=_ACCUM_PROJ)
    return pl.pallas_call(
        kern,
        out_shape=(jax.ShapeDtypeStruct((b, t, d), jnp.bfloat16),
                   jax.ShapeDtypeStruct((b, t, d), jnp.bfloat16)),
        grid=(b,),
        in_specs=in_specs,
        out_specs=(_batch_spec(t, d), _batch_spec(t, d)),
        compiler_params=_compiler_params(),
        cost_estimate=pl.CostEstimate(flops=int(flops),
                                      transcendentals=int(trans),
                                      bytes_accessed=int(byts)),
    )(*args)


def dcal_block_forward(x, secondary_x, kernel_params, num_heads,
                       use_pwca=True, training=True):
    """Mirrors DCALBlock.forward (use_glca=False). Returns (sa, glca, pwca)."""
    glca_output = None
    # TODO(synk): GLCA branch requires AttentionRollout / extract_patch_embeddings,
    # which are not defined in the reference source (use_glca defaults to False).
    if use_pwca and secondary_x is not None and training:
        sa_output, pwca_output = sa_pwca_block(x, secondary_x, kernel_params,
                                               num_heads)
        return sa_output, glca_output, pwca_output
    return sa_block(x, kernel_params, num_heads), glca_output, None


# ------------------------------ parameters ----------------------------------

def init_params(key, dim, num_heads, mlp_ratio=4.0):
    """Canonical (PyTorch-equivalent) f32 parameters; weights stored (in, out)."""
    hidden = int(dim * mlp_ratio)
    ks = jax.random.split(key, 22)
    nrm = lambda k, shape, s: jax.random.normal(k, shape, jnp.float32) * s
    return {
        # norm1 / norm2
        "g1": 1.0 + nrm(ks[0], (dim,), 0.1), "b1": nrm(ks[1], (dim,), 0.1),
        "g2": 1.0 + nrm(ks[2], (dim,), 0.1), "b2": nrm(ks[3], (dim,), 0.1),
        # self-attention (qkv_bias=False, proj has bias)
        "sa_wq": nrm(ks[4], (dim, dim), 0.1), "sa_wk": nrm(ks[5], (dim, dim), 0.1),
        "sa_wv": nrm(ks[6], (dim, dim), 0.1), "sa_wo": nrm(ks[7], (dim, dim), 0.1),
        "sa_bo": nrm(ks[8], (dim,), 0.02),
        # MLP
        "w1": nrm(ks[9], (dim, hidden), 0.1), "bf1": nrm(ks[10], (hidden,), 0.02),
        "w2": nrm(ks[11], (hidden, dim), 0.1), "bf2": nrm(ks[12], (dim,), 0.02),
        # PWCA: norm_pwca (gp/bp), pwca.norm (gn/bn), cross-attn projections
        "gp": 1.0 + nrm(ks[13], (dim,), 0.1), "bp": nrm(ks[14], (dim,), 0.1),
        "gn": 1.0 + nrm(ks[15], (dim,), 0.1), "bn": nrm(ks[16], (dim,), 0.1),
        "pw_wq": nrm(ks[17], (dim, dim), 0.1), "pw_wk": nrm(ks[18], (dim, dim), 0.1),
        "pw_wv": nrm(ks[19], (dim, dim), 0.1), "pw_wo": nrm(ks[20], (dim, dim), 0.1),
        "pw_bo": nrm(ks[21], (dim,), 0.02),
    }


def pack_kernel_params(p, num_heads):
    """One-time packing for the kernels: fused QKV / KV weights, attention
    scale folded into the Q projection columns, bf16 matmul weights, (1, N)
    f32 LayerNorm/bias vectors."""
    dim = p["sa_wq"].shape[0]
    scale = (dim // num_heads) ** -0.5
    bf = lambda a: a.astype(jnp.bfloat16)
    row = lambda a: a.reshape(1, -1).astype(jnp.float32)
    return {
        "g1": row(p["g1"]), "b1": row(p["b1"]),
        "g2": row(p["g2"]), "b2": row(p["b2"]),
        "gp": row(p["gp"]), "bp": row(p["bp"]),
        "gn": row(p["gn"]), "bn": row(p["bn"]),
        "wqkv": bf(jnp.concatenate([p["sa_wq"] * scale, p["sa_wk"], p["sa_wv"]],
                                   axis=1)),
        "sa_wo": bf(p["sa_wo"]), "sa_bo": row(p["sa_bo"]),
        "pw_wq": bf(p["pw_wq"] * scale),
        "pw_wkv": bf(jnp.concatenate([p["pw_wk"], p["pw_wv"]], axis=1)),
        "pw_wo": bf(p["pw_wo"]), "pw_bo": row(p["pw_bo"]),
        "w1": bf(p["w1"]), "bf1": row(p["bf1"]),
        "w2": bf(p["w2"]), "bf2": row(p["bf2"]),
    }


# ------------------------------ plain-JAX reference --------------------------

def reference_forward(x, secondary_x, p, num_heads):
    """Full-f32 reference mirroring the PyTorch DCALBlock forward."""
    d = x.shape[-1]
    hd = d // num_heads
    scale = hd ** -0.5

    def mha(q_in, kv_in, wq, wk, wv, wo, bo):
        b_, tq, _ = q_in.shape
        tk = kv_in.shape[1]
        q = (q_in @ wq).reshape(b_, tq, num_heads, hd).transpose(0, 2, 1, 3)
        k = (kv_in @ wk).reshape(b_, tk, num_heads, hd).transpose(0, 2, 1, 3)
        v = (kv_in @ wv).reshape(b_, tk, num_heads, hd).transpose(0, 2, 1, 3)
        a = jax.nn.softmax(jnp.einsum("bhqd,bhkd->bhqk", q, k) * scale, axis=-1)
        o = jnp.einsum("bhqk,bhkd->bhqd", a, v)
        o = o.transpose(0, 2, 1, 3).reshape(b_, tq, d)
        return o @ wo + bo

    def mlp_res(v):
        h = _ln(v, p["g2"], p["b2"]) @ p["w1"] + p["bf1"]
        h = jax.nn.gelu(h, approximate=True)
        return v + h @ p["w2"] + p["bf2"]

    xn = _ln(x, p["g1"], p["b1"])
    sa = mlp_res(x + mha(xn, xn, p["sa_wq"], p["sa_wk"], p["sa_wv"],
                         p["sa_wo"], p["sa_bo"]))

    primary = _ln(x, p["gp"], p["bp"])
    q_in = _ln(primary, p["gn"], p["bn"])
    kvn = _ln(jnp.concatenate([primary, secondary_x], axis=1), p["gn"], p["bn"])
    pw = mlp_res(x + mha(q_in, kvn, p["pw_wq"], p["pw_wk"], p["pw_wv"],
                         p["pw_wo"], p["pw_bo"]))
    return sa, pw


# ----------------------------------- main ------------------------------------

if __name__ == "__main__":
    B, T, D, H = 2, 16, 64, 4
    key = jax.random.PRNGKey(0)
    kx, ksec, kp = jax.random.split(key, 3)
    x = jax.random.normal(kx, (B, T, D), jnp.float32)
    secondary_x = jax.random.normal(ksec, (B, T, D), jnp.float32)

    params = init_params(kp, D, H)                 # canonical f32 (PyTorch-like)
    kparams = pack_kernel_params(params, H)        # fused / scaled / bf16, once

    sa_out, glca_out, pwca_out = dcal_block_forward(
        x, secondary_x, kparams, H, use_pwca=True, training=True)
    sa_out = jax.block_until_ready(sa_out)
    pwca_out = jax.block_until_ready(pwca_out)

    assert sa_out.shape == (B, T, D) and pwca_out.shape == (B, T, D)
    assert glca_out is None

    ref_sa, ref_pw = reference_forward(x, secondary_x, params, H)
    sa_f32 = sa_out.astype(jnp.float32)
    pw_f32 = pwca_out.astype(jnp.float32)
    # bf16 activations at the kernel boundary + bf16 matmul weights/inputs
    # (+ bf16 softmax exp on v6e/v7x) vs. a full-f32 reference -> ~1% deltas.
    assert jnp.allclose(sa_f32, ref_sa, atol=5e-2, rtol=5e-2), \
        float(jnp.abs(sa_f32 - ref_sa).max())
    assert jnp.allclose(pw_f32, ref_pw, atol=5e-2, rtol=5e-2), \
        float(jnp.abs(pw_f32 - ref_pw).max())
    print("KERNEL_OK")
</pallas_src>

<mosaic_0001>
module attributes {stable_mosaic.version = 11 : i64} {
  func.func @_dual_kernel(%arg0: i32, %arg1: memref<1x16x64xbf16, #tpu.memory_space<vmem>>, %arg2: memref<1x16x64xbf16, #tpu.memory_space<vmem>>, %arg3: memref<1x64xf32, #tpu.memory_space<vmem>>, %arg4: memref<1x64xf32, #tpu.memory_space<vmem>>, %arg5: memref<64x192xbf16, #tpu.memory_space<vmem>>, %arg6: memref<64x64xbf16, #tpu.memory_space<vmem>>, %arg7: memref<1x64xf32, #tpu.memory_space<vmem>>, %arg8: memref<1x64xf32, #tpu.memory_space<vmem>>, %arg9: memref<1x64xf32, #tpu.memory_space<vmem>>, %arg10: memref<1x64xf32, #tpu.memory_space<vmem>>, %arg11: memref<1x64xf32, #tpu.memory_space<vmem>>, %arg12: memref<64x64xbf16, #tpu.memory_space<vmem>>, %arg13: memref<64x128xbf16, #tpu.memory_space<vmem>>, %arg14: memref<64x64xbf16, #tpu.memory_space<vmem>>, %arg15: memref<1x64xf32, #tpu.memory_space<vmem>>, %arg16: memref<1x64xf32, #tpu.memory_space<vmem>>, %arg17: memref<1x64xf32, #tpu.memory_space<vmem>>, %arg18: memref<64x256xbf16, #tpu.memory_space<vmem>>, %arg19: memref<1x256xf32, #tpu.memory_space<vmem>>, %arg20: memref<256x64xbf16, #tpu.memory_space<vmem>>, %arg21: memref<1x64xf32, #tpu.memory_space<vmem>>, %arg22: memref<1x16x64xbf16, #tpu.memory_space<vmem>>, %arg23: memref<1x16x64xbf16, #tpu.memory_space<vmem>>) attributes {dimension_semantics = [#tpu.dimension_semantics<parallel>], iteration_bounds = array<i64: 2>, scalar_prefetch = 0 : i64, scratch_operands = 0 : i64, tpu.core_type = #tpu.core_type<tc>, window_params = [{transform_indices = @transform_0, window_bounds = array<i64: 1, 16, 64>}, {transform_indices = @transform_1, window_bounds = array<i64: 1, 16, 64>}, {pipeline_mode = #tpu.pipeline_mode<synchronous>, transform_indices = @transform_2, window_bounds = array<i64: 1, 64>}, {pipeline_mode = #tpu.pipeline_mode<synchronous>, transform_indices = @transform_3, window_bounds = array<i64: 1, 64>}, {pipeline_mode = #tpu.pipeline_mode<synchronous>, transform_indices = @transform_4, window_bounds = array<i64: 64, 192>}, {pipeline_mode = #tpu.pipeline_mode<synchronous>, transform_indices = @transform_5, window_bounds = array<i64: 64, 64>}, {pipeline_mode = #tpu.pipeline_mode<synchronous>, transform_indices = @transform_6, window_bounds = array<i64: 1, 64>}, {pipeline_mode = #tpu.pipeline_mode<synchronous>, transform_indices = @transform_7, window_bounds = array<i64: 1, 64>}, {pipeline_mode = #tpu.pipeline_mode<synchronous>, transform_indices = @transform_8, window_bounds = array<i64: 1, 64>}, {pipeline_mode = #tpu.pipeline_mode<synchronous>, transform_indices = @transform_9, window_bounds = array<i64: 1, 64>}, {pipeline_mode = #tpu.pipeline_mode<synchronous>, transform_indices = @transform_10, window_bounds = array<i64: 1, 64>}, {pipeline_mode = #tpu.pipeline_mode<synchronous>, transform_indices = @transform_11, window_bounds = array<i64: 64, 64>}, {pipeline_mode = #tpu.pipeline_mode<synchronous>, transform_indices = @transform_12, window_bounds = array<i64: 64, 128>}, {pipeline_mode = #tpu.pipeline_mode<synchronous>, transform_indices = @transform_13, window_bounds = array<i64: 64, 64>}, {pipeline_mode = #tpu.pipeline_mode<synchronous>, transform_indices = @transform_14, window_bounds = array<i64: 1, 64>}, {pipeline_mode = #tpu.pipeline_mode<synchronous>, transform_indices = @transform_15, window_bounds = array<i64: 1, 64>}, {pipeline_mode = #tpu.pipeline_mode<synchronous>, transform_indices = @transform_16, window_bounds = array<i64: 1, 64>}, {pipeline_mode = #tpu.pipeline_mode<synchronous>, transform_indices = @transform_17, window_bounds = array<i64: 64, 256>}, {pipeline_mode = #tpu.pipeline_mode<synchronous>, transform_indices = @transform_18, window_bounds = array<i64: 1, 256>}, {pipeline_mode = #tpu.pipeline_mode<synchronous>, transform_indices = @transform_19, window_bounds = array<i64: 256, 64>}, {pipeline_mode = #tpu.pipeline_mode<synchronous>, transform_indices = @transform_20, window_bounds = array<i64: 1, 64>}, {transform_indices = @transform_21, window_bounds = array<i64: 1, 16, 64>}, {transform_indices = @transform_22, window_bounds = array<i64: 1, 16, 64>}]} {
    %c0 = arith.constant 0 : index
    %c0_0 = arith.constant 0 : index
    %c0_1 = arith.constant 0 : index
    %0 = vector.load %arg1[%c0, %c0_0, %c0_1] : memref<1x16x64xbf16, #tpu.memory_space<vmem>>, vector<1x16x64xbf16>
    %1 = vector.shape_cast %0 : vector<1x16x64xbf16> to vector<16x64xbf16>
    %2 = arith.extf %1 : vector<16x64xbf16> to vector<16x64xf32>
    %c0_2 = arith.constant 0 : index
    %c0_3 = arith.constant 0 : index
    %3 = vector.load %arg3[%c0_2, %c0_3] : memref<1x64xf32, #tpu.memory_space<vmem>>, vector<1x64xf32>
    %c0_4 = arith.constant 0 : index
    %c0_5 = arith.constant 0 : index
    %4 = vector.load %arg4[%c0_4, %c0_5] : memref<1x64xf32, #tpu.memory_space<vmem>>, vector<1x64xf32>
    %cst = arith.constant dense<0.000000e+00> : vector<16xf32>
    %5 = vector.multi_reduction <add>, %2, %cst [1] : vector<16x64xf32> to vector<16xf32>
    %6 = vector.shape_cast %5 : vector<16xf32> to vector<16x1xf32>
    %cst_6 = arith.constant 6.400000e+01 : f32
    %7 = vector.broadcast %cst_6 : f32 to vector<16x1xf32>
    %8 = arith.divf %6, %7 : vector<16x1xf32>
    %9 = vector.broadcast %8 : vector<16x1xf32> to vector<16x64xf32>
    %10 = arith.subf %2, %9 : vector<16x64xf32>
    %11 = arith.mulf %10, %10 : vector<16x64xf32>
    %cst_7 = arith.constant dense<0.000000e+00> : vector<16xf32>
    %12 = vector.multi_reduction <add>, %11, %cst_7 [1] : vector<16x64xf32> to vector<16xf32>
    %13 = vector.shape_cast %12 : vector<16xf32> to vector<16x1xf32>
    %cst_8 = arith.constant 6.400000e+01 : f32
    %14 = vector.broadcast %cst_8 : f32 to vector<16x1xf32>
    %15 = arith.divf %13, %14 : vector<16x1xf32>
    %16 = vector.broadcast %8 : vector<16x1xf32> to vector<16x64xf32>
    %17 = arith.subf %2, %16 : vector<16x64xf32>
    %cst_9 = arith.constant 9.99999974E-6 : f32
    %18 = vector.broadcast %cst_9 : f32 to vector<16x1xf32>
    %19 = arith.addf %15, %18 : vector<16x1xf32>
    %20 = math.rsqrt %19 : vector<16x1xf32>
    %21 = vector.broadcast %20 : vector<16x1xf32> to vector<16x64xf32>
    %22 = arith.mulf %17, %21 : vector<16x64xf32>
    %23 = vector.broadcast %3 : vector<1x64xf32> to vector<16x64xf32>
    %24 = arith.mulf %22, %23 : vector<16x64xf32>
    %25 = vector.broadcast %4 : vector<1x64xf32> to vector<16x64xf32>
    %26 = arith.addf %24, %25 : vector<16x64xf32>
    %27 = arith.truncf %26 : vector<16x64xf32> to vector<16x64xbf16>
    %c0_10 = arith.constant 0 : index
    %c0_11 = arith.constant 0 : index
    %28 = vector.load %arg5[%c0_10, %c0_11] : memref<64x192xbf16, #tpu.memory_space<vmem>>, vector<64x192xbf16>
    %cst_12 = arith.constant dense<0.000000e+00> : vector<16x192xf32>
    %29 = tpu.matmul %27, %28, %cst_12 {dimension_numbers = #tpu.dot_dimension_numbers<[1], [0], [0], [1], [0, 0, 1, 1], [], []>} : vector<16x64xbf16>, vector<64x192xbf16>, vector<16x192xf32> -> vector<16x192xf32>
    %30 = vector.extract_strided_slice %29 {offsets = [0, 0], sizes = [16, 64], strides = [1, 1]} : vector<16x192xf32> to vector<16x64xf32>
    %31 = arith.truncf %30 : vector<16x64xf32> to vector<16x64xbf16>
    %32 = vector.extract_strided_slice %29 {offsets = [0, 64], sizes = [16, 64], strides = [1, 1]} : vector<16x192xf32> to vector<16x64xf32>
    %33 = arith.truncf %32 : vector<16x64xf32> to vector<16x64xbf16>
    %34 = vector.extract_strided_slice %29 {offsets = [0, 128], sizes = [16, 64], strides = [1, 1]} : vector<16x192xf32> to vector<16x64xf32>
    %35 = arith.truncf %34 : vector<16x64xf32> to vector<16x64xbf16>
    %36 = vector.extract_strided_slice %31 {offsets = [0, 0], sizes = [16, 16], strides = [1, 1]} : vector<16x64xbf16> to vector<16x16xbf16>
    %37 = vector.extract_strided_slice %33 {offsets = [0, 0], sizes = [16, 16], strides = [1, 1]} : vector<16x64xbf16> to vector<16x16xbf16>
    %cst_13 = arith.constant dense<0.000000e+00> : vector<16x16xf32>
    %38 = tpu.matmul %36, %37, %cst_13 {dimension_numbers = #tpu.dot_dimension_numbers<[1], [1], [0], [0], [0, 0, 1, 0], [], []>} : vector<16x16xbf16>, vector<16x16xbf16>, vector<16x16xf32> -> vector<16x16xf32>
    %cst_14 = arith.constant dense<0xFF800000> : vector<16xf32>
    %39 = vector.multi_reduction <maximumf>, %38, %cst_14 [1] : vector<16x16xf32> to vector<16xf32>
    %40 = vector.shape_cast %39 : vector<16xf32> to vector<16x1xf32>
    %41 = vector.broadcast %40 : vector<16x1xf32> to vector<16x16xf32>
    %42 = arith.subf %38, %41 : vector<16x16xf32>
    %43 = math.exp %42 : vector<16x16xf32>
    %cst_15 = arith.constant dense<0.000000e+00> : vector<16xf32>
    %44 = vector.multi_reduction <add>, %43, %cst_15 [1] : vector<16x16xf32> to vector<16xf32>
    %45 = vector.shape_cast %44 : vector<16xf32> to vector<16x1xf32>
    %46 = arith.truncf %43 : vector<16x16xf32> to vector<16x16xbf16>
    %47 = vector.extract_strided_slice %35 {offsets = [0, 0], sizes = [16, 16], strides = [1, 1]} : vector<16x64xbf16> to vector<16x16xbf16>
    %cst_16 = arith.constant dense<0.000000e+00> : vector<16x16xf32>
    %48 = tpu.matmul %46, %47, %cst_16 {dimension_numbers = #tpu.dot_dimension_numbers<[1], [0], [0], [1], [0, 0, 1, 1], [], []>} : vector<16x16xbf16>, vector<16x16xbf16>, vector<16x16xf32> -> vector<16x16xf32>
    %49 = tpu.reciprocal %45 : vector<16x1xf32> -> vector<16x1xf32>
    %50 = vector.broadcast %49 : vector<16x1xf32> to vector<16x16xf32>
    %51 = arith.mulf %48, %50 : vector<16x16xf32>
    %52 = vector.extract_strided_slice %31 {offsets = [0, 16], sizes = [16, 16], strides = [1, 1]} : vector<16x64xbf16> to vector<16x16xbf16>
    %53 = vector.extract_strided_slice %33 {offsets = [0, 16], sizes = [16, 16], strides = [1, 1]} : vector<16x64xbf16> to vector<16x16xbf16>
    %cst_17 = arith.constant dense<0.000000e+00> : vector<16x16xf32>
    %54 = tpu.matmul %52, %53, %cst_17 {dimension_numbers = #tpu.dot_dimension_numbers<[1], [1], [0], [0], [0, 0, 1, 0], [], []>} : vector<16x16xbf16>, vector<16x16xbf16>, vector<16x16xf32> -> vector<16x16xf32>
    %cst_18 = arith.constant dense<0xFF800000> : vector<16xf32>
    %55 = vector.multi_reduction <maximumf>, %54, %cst_18 [1] : vector<16x16xf32> to vector<16xf32>
    %56 = vector.shape_cast %55 : vector<16xf32> to vector<16x1xf32>
    %57 = vector.broadcast %56 : vector<16x1xf32> to vector<16x16xf32>
    %58 = arith.subf %54, %57 : vector<16x16xf32>
    %59 = math.exp %58 : vector<16x16xf32>
    %cst_19 = arith.constant dense<0.000000e+00> : vector<16xf32>
    %60 = vector.multi_reduction <add>, %59, %cst_19 [1] : vector<16x16xf32> to vector<16xf32>
    %61 = vector.shape_cast %60 : vector<16xf32> to vector<16x1xf32>
    %62 = arith.truncf %59 : vector<16x16xf32> to vector<16x16xbf16>
    %63 = vector.extract_strided_slice %35 {offsets = [0, 16], sizes = [16, 16], strides = [1, 1]} : vector<16x64xbf16> to vector<16x16xbf16>
    %cst_20 = arith.constant dense<0.000000e+00> : vector<16x16xf32>
    %64 = tpu.matmul %62, %63, %cst_20 {dimension_numbers = #tpu.dot_dimension_numbers<[1], [0], [0], [1], [0, 0, 1, 1], [], []>} : vector<16x16xbf16>, vector<16x16xbf16>, vector<16x16xf32> -> vector<16x16xf32>
    %65 = tpu.reciprocal %61 : vector<16x1xf32> -> vector<16x1xf32>
    %66 = vector.broadcast %65 : vector<16x1xf32> to vector<16x16xf32>
    %67 = arith.mulf %64, %66 : vector<16x16xf32>
    %68 = vector.extract_strided_slice %31 {offsets = [0, 32], sizes = [16, 16], strides = [1, 1]} : vector<16x64xbf16> to vector<16x16xbf16>
    %69 = vector.extract_strided_slice %33 {offsets = [0, 32], sizes = [16, 16], strides = [1, 1]} : vector<16x64xbf16> to vector<16x16xbf16>
    %cst_21 = arith.constant dense<0.000000e+00> : vector<16x16xf32>
    %70 = tpu.matmul %68, %69, %cst_21 {dimension_numbers = #tpu.dot_dimension_numbers<[1], [1], [0], [0], [0, 0, 1, 0], [], []>} : vector<16x16xbf16>, vector<16x16xbf16>, vector<16x16xf32> -> vector<16x16xf32>
    %cst_22 = arith.constant dense<0xFF800000> : vector<16xf32>
    %71 = vector.multi_reduction <maximumf>, %70, %cst_22 [1] : vector<16x16xf32> to vector<16xf32>
    %72 = vector.shape_cast %71 : vector<16xf32> to vector<16x1xf32>
    %73 = vector.broadcast %72 : vector<16x1xf32> to vector<16x16xf32>
    %74 = arith.subf %70, %73 : vector<16x16xf32>
    %75 = math.exp %74 : vector<16x16xf32>
    %cst_23 = arith.constant dense<0.000000e+00> : vector<16xf32>
    %76 = vector.multi_reduction <add>, %75, %cst_23 [1] : vector<16x16xf32> to vector<16xf32>
    %77 = vector.shape_cast %76 : vector<16xf32> to vector<16x1xf32>
    %78 = arith.truncf %75 : vector<16x16xf32> to vector<16x16xbf16>
    %79 = vector.extract_strided_slice %35 {offsets = [0, 32], sizes = [16, 16], strides = [1, 1]} : vector<16x64xbf16> to vector<16x16xbf16>
    %cst_24 = arith.constant dense<0.000000e+00> : vector<16x16xf32>
    %80 = tpu.matmul %78, %79, %cst_24 {dimension_numbers = #tpu.dot_dimension_numbers<[1], [0], [0], [1], [0, 0, 1, 1], [], []>} : vector<16x16xbf16>, vector<16x16xbf16>, vector<16x16xf32> -> vector<16x16xf32>
    %81 = tpu.reciprocal %77 : vector<16x1xf32> -> vector<16x1xf32>
    %82 = vector.broadcast %81 : vector<16x1xf32> to vector<16x16xf32>
    %83 = arith.mulf %80, %82 : vector<16x16xf32>
    %84 = vector.extract_strided_slice %31 {offsets = [0, 48], sizes = [16, 16], strides = [1, 1]} : vector<16x64xbf16> to vector<16x16xbf16>
    %85 = vector.extract_strided_slice %33 {offsets = [0, 48], sizes = [16, 16], strides = [1, 1]} : vector<16x64xbf16> to vector<16x16xbf16>
    %cst_25 = arith.constant dense<0.000000e+00> : vector<16x16xf32>
    %86 = tpu.matmul %84, %85, %cst_25 {dimension_numbers = #tpu.dot_dimension_numbers<[1], [1], [0], [0], [0, 0, 1, 0], [], []>} : vector<16x16xbf16>, vector<16x16xbf16>, vector<16x16xf32> -> vector<16x16xf32>
    %cst_26 = arith.constant dense<0xFF800000> : vector<16xf32>
    %87 = vector.multi_reduction <maximumf>, %86, %cst_26 [1] : vector<16x16xf32> to vector<16xf32>
    %88 = vector.shape_cast %87 : vector<16xf32> to vector<16x1xf32>
    %89 = vector.broadcast %88 : vector<16x1xf32> to vector<16x16xf32>
    %90 = arith.subf %86, %89 : vector<16x16xf32>
    %91 = math.exp %90 : vector<16x16xf32>
    %cst_27 = arith.constant dense<0.000000e+00> : vector<16xf32>
    %92 = vector.multi_reduction <add>, %91, %cst_27 [1] : vector<16x16xf32> to vector<16xf32>
    %93 = vector.shape_cast %92 : vector<16xf32> to vector<16x1xf32>
    %94 = arith.truncf %91 : vector<16x16xf32> to vector<16x16xbf16>
    %95 = vector.extract_strided_slice %35 {offsets = [0, 48], sizes = [16, 16], strides = [1, 1]} : vector<16x64xbf16> to vector<16x16xbf16>
    %cst_28 = arith.constant dense<0.000000e+00> : vector<16x16xf32>
    %96 = tpu.matmul %94, %95, %cst_28 {dimension_numbers = #tpu.dot_dimension_numbers<[1], [0], [0], [1], [0, 0, 1, 1], [], []>} : vector<16x16xbf16>, vector<16x16xbf16>, vector<16x16xf32> -> vector<16x16xf32>
    %97 = tpu.reciprocal %93 : vector<16x1xf32> -> vector<16x1xf32>
    %98 = vector.broadcast %97 : vector<16x1xf32> to vector<16x16xf32>
    %99 = arith.mulf %96, %98 : vector<16x16xf32>
    %100 = tpu.concatenate %51, %67, %83, %99 in 1 : vector<16x16xf32>, vector<16x16xf32>, vector<16x16xf32>, vector<16x16xf32> -> vector<16x64xf32>
    %101 = arith.truncf %100 : vector<16x64xf32> to vector<16x64xbf16>
    %c0_29 = arith.constant 0 : index
    %c0_30 = arith.constant 0 : index
    %102 = vector.load %arg6[%c0_29, %c0_30] : memref<64x64xbf16, #tpu.memory_space<vmem>>, vector<64x64xbf16>
    %cst_31 = arith.constant dense<0.000000e+00> : vector<16x64xf32>
    %103 = tpu.matmul %101, %102, %cst_31 {dimension_numbers = #tpu.dot_dimension_numbers<[1], [0], [0], [1], [0, 0, 1, 1], [], []>} : vector<16x64xbf16>, vector<64x64xbf16>, vector<16x64xf32> -> vector<16x64xf32>
    %c0_32 = arith.constant 0 : index
    %c0_33 = arith.constant 0 : index
    %104 = vector.load %arg7[%c0_32, %c0_33] : memref<1x64xf32, #tpu.memory_space<vmem>>, vector<1x64xf32>
    %105 = vector.broadcast %104 : vector<1x64xf32> to vector<16x64xf32>
    %106 = arith.addf %103, %105 : vector<16x64xf32>
    %107 = arith.addf %2, %106 : vector<16x64xf32>
    %c0_34 = arith.constant 0 : index
    %c0_35 = arith.constant 0 : index
    %108 = vector.load %arg16[%c0_34, %c0_35] : memref<1x64xf32, #tpu.memory_space<vmem>>, vector<1x64xf32>
    %c0_36 = arith.constant 0 : index
    %c0_37 = arith.constant 0 : index
    %109 = vector.load %arg17[%c0_36, %c0_37] : memref<1x64xf32, #tpu.memory_space<vmem>>, vector<1x64xf32>
    %cst_38 = arith.constant dense<0.000000e+00> : vector<16xf32>
    %110 = vector.multi_reduction <add>, %107, %cst_38 [1] : vector<16x64xf32> to vector<16xf32>
    %111 = vector.shape_cast %110 : vector<16xf32> to vector<16x1xf32>
    %cst_39 = arith.constant 6.400000e+01 : f32
    %112 = vector.broadcast %cst_39 : f32 to vector<16x1xf32>
    %113 = arith.divf %111, %112 : vector<16x1xf32>
    %114 = vector.broadcast %113 : vector<16x1xf32> to vector<16x64xf32>
    %115 = arith.subf %107, %114 : vector<16x64xf32>
    %116 = arith.mulf %115, %115 : vector<16x64xf32>
    %cst_40 = arith.constant dense<0.000000e+00> : vector<16xf32>
    %117 = vector.multi_reduction <add>, %116, %cst_40 [1] : vector<16x64xf32> to vector<16xf32>
    %118 = vector.shape_cast %117 : vector<16xf32> to vector<16x1xf32>
    %cst_41 = arith.constant 6.400000e+01 : f32
    %119 = vector.broadcast %cst_41 : f32 to vector<16x1xf32>
    %120 = arith.divf %118, %119 : vector<16x1xf32>
    %121 = vector.broadcast %113 : vector<16x1xf32> to vector<16x64xf32>
    %122 = arith.subf %107, %121 : vector<16x64xf32>
    %cst_42 = arith.constant 9.99999974E-6 : f32
    %123 = vector.broadcast %cst_42 : f32 to vector<16x1xf32>
    %124 = arith.addf %120, %123 : vector<16x1xf32>
    %125 = math.rsqrt %124 : vector<16x1xf32>
    %126 = vector.broadcast %125 : vector<16x1xf32> to vector<16x64xf32>
    %127 = arith.mulf %122, %126 : vector<16x64xf32>
    %128 = vector.broadcast %108 : vector<1x64xf32> to vector<16x64xf32>
    %129 = arith.mulf %127, %128 : vector<16x64xf32>
    %130 = vector.broadcast %109 : vector<1x64xf32> to vector<16x64xf32>
    %131 = arith.addf %129, %130 : vector<16x64xf32>
    %132 = arith.truncf %131 : vector<16x64xf32> to vector<16x64xbf16>
    %c0_43 = arith.constant 0 : index
    %c0_44 = arith.constant 0 : index
    %133 = vector.load %arg18[%c0_43, %c0_44] : memref<64x256xbf16, #tpu.memory_space<vmem>>, vector<64x256xbf16>
    %cst_45 = arith.constant dense<0.000000e+00> : vector<16x256xf32>
    %134 = tpu.matmul %132, %133, %cst_45 {dimension_numbers = #tpu.dot_dimension_numbers<[1], [0], [0], [1], [0, 0, 1, 1], [], []>} : vector<16x64xbf16>, vector<64x256xbf16>, vector<16x256xf32> -> vector<16x256xf32>
    %c0_46 = arith.constant 0 : index
    %c0_47 = arith.constant 0 : index
    %135 = vector.load %arg19[%c0_46, %c0_47] : memref<1x256xf32, #tpu.memory_space<vmem>>, vector<1x256xf32>
    %136 = vector.broadcast %135 : vector<1x256xf32> to vector<16x256xf32>
    %137 = arith.addf %134, %136 : vector<16x256xf32>
    %138 = arith.mulf %137, %137 : vector<16x256xf32>
    %139 = arith.mulf %137, %138 : vector<16x256xf32>
    %cst_48 = arith.constant 4.471500e-02 : f32
    %140 = vector.broadcast %cst_48 : f32 to vector<16x256xf32>
    %141 = arith.mulf %140, %139 : vector<16x256xf32>
    %142 = arith.addf %137, %141 : vector<16x256xf32>
    %cst_49 = arith.constant 0.797884583 : f32
    %143 = vector.broadcast %cst_49 : f32 to vector<16x256xf32>
    %144 = arith.mulf %143, %142 : vector<16x256xf32>
    %145 = math.tanh %144 : vector<16x256xf32>
    %cst_50 = arith.constant 1.000000e+00 : f32
    %146 = vector.broadcast %cst_50 : f32 to vector<16x256xf32>
    %147 = arith.addf %146, %145 : vector<16x256xf32>
    %cst_51 = arith.constant 5.000000e-01 : f32
    %148 = vector.broadcast %cst_51 : f32 to vector<16x256xf32>
    %149 = arith.mulf %148, %147 : vector<16x256xf32>
    %150 = arith.mulf %137, %149 : vector<16x256xf32>
    %151 = arith.truncf %150 : vector<16x256xf32> to vector<16x256xbf16>
    %c0_52 = arith.constant 0 : index
    %c0_53 = arith.constant 0 : index
    %152 = vector.load %arg20[%c0_52, %c0_53] : memref<256x64xbf16, #tpu.memory_space<vmem>>, vector<256x64xbf16>
    %cst_54 = arith.constant dense<0.000000e+00> : vector<16x64xf32>
    %153 = tpu.matmul %151, %152, %cst_54 {dimension_numbers = #tpu.dot_dimension_numbers<[1], [0], [0], [1], [0, 0, 1, 1], [], []>} : vector<16x256xbf16>, vector<256x64xbf16>, vector<16x64xf32> -> vector<16x64xf32>
    %c0_55 = arith.constant 0 : index
    %c0_56 = arith.constant 0 : index
    %154 = vector.load %arg21[%c0_55, %c0_56] : memref<1x64xf32, #tpu.memory_space<vmem>>, vector<1x64xf32>
    %155 = vector.broadcast %154 : vector<1x64xf32> to vector<16x64xf32>
    %156 = arith.addf %153, %155 : vector<16x64xf32>
    %157 = arith.addf %107, %156 : vector<16x64xf32>
    %158 = arith.truncf %157 : vector<16x64xf32> to vector<16x64xbf16>
    %c0_57 = arith.constant 0 : index
    %c0_58 = arith.constant 0 : index
    %c0_59 = arith.constant 0 : index
    %159 = vector.load %arg22[%c0_57, %c0_58, %c0_59] : memref<1x16x64xbf16, #tpu.memory_space<vmem>>, vector<1x16x64xbf16>
    %160 = vector.shape_cast %159 : vector<1x16x64xbf16> to vector<16x64xbf16>
    %161 = vector.shape_cast %158 : vector<16x64xbf16> to vector<1x16x64xbf16>
    tpu.vector_store %arg22[%c0_57, %c0_58, %c0_59], %161 {strides = array<i32>} : memref<1x16x64xbf16, #tpu.memory_space<vmem>>, vector<1x16x64xbf16>,
    %c0_60 = arith.constant 0 : index
    %c0_61 = arith.constant 0 : index
    %c0_62 = arith.constant 0 : index
    %162 = vector.load %arg2[%c0_60, %c0_61, %c0_62] : memref<1x16x64xbf16, #tpu.memory_space<vmem>>, vector<1x16x64xbf16>
    %163 = vector.shape_cast %162 : vector<1x16x64xbf16> to vector<16x64xbf16>
    %164 = arith.extf %163 : vector<16x64xbf16> to vector<16x64xf32>
    %c0_63 = arith.constant 0 : index
    %c0_64 = arith.constant 0 : index
    %165 = vector.load %arg8[%c0_63, %c0_64] : memref<1x64xf32, #tpu.memory_space<vmem>>, vector<1x64xf32>
    %c0_65 = arith.constant 0 : index
    %c0_66 = arith.constant 0 : index
    %166 = vector.load %arg9[%c0_65, %c0_66] : memref<1x64xf32, #tpu.memory_space<vmem>>, vector<1x64xf32>
    %cst_67 = arith.constant dense<0.000000e+00> : vector<16xf32>
    %167 = vector.multi_reduction <add>, %2, %cst_67 [1] : vector<16x64xf32> to vector<16xf32>
    %168 = vector.shape_cast %167 : vector<16xf32> to vector<16x1xf32>
    %cst_68 = arith.constant 6.400000e+01 : f32
    %169 = vector.broadcast %cst_68 : f32 to vector<16x1xf32>
    %170 = arith.divf %168, %169 : vector<16x1xf32>
    %171 = vector.broadcast %170 : vector<16x1xf32> to vector<16x64xf32>
    %172 = arith.subf %2, %171 : vector<16x64xf32>
    %173 = arith.mulf %172, %172 : vector<16x64xf32>
    %cst_69 = arith.constant dense<0.000000e+00> : vector<16xf32>
    %174 = vector.multi_reduction <add>, %173, %cst_69 [1] : vector<16x64xf32> to vector<16xf32>
    %175 = vector.shape_cast %174 : vector<16xf32> to vector<16x1xf32>
    %cst_70 = arith.constant 6.400000e+01 : f32
    %176 = vector.broadcast %cst_70 : f32 to vector<16x1xf32>
    %177 = arith.divf %175, %176 : vector<16x1xf32>
    %178 = vector.broadcast %170 : vector<16x1xf32> to vector<16x64xf32>
    %179 = arith.subf %2, %178 : vector<16x64xf32>
    %cst_71 = arith.constant 9.99999974E-6 : f32
    %180 = vector.broadcast %cst_71 : f32 to vector<16x1xf32>
    %181 = arith.addf %177, %180 : vector<16x1xf32>
    %182 = math.rsqrt %181 : vector<16x1xf32>
    %183 = vector.broadcast %182 : vector<16x1xf32> to vector<16x64xf32>
    %184 = arith.mulf %179, %183 : vector<16x64xf32>
    %185 = vector.broadcast %165 : vector<1x64xf32> to vector<16x64xf32>
    %186 = arith.mulf %184, %185 : vector<16x64xf32>
    %187 = vector.broadcast %166 : vector<1x64xf32> to vector<16x64xf32>
    %188 = arith.addf %186, %187 : vector<16x64xf32>
    %c0_72 = arith.constant 0 : index
    %c0_73 = arith.constant 0 : index
    %189 = vector.load %arg10[%c0_72, %c0_73] : memref<1x64xf32, #tpu.memory_space<vmem>>, vector<1x64xf32>
    %c0_74 = arith.constant 0 : index
    %c0_75 = arith.constant 0 : index
    %190 = vector.load %arg11[%c0_74, %c0_75] : memref<1x64xf32, #tpu.memory_space<vmem>>, vector<1x64xf32>
    %cst_76 = arith.constant dense<0.000000e+00> : vector<16xf32>
    %191 = vector.multi_reduction <add>, %188, %cst_76 [1] : vector<16x64xf32> to vector<16xf32>
    %192 = vector.shape_cast %191 : vector<16xf32> to vector<16x1xf32>
    %cst_77 = arith.constant 6.400000e+01 : f32
    %193 = vector.broadcast %cst_77 : f32 to vector<16x1xf32>
    %194 = arith.divf %192, %193 : vector<16x1xf32>
    %195 = vector.broadcast %194 : vector<16x1xf32> to vector<16x64xf32>
    %196 = arith.subf %188, %195 : vector<16x64xf32>
    %197 = arith.mulf %196, %196 : vector<16x64xf32>
    %cst_78 = arith.constant dense<0.000000e+00> : vector<16xf32>
    %198 = vector.multi_reduction <add>, %197, %cst_78 [1] : vector<16x64xf32> to vector<16xf32>
    %199 = vector.shape_cast %198 : vector<16xf32> to vector<16x1xf32>
    %cst_79 = arith.constant 6.400000e+01 : f32
    %200 = vector.broadcast %cst_79 : f32 to vector<16x1xf32>
    %201 = arith.divf %199, %200 : vector<16x1xf32>
    %202 = vector.broadcast %194 : vector<16x1xf32> to vector<16x64xf32>
    %203 = arith.subf %188, %202 : vector<16x64xf32>
    %cst_80 = arith.constant 9.99999974E-6 : f32
    %204 = vector.broadcast %cst_80 : f32 to vector<16x1xf32>
    %205 = arith.addf %201, %204 : vector<16x1xf32>
    %206 = math.rsqrt %205 : vector<16x1xf32>
    %207 = vector.broadcast %206 : vector<16x1xf32> to vector<16x64xf32>
    %208 = arith.mulf %203, %207 : vector<16x64xf32>
    %209 = vector.broadcast %189 : vector<1x64xf32> to vector<16x64xf32>
    %210 = arith.mulf %208, %209 : vector<16x64xf32>
    %211 = vector.broadcast %190 : vector<1x64xf32> to vector<16x64xf32>
    %212 = arith.addf %210, %211 : vector<16x64xf32>
    %c0_81 = arith.constant 0 : index
    %c0_82 = arith.constant 0 : index
    %213 = vector.load %arg10[%c0_81, %c0_82] : memref<1x64xf32, #tpu.memory_space<vmem>>, vector<1x64xf32>
    %c0_83 = arith.constant 0 : index
    %c0_84 = arith.constant 0 : index
    %214 = vector.load %arg11[%c0_83, %c0_84] : memref<1x64xf32, #tpu.memory_space<vmem>>, vector<1x64xf32>
    %cst_85 = arith.constant dense<0.000000e+00> : vector<16xf32>
    %215 = vector.multi_reduction <add>, %164, %cst_85 [1] : vector<16x64xf32> to vector<16xf32>
    %216 = vector.shape_cast %215 : vector<16xf32> to vector<16x1xf32>
    %cst_86 = arith.constant 6.400000e+01 : f32
    %217 = vector.broadcast %cst_86 : f32 to vector<16x1xf32>
    %218 = arith.divf %216, %217 : vector<16x1xf32>
    %219 = vector.broadcast %218 : vector<16x1xf32> to vector<16x64xf32>
    %220 = arith.subf %164, %219 : vector<16x64xf32>
    %221 = arith.mulf %220, %220 : vector<16x64xf32>
    %cst_87 = arith.constant dense<0.000000e+00> : vector<16xf32>
    %222 = vector.multi_reduction <add>, %221, %cst_87 [1] : vector<16x64xf32> to vector<16xf32>
    %223 = vector.shape_cast %222 : vector<16xf32> to vector<16x1xf32>
    %cst_88 = arith.constant 6.400000e+01 : f32
    %224 = vector.broadcast %cst_88 : f32 to vector<16x1xf32>
    %225 = arith.divf %223, %224 : vector<16x1xf32>
    %226 = vector.broadcast %218 : vector<16x1xf32> to vector<16x64xf32>
    %227 = arith.subf %164, %226 : vector<16x64xf32>
    %cst_89 = arith.constant 9.99999974E-6 : f32
    %228 = vector.broadcast %cst_89 : f32 to vector<16x1xf32>
    %229 = arith.addf %225, %228 : vector<16x1xf32>
    %230 = math.rsqrt %229 : vector<16x1xf32>
    %231 = vector.broadcast %230 : vector<16x1xf32> to vector<16x64xf32>
    %232 = arith.mulf %227, %231 : vector<16x64xf32>
    %233 = vector.broadcast %213 : vector<1x64xf32> to vector<16x64xf32>
    %234 = arith.mulf %232, %233 : vector<16x64xf32>
    %235 = vector.broadcast %214 : vector<1x64xf32> to vector<16x64xf32>
    %236 = arith.addf %234, %235 : vector<16x64xf32>
    %237 = arith.truncf %212 : vector<16x64xf32> to vector<16x64xbf16>
    %c0_90 = arith.constant 0 : index
    %c0_91 = arith.constant 0 : index
    %238 = vector.load %arg12[%c0_90, %c0_91] : memref<64x64xbf16, #tpu.memory_space<vmem>>, vector<64x64xbf16>
    %cst_92 = arith.constant dense<0.000000e+00> : vector<16x64xf32>
    %239 = tpu.matmul %237, %238, %cst_92 {dimension_numbers = #tpu.dot_dimension_numbers<[1], [0], [0], [1], [0, 0, 1, 1], [], []>} : vector<16x64xbf16>, vector<64x64xbf16>, vector<16x64xf32> -> vector<16x64xf32>
    %240 = arith.truncf %239 : vector<16x64xf32> to vector<16x64xbf16>
    %241 = arith.truncf %212 : vector<16x64xf32> to vector<16x64xbf16>
    %c0_93 = arith.constant 0 : index
    %c0_94 = arith.constant 0 : index
    %242 = vector.load %arg13[%c0_93, %c0_94] : memref<64x128xbf16, #tpu.memory_space<vmem>>, vector<64x128xbf16>
    %cst_95 = arith.constant dense<0.000000e+00> : vector<16x128xf32>
    %243 = tpu.matmul %241, %242, %cst_95 {dimension_numbers = #tpu.dot_dimension_numbers<[1], [0], [0], [1], [0, 0, 1, 1], [], []>} : vector<16x64xbf16>, vector<64x128xbf16>, vector<16x128xf32> -> vector<16x128xf32>
    %244 = vector.extract_strided_slice %243 {offsets = [0, 0], sizes = [16, 64], strides = [1, 1]} : vector<16x128xf32> to vector<16x64xf32>
    %245 = arith.truncf %244 : vector<16x64xf32> to vector<16x64xbf16>
    %246 = vector.extract_strided_slice %243 {offsets = [0, 64], sizes = [16, 64], strides = [1, 1]} : vector<16x128xf32> to vector<16x64xf32>
    %247 = arith.truncf %246 : vector<16x64xf32> to vector<16x64xbf16>
    %248 = arith.truncf %236 : vector<16x64xf32> to vector<16x64xbf16>
    %c0_96 = arith.constant 0 : index
    %c0_97 = arith.constant 0 : index
    %249 = vector.load %arg13[%c0_96, %c0_97] : memref<64x128xbf16, #tpu.memory_space<vmem>>, vector<64x128xbf16>
    %cst_98 = arith.constant dense<0.000000e+00> : vector<16x128xf32>
    %250 = tpu.matmul %248, %249, %cst_98 {dimension_numbers = #tpu.dot_dimension_numbers<[1], [0], [0], [1], [0, 0, 1, 1], [], []>} : vector<16x64xbf16>, vector<64x128xbf16>, vector<16x128xf32> -> vector<16x128xf32>
    %251 = vector.extract_strided_slice %250 {offsets = [0, 0], sizes = [16, 64], strides = [1, 1]} : vector<16x128xf32> to vector<16x64xf32>
    %252 = arith.truncf %251 : vector<16x64xf32> to vector<16x64xbf16>
    %253 = vector.extract_strided_slice %250 {offsets = [0, 64], sizes = [16, 64], strides = [1, 1]} : vector<16x128xf32> to vector<16x64xf32>
    %254 = arith.truncf %253 : vector<16x64xf32> to vector<16x64xbf16>
    %255 = vector.extract_strided_slice %240 {offsets = [0, 0], sizes = [16, 16], strides = [1, 1]} : vector<16x64xbf16> to vector<16x16xbf16>
    %256 = vector.extract_strided_slice %245 {offsets = [0, 0], sizes = [16, 16], strides = [1, 1]} : vector<16x64xbf16> to vector<16x16xbf16>
    %cst_99 = arith.constant dense<0.000000e+00> : vector<16x16xf32>
    %257 = tpu.matmul %255, %256, %cst_99 {dimension_numbers = #tpu.dot_dimension_numbers<[1], [1], [0], [0], [0, 0, 1, 0], [], []>} : vector<16x16xbf16>, vector<16x16xbf16>, vector<16x16xf32> -> vector<16x16xf32>
    %258 = vector.extract_strided_slice %252 {offsets = [0, 0], sizes = [16, 16], strides = [1, 1]} : vector<16x64xbf16> to vector<16x16xbf16>
    %cst_100 = arith.constant dense<0.000000e+00> : vector<16x16xf32>
    %259 = tpu.matmul %255, %258, %cst_100 {dimension_numbers = #tpu.dot_dimension_numbers<[1], [1], [0], [0], [0, 0, 1, 0], [], []>} : vector<16x16xbf16>, vector<16x16xbf16>, vector<16x16xf32> -> vector<16x16xf32>
    %cst_101 = arith.constant dense<0xFF800000> : vector<16xf32>
    %260 = vector.multi_reduction <maximumf>, %257, %cst_101 [1] : vector<16x16xf32> to vector<16xf32>
    %261 = vector.shape_cast %260 : vector<16xf32> to vector<16x1xf32>
    %cst_102 = arith.constant dense<0xFF800000> : vector<16xf32>
    %262 = vector.multi_reduction <maximumf>, %259, %cst_102 [1] : vector<16x16xf32> to vector<16xf32>
    %263 = vector.shape_cast %262 : vector<16xf32> to vector<16x1xf32>
    %264 = arith.maximumf %261, %263 : vector<16x1xf32>
    %265 = vector.broadcast %264 : vector<16x1xf32> to vector<16x16xf32>
    %266 = arith.subf %257, %265 : vector<16x16xf32>
    %267 = math.exp %266 : vector<16x16xf32>
    %268 = vector.broadcast %264 : vector<16x1xf32> to vector<16x16xf32>
    %269 = arith.subf %259, %268 : vector<16x16xf32>
    %270 = math.exp %269 : vector<16x16xf32>
    %cst_103 = arith.constant dense<0.000000e+00> : vector<16xf32>
    %271 = vector.multi_reduction <add>, %267, %cst_103 [1] : vector<16x16xf32> to vector<16xf32>
    %272 = vector.shape_cast %271 : vector<16xf32> to vector<16x1xf32>
    %cst_104 = arith.constant dense<0.000000e+00> : vector<16xf32>
    %273 = vector.multi_reduction <add>, %270, %cst_104 [1] : vector<16x16xf32> to vector<16xf32>
    %274 = vector.shape_cast %273 : vector<16xf32> to vector<16x1xf32>
    %275 = arith.addf %272, %274 : vector<16x1xf32>
    %276 = arith.truncf %267 : vector<16x16xf32> to vector<16x16xbf16>
    %277 = vector.extract_strided_slice %247 {offsets = [0, 0], sizes = [16, 16], strides = [1, 1]} : vector<16x64xbf16> to vector<16x16xbf16>
    %cst_105 = arith.constant dense<0.000000e+00> : vector<16x16xf32>
    %278 = tpu.matmul %276, %277, %cst_105 {dimension_numbers = #tpu.dot_dimension_numbers<[1], [0], [0], [1], [0, 0, 1, 1], [], []>} : vector<16x16xbf16>, vector<16x16xbf16>, vector<16x16xf32> -> vector<16x16xf32>
    %279 = arith.truncf %270 : vector<16x16xf32> to vector<16x16xbf16>
    %280 = vector.extract_strided_slice %254 {offsets = [0, 0], sizes = [16, 16], strides = [1, 1]} : vector<16x64xbf16> to vector<16x16xbf16>
    %cst_106 = arith.constant dense<0.000000e+00> : vector<16x16xf32>
    %281 = tpu.matmul %279, %280, %cst_106 {dimension_numbers = #tpu.dot_dimension_numbers<[1], [0], [0], [1], [0, 0, 1, 1], [], []>} : vector<16x16xbf16>, vector<16x16xbf16>, vector<16x16xf32> -> vector<16x16xf32>
    %282 = arith.addf %278, %281 : vector<16x16xf32>
    %283 = tpu.reciprocal %275 : vector<16x1xf32> -> vector<16x1xf32>
    %284 = vector.broadcast %283 : vector<16x1xf32> to vector<16x16xf32>
    %285 = arith.mulf %282, %284 : vector<16x16xf32>
    %286 = vector.extract_strided_slice %240 {offsets = [0, 16], sizes = [16, 16], strides = [1, 1]} : vector<16x64xbf16> to vector<16x16xbf16>
    %287 = vector.extract_strided_slice %245 {offsets = [0, 16], sizes = [16, 16], strides = [1, 1]} : vector<16x64xbf16> to vector<16x16xbf16>
    %cst_107 = arith.constant dense<0.000000e+00> : vector<16x16xf32>
    %288 = tpu.matmul %286, %287, %cst_107 {dimension_numbers = #tpu.dot_dimension_numbers<[1], [1], [0], [0], [0, 0, 1, 0], [], []>} : vector<16x16xbf16>, vector<16x16xbf16>, vector<16x16xf32> -> vector<16x16xf32>
    %289 = vector.extract_strided_slice %252 {offsets = [0, 16], sizes = [16, 16], strides = [1, 1]} : vector<16x64xbf16> to vector<16x16xbf16>
    %cst_108 = arith.constant dense<0.000000e+00> : vector<16x16xf32>
    %290 = tpu.matmul %286, %289, %cst_108 {dimension_numbers = #tpu.dot_dimension_numbers<[1], [1], [0], [0], [0, 0, 1, 0], [], []>} : vector<16x16xbf16>, vector<16x16xbf16>, vector<16x16xf32> -> vector<16x16xf32>
    %cst_109 = arith.constant dense<0xFF800000> : vector<16xf32>
    %291 = vector.multi_reduction <maximumf>, %288, %cst_109 [1] : vector<16x16xf32> to vector<16xf32>
    %292 = vector.shape_cast %291 : vector<16xf32> to vector<16x1xf32>
    %cst_110 = arith.constant dense<0xFF800000> : vector<16xf32>
    %293 = vector.multi_reduction <maximumf>, %290, %cst_110 [1] : vector<16x16xf32> to vector<16xf32>
    %294 = vector.shape_cast %293 : vector<16xf32> to vector<16x1xf32>
    %295 = arith.maximumf %292, %294 : vector<16x1xf32>
    %296 = vector.broadcast %295 : vector<16x1xf32> to vector<16x16xf32>
    %297 = arith.subf %288, %296 : vector<16x16xf32>
    %298 = math.exp %297 : vector<16x16xf32>
    %299 = vector.broadcast %295 : vector<16x1xf32> to vector<16x16xf32>
    %300 = arith.subf %290, %299 : vector<16x16xf32>
    %301 = math.exp %300 : vector<16x16xf32>
    %cst_111 = arith.constant dense<0.000000e+00> : vector<16xf32>
    %302 = vector.multi_reduction <add>, %298, %cst_111 [1] : vector<16x16xf32> to vector<16xf32>
    %303 = vector.shape_cast %302 : vector<16xf32> to vector<16x1xf32>
    %cst_112 = arith.constant dense<0.000000e+00> : vector<16xf32>
    %304 = vector.multi_reduction <add>, %301, %cst_112 [1] : vector<16x16xf32> to vector<16xf32>
    %305 = vector.shape_cast %304 : vector<16xf32> to vector<16x1xf32>
    %306 = arith.addf %303, %305 : vector<16x1xf32>
    %307 = arith.truncf %298 : vector<16x16xf32> to vector<16x16xbf16>
    %308 = vector.extract_strided_slice %247 {offsets = [0, 16], sizes = [16, 16], strides = [1, 1]} : vector<16x64xbf16> to vector<16x16xbf16>
    %cst_113 = arith.constant dense<0.000000e+00> : vector<16x16xf32>
    %309 = tpu.matmul %307, %308, %cst_113 {dimension_numbers = #tpu.dot_dimension_numbers<[1], [0], [0], [1], [0, 0, 1, 1], [], []>} : vector<16x16xbf16>, vector<16x16xbf16>, vector<16x16xf32> -> vector<16x16xf32>
    %310 = arith.truncf %301 : vector<16x16xf32> to vector<16x16xbf16>
    %311 = vector.extract_strided_slice %254 {offsets = [0, 16], sizes = [16, 16], strides = [1, 1]} : vector<16x64xbf16> to vector<16x16xbf16>
    %cst_114 = arith.constant dense<0.000000e+00> : vector<16x16xf32>
    %312 = tpu.matmul %310, %311, %cst_114 {dimension_numbers = #tpu.dot_dimension_numbers<[1], [0], [0], [1], [0, 0, 1, 1], [], []>} : vector<16x16xbf16>, vector<16x16xbf16>, vector<16x16xf32> -> vector<16x16xf32>
    %313 = arith.addf %309, %312 : vector<16x16xf32>
    %314 = tpu.reciprocal %306 : vector<16x1xf32> -> vector<16x1xf32>
    %315 = vector.broadcast %314 : vector<16x1xf32> to vector<16x16xf32>
    %316 = arith.mulf %313, %315 : vector<16x16xf32>
    %317 = vector.extract_strided_slice %240 {offsets = [0, 32], sizes = [16, 16], strides = [1, 1]} : vector<16x64xbf16> to vector<16x16xbf16>
    %318 = vector.extract_strided_slice %245 {offsets = [0, 32], sizes = [16, 16], strides = [1, 1]} : vector<16x64xbf16> to vector<16x16xbf16>
    %cst_115 = arith.constant dense<0.000000e+00> : vector<16x16xf32>
    %319 = tpu.matmul %317, %318, %cst_115 {dimension_numbers = #tpu.dot_dimension_numbers<[1], [1], [0], [0], [0, 0, 1, 0], [], []>} : vector<16x16xbf16>, vector<16x16xbf16>, vector<16x16xf32> -> vector<16x16xf32>
    %320 = vector.extract_strided_slice %252 {offsets = [0, 32], sizes = [16, 16], strides = [1, 1]} : vector<16x64xbf16> to vector<16x16xbf16>
    %cst_116 = arith.constant dense<0.000000e+00> : vector<16x16xf32>
    %321 = tpu.matmul %317, %320, %cst_116 {dimension_numbers = #tpu.dot_dimension_numbers<[1], [1], [0], [0], [0, 0, 1, 0], [], []>} : vector<16x16xbf16>, vector<16x16xbf16>, vector<16x16xf32> -> vector<16x16xf32>
    %cst_117 = arith.constant dense<0xFF800000> : vector<16xf32>
    %322 = vector.multi_reduction <maximumf>, %319, %cst_117 [1] : vector<16x16xf32> to vector<16xf32>
    %323 = vector.shape_cast %322 : vector<16xf32> to vector<16x1xf32>
    %cst_118 = arith.constant dense<0xFF800000> : vector<16xf32>
    %324 = vector.multi_reduction <maximumf>, %321, %cst_118 [1] : vector<16x16xf32> to vector<16xf32>
    %325 = vector.shape_cast %324 : vector<16xf32> to vector<16x1xf32>
    %326 = arith.maximumf %323, %325 : vector<16x1xf32>
    %327 = vector.broadcast %326 : vector<16x1xf32> to vector<16x16xf32>
    %328 = arith.subf %319, %327 : vector<16x16xf32>
    %329 = math.exp %328 : vector<16x16xf32>
    %330 = vector.broadcast %326 : vector<16x1xf32> to vector<16x16xf32>
    %331 = arith.subf %321, %330 : vector<16x16xf32>
    %332 = math.exp %331 : vector<16x16xf32>
    %cst_119 = arith.constant dense<0.000000e+00> : vector<16xf32>
    %333 = vector.multi_reduction <add>, %329, %cst_119 [1] : vector<16x16xf32> to vector<16xf32>
    %334 = vector.shape_cast %333 : vector<16xf32> to vector<16x1xf32>
    %cst_120 = arith.constant dense<0.000000e+00> : vector<16xf32>
    %335 = vector.multi_reduction <add>, %332, %cst_120 [1] : vector<16x16xf32> to vector<16xf32>
    %336 = vector.shape_cast %335 : vector<16xf32> to vector<16x1xf32>
    %337 = arith.addf %334, %336 : vector<16x1xf32>
    %338 = arith.truncf %329 : vector<16x16xf32> to vector<16x16xbf16>
    %339 = vector.extract_strided_slice %247 {offsets = [0, 32], sizes = [16, 16], strides = [1, 1]} : vector<16x64xbf16> to vector<16x16xbf16>
    %cst_121 = arith.constant dense<0.000000e+00> : vector<16x16xf32>
    %340 = tpu.matmul %338, %339, %cst_121 {dimension_numbers = #tpu.dot_dimension_numbers<[1], [0], [0], [1], [0, 0, 1, 1], [], []>} : vector<16x16xbf16>, vector<16x16xbf16>, vector<16x16xf32> -> vector<16x16xf32>
    %341 = arith.truncf %332 : vector<16x16xf32> to vector<16x16xbf16>
    %342 = vector.extract_strided_slice %254 {offsets = [0, 32], sizes = [16, 16], strides = [1, 1]} : vector<16x64xbf16> to vector<16x16xbf16>
    %cst_122 = arith.constant dense<0.000000e+00> : vector<16x16xf32>
    %343 = tpu.matmul %341, %342, %cst_122 {dimension_numbers = #tpu.dot_dimension_numbers<[1], [0], [0], [1], [0, 0, 1, 1], [], []>} : vector<16x16xbf16>, vector<16x16xbf16>, vector<16x16xf32> -> vector<16x16xf32>
    %344 = arith.addf %340, %343 : vector<16x16xf32>
    %345 = tpu.reciprocal %337 : vector<16x1xf32> -> vector<16x1xf32>
    %346 = vector.broadcast %345 : vector<16x1xf32> to vector<16x16xf32>
    %347 = arith.mulf %344, %346 : vector<16x16xf32>
    %348 = vector.extract_strided_slice %240 {offsets = [0, 48], sizes = [16, 16], strides = [1, 1]} : vector<16x64xbf16> to vector<16x16xbf16>
    %349 = vector.extract_strided_slice %245 {offsets = [0, 48], sizes = [16, 16], strides = [1, 1]} : vector<16x64xbf16> to vector<16x16xbf16>
    %cst_123 = arith.constant dense<0.000000e+00> : vector<16x16xf32>
    %350 = tpu.matmul %348, %349, %cst_123 {dimension_numbers = #tpu.dot_dimension_numbers<[1], [1], [0], [0], [0, 0, 1, 0], [], []>} : vector<16x16xbf16>, vector<16x16xbf16>, vector<16x16xf32> -> vector<16x16xf32>
    %351 = vector.extract_strided_slice %252 {offsets = [0, 48], sizes = [16, 16], strides = [1, 1]} : vector<16x64xbf16> to vector<16x16xbf16>
    %cst_124 = arith.constant dense<0.000000e+00> : vector<16x16xf32>
    %352 = tpu.matmul %348, %351, %cst_124 {dimension_numbers = #tpu.dot_dimension_numbers<[1], [1], [0], [0], [0, 0, 1, 0], [], []>} : vector<16x16xbf16>, vector<16x16xbf16>, vector<16x16xf32> -> vector<16x16xf32>
    %cst_125 = arith.constant dense<0xFF800000> : vector<16xf32>
    %353 = vector.multi_reduction <maximumf>, %350, %cst_125 [1] : vector<16x16xf32> to vector<16xf32>
    %354 = vector.shape_cast %353 : vector<16xf32> to vector<16x1xf32>
    %cst_126 = arith.constant dense<0xFF800000> : vector<16xf32>
    %355 = vector.multi_reduction <maximumf>, %352, %cst_126 [1] : vector<16x16xf32> to vector<16xf32>
    %356 = vector.shape_cast %355 : vector<16xf32> to vector<16x1xf32>
    %357 = arith.maximumf %354, %356 : vector<16x1xf32>
    %358 = vector.broadcast %357 : vector<16x1xf32> to vector<16x16xf32>
    %359 = arith.subf %350, %358 : vector<16x16xf32>
    %360 = math.exp %359 : vector<16x16xf32>
    %361 = vector.broadcast %357 : vector<16x1xf32> to vector<16x16xf32>
    %362 = arith.subf %352, %361 : vector<16x16xf32>
    %363 = math.exp %362 : vector<16x16xf32>
    %cst_127 = arith.constant dense<0.000000e+00> : vector<16xf32>
    %364 = vector.multi_reduction <add>, %360, %cst_127 [1] : vector<16x16xf32> to vector<16xf32>
    %365 = vector.shape_cast %364 : vector<16xf32> to vector<16x1xf32>
    %cst_128 = arith.constant dense<0.000000e+00> : vector<16xf32>
    %366 = vector.multi_reduction <add>, %363, %cst_128 [1] : vector<16x16xf32> to vector<16xf32>
    %367 = vector.shape_cast %366 : vector<16xf32> to vector<16x1xf32>
    %368 = arith.addf %365, %367 : vector<16x1xf32>
    %369 = arith.truncf %360 : vector<16x16xf32> to vector<16x16xbf16>
    %370 = vector.extract_strided_slice %247 {offsets = [0, 48], sizes = [16, 16], strides = [1, 1]} : vector<16x64xbf16> to vector<16x16xbf16>
    %cst_129 = arith.constant dense<0.000000e+00> : vector<16x16xf32>
    %371 = tpu.matmul %369, %370, %cst_129 {dimension_numbers = #tpu.dot_dimension_numbers<[1], [0], [0], [1], [0, 0, 1, 1], [], []>} : vector<16x16xbf16>, vector<16x16xbf16>, vector<16x16xf32> -> vector<16x16xf32>
    %372 = arith.truncf %363 : vector<16x16xf32> to vector<16x16xbf16>
    %373 = vector.extract_strided_slice %254 {offsets = [0, 48], sizes = [16, 16], strides = [1, 1]} : vector<16x64xbf16> to vector<16x16xbf16>
    %cst_130 = arith.constant dense<0.000000e+00> : vector<16x16xf32>
    %374 = tpu.matmul %372, %373, %cst_130 {dimension_numbers = #tpu.dot_dimension_numbers<[1], [0], [0], [1], [0, 0, 1, 1], [], []>} : vector<16x16xbf16>, vector<16x16xbf16>, vector<16x16xf32> -> vector<16x16xf32>
    %375 = arith.addf %371, %374 : vector<16x16xf32>
    %376 = tpu.reciprocal %368 : vector<16x1xf32> -> vector<16x1xf32>
    %377 = vector.broadcast %376 : vector<16x1xf32> to vector<16x16xf32>
    %378 = arith.mulf %375, %377 : vector<16x16xf32>
    %379 = tpu.concatenate %285, %316, %347, %378 in 1 : vector<16x16xf32>, vector<16x16xf32>, vector<16x16xf32>, vector<16x16xf32> -> vector<16x64xf32>
    %380 = arith.truncf %379 : vector<16x64xf32> to vector<16x64xbf16>
    %c0_131 = arith.constant 0 : index
    %c0_132 = arith.constant 0 : index
    %381 = vector.load %arg14[%c0_131, %c0_132] : memref<64x64xbf16, #tpu.memory_space<vmem>>, vector<64x64xbf16>
    %cst_133 = arith.constant dense<0.000000e+00> : vector<16x64xf32>
    %382 = tpu.matmul %380, %381, %cst_133 {dimension_numbers = #tpu.dot_dimension_numbers<[1], [0], [0], [1], [0, 0, 1, 1], [], []>} : vector<16x64xbf16>, vector<64x64xbf16>, vector<16x64xf32> -> vector<16x64xf32>
    %c0_134 = arith.constant 0 : index
    %c0_135 = arith.constant 0 : index
    %383 = vector.load %arg15[%c0_134, %c0_135] : memref<1x64xf32, #tpu.memory_space<vmem>>, vector<1x64xf32>
    %384 = vector.broadcast %383 : vector<1x64xf32> to vector<16x64xf32>
    %385 = arith.addf %382, %384 : vector<16x64xf32>
    %386 = arith.addf %2, %385 : vector<16x64xf32>
    %c0_136 = arith.constant 0 : index
    %c0_137 = arith.constant 0 : index
    %387 = vector.load %arg16[%c0_136, %c0_137] : memref<1x64xf32, #tpu.memory_space<vmem>>, vector<1x64xf32>
    %c0_138 = arith.constant 0 : index
    %c0_139 = arith.constant 0 : index
    %388 = vector.load %arg17[%c0_138, %c0_139] : memref<1x64xf32, #tpu.memory_space<vmem>>, vector<1x64xf32>
    %cst_140 = arith.constant dense<0.000000e+00> : vector<16xf32>
    %389 = vector.multi_reduction <add>, %386, %cst_140 [1] : vector<16x64xf32> to vector<16xf32>
    %390 = vector.shape_cast %389 : vector<16xf32> to vector<16x1xf32>
    %cst_141 = arith.constant 6.400000e+01 : f32
    %391 = vector.broadcast %cst_141 : f32 to vector<16x1xf32>
    %392 = arith.divf %390, %391 : vector<16x1xf32>
    %393 = vector.broadcast %392 : vector<16x1xf32> to vector<16x64xf32>
    %394 = arith.subf %386, %393 : vector<16x64xf32>
    %395 = arith.mulf %394, %394 : vector<16x64xf32>
    %cst_142 = arith.constant dense<0.000000e+00> : vector<16xf32>
    %396 = vector.multi_reduction <add>, %395, %cst_142 [1] : vector<16x64xf32> to vector<16xf32>
    %397 = vector.shape_cast %396 : vector<16xf32> to vector<16x1xf32>
    %cst_143 = arith.constant 6.400000e+01 : f32
    %398 = vector.broadcast %cst_143 : f32 to vector<16x1xf32>
    %399 = arith.divf %397, %398 : vector<16x1xf32>
    %400 = vector.broadcast %392 : vector<16x1xf32> to vector<16x64xf32>
    %401 = arith.subf %386, %400 : vector<16x64xf32>
    %cst_144 = arith.constant 9.99999974E-6 : f32
    %402 = vector.broadcast %cst_144 : f32 to vector<16x1xf32>
    %403 = arith.addf %399, %402 : vector<16x1xf32>
    %404 = math.rsqrt %403 : vector<16x1xf32>
    %405 = vector.broadcast %404 : vector<16x1xf32> to vector<16x64xf32>
    %406 = arith.mulf %401, %405 : vector<16x64xf32>
    %407 = vector.broadcast %387 : vector<1x64xf32> to vector<16x64xf32>
    %408 = arith.mulf %406, %407 : vector<16x64xf32>
    %409 = vector.broadcast %388 : vector<1x64xf32> to vector<16x64xf32>
    %410 = arith.addf %408, %409 : vector<16x64xf32>
    %411 = arith.truncf %410 : vector<16x64xf32> to vector<16x64xbf16>
    %c0_145 = arith.constant 0 : index
    %c0_146 = arith.constant 0 : index
    %412 = vector.load %arg18[%c0_145, %c0_146] : memref<64x256xbf16, #tpu.memory_space<vmem>>, vector<64x256xbf16>
    %cst_147 = arith.constant dense<0.000000e+00> : vector<16x256xf32>
    %413 = tpu.matmul %411, %412, %cst_147 {dimension_numbers = #tpu.dot_dimension_numbers<[1], [0], [0], [1], [0, 0, 1, 1], [], []>} : vector<16x64xbf16>, vector<64x256xbf16>, vector<16x256xf32> -> vector<16x256xf32>
    %c0_148 = arith.constant 0 : index
    %c0_149 = arith.constant 0 : index
    %414 = vector.load %arg19[%c0_148, %c0_149] : memref<1x256xf32, #tpu.memory_space<vmem>>, vector<1x256xf32>
    %415 = vector.broadcast %414 : vector<1x256xf32> to vector<16x256xf32>
    %416 = arith.addf %413, %415 : vector<16x256xf32>
    %417 = arith.mulf %416, %416 : vector<16x256xf32>
    %418 = arith.mulf %416, %417 : vector<16x256xf32>
    %cst_150 = arith.constant 4.471500e-02 : f32
    %419 = vector.broadcast %cst_150 : f32 to vector<16x256xf32>
    %420 = arith.mulf %419, %418 : vector<16x256xf32>
    %421 = arith.addf %416, %420 : vector<16x256xf32>
    %cst_151 = arith.constant 0.797884583 : f32
    %422 = vector.broadcast %cst_151 : f32 to vector<16x256xf32>
    %423 = arith.mulf %422, %421 : vector<16x256xf32>
    %424 = math.tanh %423 : vector<16x256xf32>
    %cst_152 = arith.constant 1.000000e+00 : f32
    %425 = vector.broadcast %cst_152 : f32 to vector<16x256xf32>
    %426 = arith.addf %425, %424 : vector<16x256xf32>
    %cst_153 = arith.constant 5.000000e-01 : f32
    %427 = vector.broadcast %cst_153 : f32 to vector<16x256xf32>
    %428 = arith.mulf %427, %426 : vector<16x256xf32>
    %429 = arith.mulf %416, %428 : vector<16x256xf32>
    %430 = arith.truncf %429 : vector<16x256xf32> to vector<16x256xbf16>
    %c0_154 = arith.constant 0 : index
    %c0_155 = arith.constant 0 : index
    %431 = vector.load %arg20[%c0_154, %c0_155] : memref<256x64xbf16, #tpu.memory_space<vmem>>, vector<256x64xbf16>
    %cst_156 = arith.constant dense<0.000000e+00> : vector<16x64xf32>
    %432 = tpu.matmul %430, %431, %cst_156 {dimension_numbers = #tpu.dot_dimension_numbers<[1], [0], [0], [1], [0, 0, 1, 1], [], []>} : vector<16x256xbf16>, vector<256x64xbf16>, vector<16x64xf32> -> vector<16x64xf32>
    %c0_157 = arith.constant 0 : index
    %c0_158 = arith.constant 0 : index
    %433 = vector.load %arg21[%c0_157, %c0_158] : memref<1x64xf32, #tpu.memory_space<vmem>>, vector<1x64xf32>
    %434 = vector.broadcast %433 : vector<1x64xf32> to vector<16x64xf32>
    %435 = arith.addf %432, %434 : vector<16x64xf32>
    %436 = arith.addf %386, %435 : vector<16x64xf32>
    %437 = arith.truncf %436 : vector<16x64xf32> to vector<16x64xbf16>
    %c0_159 = arith.constant 0 : index
    %c0_160 = arith.constant 0 : index
    %c0_161 = arith.constant 0 : index
    %438 = vector.load %arg23[%c0_159, %c0_160, %c0_161] : memref<1x16x64xbf16, #tpu.memory_space<vmem>>, vector<1x16x64xbf16>
    %439 = vector.shape_cast %438 : vector<1x16x64xbf16> to vector<16x64xbf16>
    %440 = vector.shape_cast %437 : vector<16x64xbf16> to vector<1x16x64xbf16>
    tpu.vector_store %arg23[%c0_159, %c0_160, %c0_161], %440 {strides = array<i32>} : memref<1x16x64xbf16, #tpu.memory_space<vmem>>, vector<1x16x64xbf16>,
    return
  }
  func.func @transform_0(%arg0: i32) -> (i32, i32, i32) {
    %c0_i32 = arith.constant 0 : i32
    %c0_i32_0 = arith.constant 0 : i32
    %c0_i32_1 = arith.constant 0 : i32
    return %arg0, %c0_i32, %c0_i32_0 : i32, i32, i32
  }
  func.func @transform_1(%arg0: i32) -> (i32, i32, i32) {
    %c0_i32 = arith.constant 0 : i32
    %c0_i32_0 = arith.constant 0 : i32
    %c0_i32_1 = arith.constant 0 : i32
    return %arg0, %c0_i32, %c0_i32_0 : i32, i32, i32
  }
  func.func @transform_2(%arg0: i32) -> (i32, i32) {
    %c0_i32 = arith.constant 0 : i32
    %c0_i32_0 = arith.constant 0 : i32
    %c0_i32_1 = arith.constant 0 : i32
    return %c0_i32, %c0_i32_0 : i32, i32
  }
  func.func @transform_3(%arg0: i32) -> (i32, i32) {
    %c0_i32 = arith.constant 0 : i32
    %c0_i32_0 = arith.constant 0 : i32
    %c0_i32_1 = arith.constant 0 : i32
    return %c0_i32, %c0_i32_0 : i32, i32
  }
  func.func @transform_4(%arg0: i32) -> (i32, i32) {
    %c0_i32 = arith.constant 0 : i32
    %c0_i32_0 = arith.constant 0 : i32
    %c0_i32_1 = arith.constant 0 : i32
    return %c0_i32, %c0_i32_0 : i32, i32
  }
  func.func @transform_5(%arg0: i32) -> (i32, i32) {
    %c0_i32 = arith.constant 0 : i32
    %c0_i32_0 = arith.constant 0 : i32
    %c0_i32_1 = arith.constant 0 : i32
    return %c0_i32, %c0_i32_0 : i32, i32
  }
  func.func @transform_6(%arg0: i32) -> (i32, i32) {
    %c0_i32 = arith.constant 0 : i32
    %c0_i32_0 = arith.constant 0 : i32
    %c0_i32_1 = arith.constant 0 : i32
    return %c0_i32, %c0_i32_0 : i32, i32
  }
  func.func @transform_7(%arg0: i32) -> (i32, i32) {
    %c0_i32 = arith.constant 0 : i32
    %c0_i32_0 = arith.constant 0 : i32
    %c0_i32_1 = arith.constant 0 : i32
    return %c0_i32, %c0_i32_0 : i32, i32
  }
  func.func @transform_8(%arg0: i32) -> (i32, i32) {
    %c0_i32 = arith.constant 0 : i32
    %c0_i32_0 = arith.constant 0 : i32
    %c0_i32_1 = arith.constant 0 : i32
    return %c0_i32, %c0_i32_0 : i32, i32
  }
  func.func @transform_9(%arg0: i32) -> (i32, i32) {
    %c0_i32 = arith.constant 0 : i32
    %c0_i32_0 = arith.constant 0 : i32
    %c0_i32_1 = arith.constant 0 : i32
    return %c0_i32, %c0_i32_0 : i32, i32
  }
  func.func @transform_10(%arg0: i32) -> (i32, i32) {
    %c0_i32 = arith.constant 0 : i32
    %c0_i32_0 = arith.constant 0 : i32
    %c0_i32_1 = arith.constant 0 : i32
    return %c0_i32, %c0_i32_0 : i32, i32
  }
  func.func @transform_11(%arg0: i32) -> (i32, i32) {
    %c0_i32 = arith.constant 0 : i32
    %c0_i32_0 = arith.constant 0 : i32
    %c0_i32_1 = arith.constant 0 : i32
    return %c0_i32, %c0_i32_0 : i32, i32
  }
  func.func @transform_12(%arg0: i32) -> (i32, i32) {
    %c0_i32 = arith.constant 0 : i32
    %c0_i32_0 = arith.constant 0 : i32
    %c0_i32_1 = arith.constant 0 : i32
    return %c0_i32, %c0_i32_0 : i32, i32
  }
  func.func @transform_13(%arg0: i32) -> (i32, i32) {
    %c0_i32 = arith.constant 0 : i32
    %c0_i32_0 = arith.constant 0 : i32
    %c0_i32_1 = arith.constant 0 : i32
    return %c0_i32, %c0_i32_0 : i32, i32
  }
  func.func @transform_14(%arg0: i32) -> (i32, i32) {
    %c0_i32 = arith.constant 0 : i32
    %c0_i32_0 = arith.constant 0 : i32
    %c0_i32_1 = arith.constant 0 : i32
    return %c0_i32, %c0_i32_0 : i32, i32
  }
  func.func @transform_15(%arg0: i32) -> (i32, i32) {
    %c0_i32 = arith.constant 0 : i32
    %c0_i32_0 = arith.constant 0 : i32
    %c0_i32_1 = arith.constant 0 : i32
    return %c0_i32, %c0_i32_0 : i32, i32
  }
  func.func @transform_16(%arg0: i32) -> (i32, i32) {
    %c0_i32 = arith.constant 0 : i32
    %c0_i32_0 = arith.constant 0 : i32
    %c0_i32_1 = arith.constant 0 : i32
    return %c0_i32, %c0_i32_0 : i32, i32
  }
  func.func @transform_17(%arg0: i32) -> (i32, i32) {
    %c0_i32 = arith.constant 0 : i32
    %c0_i32_0 = arith.constant 0 : i32
    %c0_i32_1 = arith.constant 0 : i32
    return %c0_i32, %c0_i32_0 : i32, i32
  }
  func.func @transform_18(%arg0: i32) -> (i32, i32) {
    %c0_i32 = arith.constant 0 : i32
    %c0_i32_0 = arith.constant 0 : i32
    %c0_i32_1 = arith.constant 0 : i32
    return %c0_i32, %c0_i32_0 : i32, i32
  }
  func.func @transform_19(%arg0: i32) -> (i32, i32) {
    %c0_i32 = arith.constant 0 : i32
    %c0_i32_0 = arith.constant 0 : i32
    %c0_i32_1 = arith.constant 0 : i32
    return %c0_i32, %c0_i32_0 : i32, i32
  }
  func.func @transform_20(%arg0: i32) -> (i32, i32) {
    %c0_i32 = arith.constant 0 : i32
    %c0_i32_0 = arith.constant 0 : i32
    %c0_i32_1 = arith.constant 0 : i32
    return %c0_i32, %c0_i32_0 : i32, i32
  }
  func.func @transform_21(%arg0: i32) -> (i32, i32, i32) {
    %c0_i32 = arith.constant 0 : i32
    %c0_i32_0 = arith.constant 0 : i32
    %c0_i32_1 = arith.constant 0 : i32
    return %arg0, %c0_i32, %c0_i32_0 : i32, i32, i32
  }
  func.func @transform_22(%arg0: i32) -> (i32, i32, i32) {
    %c0_i32 = arith.constant 0 : i32
    %c0_i32_0 = arith.constant 0 : i32
    %c0_i32_1 = arith.constant 0 : i32
    return %arg0, %c0_i32, %c0_i32_0 : i32, i32, i32
  }
}

</mosaic_0001>

<llo_original>
// kernel: tpu_custom_call.1
$region0: #{tpu_custom_call.1}
  #allocation0 [shape = 'u32[]', space=smem, size = 0x4, offset = 0x4, fixed_abs, tag = 'smem constant byte address 0x4 - core index']
  #allocation1 [shape = 'u32[144,128]{1,0:T(1,128)}', space=vmem, size = 0x12000, scoped, tag = 'internal scratch']
  %s0 = inlined_call_operand.hbm [shape: bf16[2,16,64], index: 0, kind: input, shape index: {}]
  %s1 = inlined_call_operand.hbm [shape: bf16[2,16,64], index: 1, kind: input, shape index: {}]
  %s2 = inlined_call_operand.hbm [shape: f32[1,64], index: 2, kind: input, shape index: {}]
  %s3 = inlined_call_operand.hbm [shape: f32[1,64], index: 3, kind: input, shape index: {}]
  %s4 = inlined_call_operand.hbm [shape: bf16[64,192], index: 4, kind: input, shape index: {}]
  %s5 = inlined_call_operand.hbm [shape: bf16[64,64], index: 5, kind: input, shape index: {}]
  %s6 = inlined_call_operand.hbm [shape: f32[1,64], index: 6, kind: input, shape index: {}]
  %s7 = inlined_call_operand.hbm [shape: f32[1,64], index: 7, kind: input, shape index: {}]
  %s8 = inlined_call_operand.hbm [shape: f32[1,64], index: 8, kind: input, shape index: {}]
  %s9 = inlined_call_operand.hbm [shape: f32[1,64], index: 9, kind: input, shape index: {}]
  %s10 = inlined_call_operand.hbm [shape: f32[1,64], index: 10, kind: input, shape index: {}]
  %s11 = inlined_call_operand.hbm [shape: bf16[64,64], index: 11, kind: input, shape index: {}]
  %s12 = inlined_call_operand.hbm [shape: bf16[64,128], index: 12, kind: input, shape index: {}]
  %s13 = inlined_call_operand.hbm [shape: bf16[64,64], index: 13, kind: input, shape index: {}]
  %s14 = inlined_call_operand.hbm [shape: f32[1,64], index: 14, kind: input, shape index: {}]
  %s15 = inlined_call_operand.hbm [shape: f32[1,64], index: 15, kind: input, shape index: {}]
  %s16 = inlined_call_operand.hbm [shape: f32[1,64], index: 16, kind: input, shape index: {}]
  %s17 = inlined_call_operand.hbm [shape: bf16[64,256], index: 17, kind: input, shape index: {}]
  %s18 = inlined_call_operand.hbm [shape: f32[1,256], index: 18, kind: input, shape index: {}]
  %s19 = inlined_call_operand.hbm [shape: bf16[256,64], index: 19, kind: input, shape index: {}]
  %s20 = inlined_call_operand.hbm [shape: f32[1,64], index: 20, kind: input, shape index: {}]
  %s21 = inlined_call_operand.hbm [shape: bf16[2,16,64], index: 21, kind: output, shape index: {0}]
  %s22 = inlined_call_operand.hbm [shape: bf16[2,16,64], index: 22, kind: output, shape index: {1}]
  %23 = xla_tuple %s21, %s22
  %s24 = sld [smem:[#allocation0]]
  $region209: #{tpu_custom_call.1} parent=0
    _
  %s26 = ssub.s32 1, %s24
  %s27 = scalar_select 0, %s26, %s24
  $region1: #{tpu_custom_call.1} parent=0
    #allocation2 [shape = 'u8[8192]{0}', space=vmem, size = 0x2000, scoped, tag = 'input window, operand 0']
    #allocation3 [shape = 's32[2]{0}', space=sflag, size = 0x8, scoped, tag = 'scoped memory for tpu_custom_call.1']
    #allocation4 [shape = 's32[2]{0}', space=sflag, size = 0x8, scoped, tag = 'scoped memory for tpu_custom_call.1']
    #allocation5 [shape = 'u8[8192]{0}', space=vmem, size = 0x2000, scoped, tag = 'input window, operand 1']
    #allocation6 [shape = 's32[2]{0}', space=sflag, size = 0x8, scoped, tag = 'scoped memory for tpu_custom_call.1']
    #allocation7 [shape = 'u8[512]{0}', space=vmem, size = 0x400, scoped, tag = 'input window, operand 2, single buffered']
    #allocation8 [shape = 'u8[512]{0}', space=vmem, size = 0x400, scoped, tag = 'input window, operand 3, single buffered']
    #allocation9 [shape = 's32[1]{0}', space=sflag, size = 0x4, scoped, tag = 'scoped memory for tpu_custom_call.1']
    #allocation10 [shape = 'u8[32768]{0}', space=vmem, size = 0x8000, scoped, tag = 'input window, operand 4, single buffered']
    #allocation11 [shape = 'u8[16384]{0}', space=vmem, size = 0x4000, scoped, tag = 'input window, operand 5, single buffered']
    #allocation12 [shape = 's32[1]{0}', space=sflag, size = 0x4, scoped, tag = 'scoped memory for tpu_custom_call.1']
    #allocation13 [shape = 'u8[512]{0}', space=vmem, size = 0x400, scoped, tag = 'input window, operand 6, single buffered']
    #allocation14 [shape = 'u8[512]{0}', space=vmem, size = 0x400, scoped, tag = 'input window, operand 7, single buffered']
    #allocation15 [shape = 's32[1]{0}', space=sflag, size = 0x4, scoped, tag = 'scoped memory for tpu_custom_call.1']
    #allocation16 [shape = 'u8[512]{0}', space=vmem, size = 0x400, scoped, tag = 'input window, operand 8, single buffered']
    #allocation17 [shape = 'u8[512]{0}', space=vmem, size = 0x400, scoped, tag = 'input window, operand 9, single buffered']
    #allocation18 [shape = 's32[1]{0}', space=sflag, size = 0x4, scoped, tag = 'scoped memory for tpu_custom_call.1']
    #allocation19 [shape = 'u8[512]{0}', space=vmem, size = 0x400, scoped, tag = 'input window, operand 10, single buffered']
    #allocation20 [shape = 'u8[16384]{0}', space=vmem, size = 0x4000, scoped, tag = 'input window, operand 11, single buffered']
    #allocation21 [shape = 's32[1]{0}', space=sflag, size = 0x4, scoped, tag = 'scoped memory for tpu_custom_call.1']
    #allocation22 [shape = 'u8[16384]{0}', space=vmem, size = 0x4000, scoped, tag = 'input window, operand 12, single buffered']
    #allocation23 [shape = 'u8[16384]{0}', space=vmem, size = 0x4000, scoped, tag = 'input window, operand 13, single buffered']
    #allocation24 [shape = 's32[1]{0}', space=sflag, size = 0x4, scoped, tag = 'scoped memory for tpu_custom_call.1']
    #allocation25 [shape = 'u8[512]{0}', space=vmem, size = 0x400, scoped, tag = 'input window, operand 14, single buffered']
    #allocation26 [shape = 'u8[512]{0}', space=vmem, size = 0x400, scoped, tag = 'input window, operand 15, single buffered']
    #allocation27 [shape = 's32[1]{0}', space=sflag, size = 0x4, scoped, tag = 'scoped memory for tpu_custom_call.1']
    #allocation28 [shape = 'u8[512]{0}', space=vmem, size = 0x400, scoped, tag = 'input window, operand 16, single buffered']
    #allocation29 [shape = 'u8[32768]{0}', space=vmem, size = 0x8000, scoped, tag = 'input window, operand 17, single buffered']
    #allocation30 [shape = 's32[1]{0}', space=sflag, size = 0x4, scoped, tag = 'scoped memory for tpu_custom_call.1']
    #allocation31 [shape = 'u8[1024]{0}', space=vmem, size = 0x400, scoped, tag = 'input window, operand 18, single buffered']
    #allocation32 [shape = 'u8[65536]{0}', space=vmem, size = 0x10000, scoped, tag = 'input window, operand 19, single buffered']
    #allocation33 [shape = 's32[1]{0}', space=sflag, size = 0x4, scoped, tag = 'scoped memory for tpu_custom_call.1']
    #allocation34 [shape = 'u8[512]{0}', space=vmem, size = 0x400, scoped, tag = 'input window, operand 20, single buffered']
    #allocation35 [shape = 'u8[8192]{0}', space=vmem, size = 0x2000, scoped, tag = 'output window, operand 0']
    #allocation36 [shape = 'u8[8192]{0}', space=vmem, size = 0x2000, scoped, tag = 'output window, operand 1']
    #allocation37 [shape = 's32[2]{0}', space=sflag, size = 0x8, scoped, tag = 'scoped memory for tpu_custom_call.1']
    %28 = vsyncpa [#allocation3], 0
    %s29 = scalar_lea.sflag [#allocation3], 1
    %30 = vsyncpa %s29, 0
    %31 = vsyncpa [#allocation6], 0
    %s32 = scalar_lea.sflag [#allocation6], 1
    %33 = vsyncpa %s32, 0
    %34 = vsyncpa [#allocation9], 0
    %35 = vsyncpa [#allocation12], 0
    %36 = vsyncpa [#allocation15], 0
    %37 = vsyncpa [#allocation18], 0
    %38 = vsyncpa [#allocation21], 0
    %39 = vsyncpa [#allocation24], 0
    %40 = vsyncpa [#allocation27], 0
    %41 = vsyncpa [#allocation30], 0
    %42 = vsyncpa [#allocation33], 0
    %43 = vsyncpa [#allocation4], 0
    %s44 = scalar_lea.sflag [#allocation4], 1
    %45 = vsyncpa %s44, 0
    %46 = vsyncpa [#allocation37], 0
    %s47 = scalar_lea.sflag [#allocation37], 1
    %48 = vsyncpa %s47, 0
    loop: start=0, step=1, limit=4
    $region2: #{tpu_custom_call.1} parent=1 // loop_pre_header
      _
    $region3: #{tpu_custom_call.1} parent=1 // loop_header
      %s50 = sphi 0, %s54
      %p51 = scmp.ge.s32.totalorder %s50, 4
      %s60 = sphi 0, %s62
      %s63 = sphi 0, %s60
      %s64 = sphi 0, %s63
      %s80 = sphi 0, %s64
      %s86 = sphi 0, %s88
      %s89 = sphi 0, %s86
      %s90 = sphi 0, %s89
      %s106 = sphi 0, %s90
      %s110 = sphi 0, %s110
      %s112 = sphi 0, %s110
      %s113 = sphi 0, %s112
      %s127 = sphi 0, %s113
      %s131 = sphi 0, %s131
      %s133 = sphi 0, %s131
      %s134 = sphi 0, %s133
      %s148 = sphi 0, %s134
      %s152 = sphi 0, %s152
      %s154 = sphi 0, %s152
      %s155 = sphi 0, %s154
      %s169 = sphi 0, %s155
      %s173 = sphi 0, %s173
      %s175 = sphi 0, %s173
      %s176 = sphi 0, %s175
      %s190 = sphi 0, %s176
      %s194 = sphi 0, %s194
      %s196 = sphi 0, %s194
      %s197 = sphi 0, %s196
      %s211 = sphi 0, %s197
      %s215 = sphi 0, %s215
      %s217 = sphi 0, %s215
      %s218 = sphi 0, %s217
      %s232 = sphi 0, %s218
      %s236 = sphi 0, %s236
      %s238 = sphi 0, %s236
      %s239 = sphi 0, %s238
      %s253 = sphi 0, %s239
      %s257 = sphi 0, %s257
      %s259 = sphi 0, %s257
      %s260 = sphi 0, %s259
      %s274 = sphi 0, %s260
      %s278 = sphi 0, %s278
      %s280 = sphi 0, %s278
      %s281 = sphi 0, %s280
      %s295 = sphi 0, %s281
      %s299 = sphi 0, %s299
      %s301 = sphi 0, %s299
      %s302 = sphi 0, %s301
      %s316 = sphi 0, %s302
      %s320 = sphi 0, %s320
      %s322 = sphi 0, %s320
      %s323 = sphi 0, %s322
      %s337 = sphi 0, %s323
      %s341 = sphi 0, %s341
      %s343 = sphi 0, %s341
      %s344 = sphi 0, %s343
      %s358 = sphi 0, %s344
      %s362 = sphi 0, %s362
      %s364 = sphi 0, %s362
      %s365 = sphi 0, %s364
      %s379 = sphi 0, %s365
      %s383 = sphi 0, %s383
      %s385 = sphi 0, %s383
      %s386 = sphi 0, %s385
      %s400 = sphi 0, %s386
      %s404 = sphi 0, %s404
      %s406 = sphi 0, %s404
      %s407 = sphi 0, %s406
      %s421 = sphi 0, %s407
      %s425 = sphi 0, %s425
      %s427 = sphi 0, %s425
      %s428 = sphi 0, %s427
      %s442 = sphi 0, %s428
      %s446 = sphi 0, %s446
      %s448 = sphi 0, %s446
      %s449 = sphi 0, %s448
      %s463 = sphi 0, %s449
      %s467 = sphi 0, %s467
      %s469 = sphi 0, %s467
      %s470 = sphi 0, %s469
      %s484 = sphi 0, %s470
      %s488 = sphi 0, %s488
      %s490 = sphi 0, %s488
      %s491 = sphi 0, %s490
      %s505 = sphi 0, %s491
      %s511 = sphi 0, %s513
      %s514 = sphi 0, %s511
      %s515 = sphi 0, %s514
      %s531 = sphi 0, %s515
      %s537 = sphi 0, %s539
      %s540 = sphi 0, %s537
      %s541 = sphi 0, %s540
      %s557 = sphi 0, %s541
    $region4: #{tpu_custom_call.1} parent=1 // loop_header_branch
      %53 = sbr.rel (%p51) target = $region8
    $region5: #{tpu_custom_call.1} parent=1 // loop_body
      %s55 = ssub.s32 %s50, 1
      %s56 = ssub.s32 %s50, 2
      %s57 = sadd.s32 %s50, 1
      %s58 = ssub.s32 %s50, %s57
      %p59 = scmp.eq.s32.totalorder %s58, 0
      %s61 = sadd.s32 %s60, 1
      %s62 = scalar_select %p59, %s60, %s61
      %p65 = pneg %p59
      %p66 = scmp.eq.s32.totalorder %s50, 1
      %p67 = por %p65, %p66
      %p68 = scmp.ne.s32.totalorder %s60, %s63
      %p69 = scmp.eq.s32.totalorder %s50, 0
      %p70 = por %p68, %p69
      %p71 = scmp.ne.s32.totalorder %s60, %s63
      %p72 = scmp.eq.s32.totalorder %s55, 1
      %p73 = por %p71, %p72
      %p74 = scmp.ne.s32.totalorder %s63, %s64
      %p75 = scmp.eq.s32.totalorder %s55, 0
      %p76 = por %p74, %p75
      %p77 = scmp.ne.s32.totalorder %s63, %s64
      %p78 = scmp.eq.s32.totalorder %s56, 1
      %p79 = por %p77, %p78
      %p81 = scmp.ne.s32.totalorder %s64, %s80
      %p82 = scmp.eq.s32.totalorder %s56, 0
      %p83 = por %p81, %p82
      %s84 = ssub.s32 %s50, %s57
      %p85 = scmp.eq.s32.totalorder %s84, 0
      %s87 = sadd.s32 %s86, 1
      %s88 = scalar_select %p85, %s86, %s87
      %p91 = pneg %p85
      %p92 = scmp.eq.s32.totalorder %s50, 1
      %p93 = por %p91, %p92
      %p94 = scmp.ne.s32.totalorder %s86, %s89
      %p95 = scmp.eq.s32.totalorder %s50, 0
      %p96 = por %p94, %p95
      %p97 = scmp.ne.s32.totalorder %s86, %s89
      %p98 = scmp.eq.s32.totalorder %s55, 1
      %p99 = por %p97, %p98
      %p100 = scmp.ne.s32.totalorder %s89, %s90
      %p101 = scmp.eq.s32.totalorder %s55, 0
      %p102 = por %p100, %p101
      %p103 = scmp.ne.s32.totalorder %s89, %s90
      %p104 = scmp.eq.s32.totalorder %s56, 1
      %p105 = por %p103, %p104
      %p107 = scmp.ne.s32.totalorder %s90, %s106
      %p108 = scmp.eq.s32.totalorder %s56, 0
      %p109 = por %p107, %p108
      %s111 = sadd.s32 %s110, 1
      %p114 = scmp.eq.s32.totalorder %s50, 1
      %p115 = scmp.ne.s32.totalorder %s110, %s112
      %p116 = scmp.eq.s32.totalorder %s50, 0
      %p117 = por %p115, %p116
      %p118 = scmp.ne.s32.totalorder %s110, %s112
      %p119 = scmp.eq.s32.totalorder %s55, 1
      %p120 = por %p118, %p119
      %p121 = scmp.ne.s32.totalorder %s112, %s113
      %p122 = scmp.eq.s32.totalorder %s55, 0
      %p123 = por %p121, %p122
      %p124 = scmp.ne.s32.totalorder %s112, %s113
      %p125 = scmp.eq.s32.totalorder %s56, 1
      %p126 = por %p124, %p125
      %p128 = scmp.ne.s32.totalorder %s113, %s127
      %p129 = scmp.eq.s32.totalorder %s56, 0
      %p130 = por %p128, %p129
      %s132 = sadd.s32 %s131, 1
      %p135 = scmp.eq.s32.totalorder %s50, 1
      %p136 = scmp.ne.s32.totalorder %s131, %s133
      %p137 = scmp.eq.s32.totalorder %s50, 0
      %p138 = por %p136, %p137
      %p139 = scmp.ne.s32.totalorder %s131, %s133
      %p140 = scmp.eq.s32.totalorder %s55, 1
      %p141 = por %p139, %p140
      %p142 = scmp.ne.s32.totalorder %s133, %s134
      %p143 = scmp.eq.s32.totalorder %s55, 0
      %p144 = por %p142, %p143
      %p145 = scmp.ne.s32.totalorder %s133, %s134
      %p146 = scmp.eq.s32.totalorder %s56, 1
      %p147 = por %p145, %p146
      %p149 = scmp.ne.s32.totalorder %s134, %s148
      %p150 = scmp.eq.s32.totalorder %s56, 0
      %p151 = por %p149, %p150
      %s153 = sadd.s32 %s152, 1
      %p156 = scmp.eq.s32.totalorder %s50, 1
      %p157 = scmp.ne.s32.totalorder %s152, %s154
      %p158 = scmp.eq.s32.totalorder %s50, 0
      %p159 = por %p157, %p158
      %p160 = scmp.ne.s32.totalorder %s152, %s154
      %p161 = scmp.eq.s32.totalorder %s55, 1
      %p162 = por %p160, %p161
      %p163 = scmp.ne.s32.totalorder %s154, %s155
      %p164 = scmp.eq.s32.totalorder %s55, 0
      %p165 = por %p163, %p164
      %p166 = scmp.ne.s32.totalorder %s154, %s155
      %p167 = scmp.eq.s32.totalorder %s56, 1
      %p168 = por %p166, %p167
      %p170 = scmp.ne.s32.totalorder %s155, %s169
      %p171 = scmp.eq.s32.totalorder %s56, 0
      %p172 = por %p170, %p171
      %s174 = sadd.s32 %s173, 1
      %p177 = scmp.eq.s32.totalorder %s50, 1
      %p178 = scmp.ne.s32.totalorder %s173, %s175
      %p179 = scmp.eq.s32.totalorder %s50, 0
      %p180 = por %p178, %p179
      %p181 = scmp.ne.s32.totalorder %s173, %s175
      %p182 = scmp.eq.s32.totalorder %s55, 1
      %p183 = por %p181, %p182
      %p184 = scmp.ne.s32.totalorder %s175, %s176
      %p185 = scmp.eq.s32.totalorder %s55, 0
      %p186 = por %p184, %p185
      %p187 = scmp.ne.s32.totalorder %s175, %s176
      %p188 = scmp.eq.s32.totalorder %s56, 1
      %p189 = por %p187, %p188
      %p191 = scmp.ne.s32.totalorder %s176, %s190
      %p192 = scmp.eq.s32.totalorder %s56, 0
      %p193 = por %p191, %p192
      %s195 = sadd.s32 %s194, 1
      %p198 = scmp.eq.s32.totalorder %s50, 1
      %p199 = scmp.ne.s32.totalorder %s194, %s196
      %p200 = scmp.eq.s32.totalorder %s50, 0
      %p201 = por %p199, %p200
      %p202 = scmp.ne.s32.totalorder %s194, %s196
      %p203 = scmp.eq.s32.totalorder %s55, 1
      %p204 = por %p202, %p203
      %p205 = scmp.ne.s32.totalorder %s196, %s197
      %p206 = scmp.eq.s32.totalorder %s55, 0
      %p207 = por %p205, %p206
      %p208 = scmp.ne.s32.totalorder %s196, %s197
      %p209 = scmp.eq.s32.totalorder %s56, 1
      %p210 = por %p208, %p209
      %p212 = scmp.ne.s32.totalorder %s197, %s211
      %p213 = scmp.eq.s32.totalorder %s56, 0
      %p214 = por %p212, %p213
      %s216 = sadd.s32 %s215, 1
      %p219 = scmp.eq.s32.totalorder %s50, 1
      %p220 = scmp.ne.s32.totalorder %s215, %s217
      %p221 = scmp.eq.s32.totalorder %s50, 0
      %p222 = por %p220, %p221
      %p223 = scmp.ne.s32.totalorder %s215, %s217
      %p224 = scmp.eq.s32.totalorder %s55, 1
      %p225 = por %p223, %p224
      %p226 = scmp.ne.s32.totalorder %s217, %s218
      %p227 = scmp.eq.s32.totalorder %s55, 0
      %p228 = por %p226, %p227
      %p229 = scmp.ne.s32.totalorder %s217, %s218
      %p230 = scmp.eq.s32.totalorder %s56, 1
      %p231 = por %p229, %p230
      %p233 = scmp.ne.s32.totalorder %s218, %s232
      %p234 = scmp.eq.s32.totalorder %s56, 0
      %p235 = por %p233, %p234
      %s237 = sadd.s32 %s236, 1
      %p240 = scmp.eq.s32.totalorder %s50, 1
      %p241 = scmp.ne.s32.totalorder %s236, %s238
      %p242 = scmp.eq.s32.totalorder %s50, 0
      %p243 = por %p241, %p242
      %p244 = scmp.ne.s32.totalorder %s236, %s238
      %p245 = scmp.eq.s32.totalorder %s55, 1
      %p246 = por %p244, %p245
      %p247 = scmp.ne.s32.totalorder %s238, %s239
      %p248 = scmp.eq.s32.totalorder %s55, 0
      %p249 = por %p247, %p248
      %p250 = scmp.ne.s32.totalorder %s238, %s239
      %p251 = scmp.eq.s32.totalorder %s56, 1
      %p252 = por %p250, %p251
      %p254 = scmp.ne.s32.totalorder %s239, %s253
      %p255 = scmp.eq.s32.totalorder %s56, 0
      %p256 = por %p254, %p255
      %s258 = sadd.s32 %s257, 1
      %p261 = scmp.eq.s32.totalorder %s50, 1
      %p262 = scmp.ne.s32.totalorder %s257, %s259
      %p263 = scmp.eq.s32.totalorder %s50, 0
      %p264 = por %p262, %p263
      %p265 = scmp.ne.s32.totalorder %s257, %s259
      %p266 = scmp.eq.s32.totalorder %s55, 1
      %p267 = por %p265, %p266
      %p268 = scmp.ne.s32.totalorder %s259, %s260
      %p269 = scmp.eq.s32.totalorder %s55, 0
      %p270 = por %p268, %p269
      %p271 = scmp.ne.s32.totalorder %s259, %s260
      %p272 = scmp.eq.s32.totalorder %s56, 1
      %p273 = por %p271, %p272
      %p275 = scmp.ne.s32.totalorder %s260, %s274
      %p276 = scmp.eq.s32.totalorder %s56, 0
      %p277 = por %p275, %p276
      %s279 = sadd.s32 %s278, 1
      %p282 = scmp.eq.s32.totalorder %s50, 1
      %p283 = scmp.ne.s32.totalorder %s278, %s280
      %p284 = scmp.eq.s32.totalorder %s50, 0
      %p285 = por %p283, %p284
      %p286 = scmp.ne.s32.totalorder %s278, %s280
      %p287 = scmp.eq.s32.totalorder %s55, 1
      %p288 = por %p286, %p287
      %p289 = scmp.ne.s32.totalorder %s280, %s281
      %p290 = scmp.eq.s32.totalorder %s55, 0
      %p291 = por %p289, %p290
      %p292 = scmp.ne.s32.totalorder %s280, %s281
      %p293 = scmp.eq.s32.totalorder %s56, 1
      %p294 = por %p292, %p293
      %p296 = scmp.ne.s32.totalorder %s281, %s295
      %p297 = scmp.eq.s32.totalorder %s56, 0
      %p298 = por %p296, %p297
      %s300 = sadd.s32 %s299, 1
      %p303 = scmp.eq.s32.totalorder %s50, 1
      %p304 = scmp.ne.s32.totalorder %s299, %s301
      %p305 = scmp.eq.s32.totalorder %s50, 0
      %p306 = por %p304, %p305
      %p307 = scmp.ne.s32.totalorder %s299, %s301
      %p308 = scmp.eq.s32.totalorder %s55, 1
      %p309 = por %p307, %p308
      %p310 = scmp.ne.s32.totalorder %s301, %s302
      %p311 = scmp.eq.s32.totalorder %s55, 0
      %p312 = por %p310, %p311
      %p313 = scmp.ne.s32.totalorder %s301, %s302
      %p314 = scmp.eq.s32.totalorder %s56, 1
      %p315 = por %p313, %p314
      %p317 = scmp.ne.s32.totalorder %s302, %s316
      %p318 = scmp.eq.s32.totalorder %s56, 0
      %p319 = por %p317, %p318
      %s321 = sadd.s32 %s320, 1
      %p324 = scmp.eq.s32.totalorder %s50, 1
      %p325 = scmp.ne.s32.totalorder %s320, %s322
      %p326 = scmp.eq.s32.totalorder %s50, 0
      %p327 = por %p325, %p326
      %p328 = scmp.ne.s32.totalorder %s320, %s322
      %p329 = scmp.eq.s32.totalorder %s55, 1
      %p330 = por %p328, %p329
      %p331 = scmp.ne.s32.totalorder %s322, %s323
      %p332 = scmp.eq.s32.totalorder %s55, 0
      %p333 = por %p331, %p332
      %p334 = scmp.ne.s32.totalorder %s322, %s323
      %p335 = scmp.eq.s32.totalorder %s56, 1
      %p336 = por %p334, %p335
      %p338 = scmp.ne.s32.totalorder %s323, %s337
      %p339 = scmp.eq.s32.totalorder %s56, 0
      %p340 = por %p338, %p339
      %s342 = sadd.s32 %s341, 1
      %p345 = scmp.eq.s32.totalorder %s50, 1
      %p346 = scmp.ne.s32.totalorder %s341, %s343
      %p347 = scmp.eq.s32.totalorder %s50, 0
      %p348 = por %p346, %p347
      %p349 = scmp.ne.s32.totalorder %s341, %s343
      %p350 = scmp.eq.s32.totalorder %s55, 1
      %p351 = por %p349, %p350
      %p352 = scmp.ne.s32.totalorder %s343, %s344
      %p353 = scmp.eq.s32.totalorder %s55, 0
      %p354 = por %p352, %p353
      %p355 = scmp.ne.s32.totalorder %s343, %s344
      %p356 = scmp.eq.s32.totalorder %s56, 1
      %p357 = por %p355, %p356
      %p359 = scmp.ne.s32.totalorder %s344, %s358
      %p360 = scmp.eq.s32.totalorder %s56, 0
      %p361 = por %p359, %p360
      %s363 = sadd.s32 %s362, 1
      %p366 = scmp.eq.s32.totalorder %s50, 1
      %p367 = scmp.ne.s32.totalorder %s362, %s364
      %p368 = scmp.eq.s32.totalorder %s50, 0
      %p369 = por %p367, %p368
      %p370 = scmp.ne.s32.totalorder %s362, %s364
      %p371 = scmp.eq.s32.totalorder %s55, 1
      %p372 = por %p370, %p371
      %p373 = scmp.ne.s32.totalorder %s364, %s365
      %p374 = scmp.eq.s32.totalorder %s55, 0
      %p375 = por %p373, %p374
      %p376 = scmp.ne.s32.totalorder %s364, %s365
      %p377 = scmp.eq.s32.totalorder %s56, 1
      %p378 = por %p376, %p377
      %p380 = scmp.ne.s32.totalorder %s365, %s379
      %p381 = scmp.eq.s32.totalorder %s56, 0
      %p382 = por %p380, %p381
      %s384 = sadd.s32 %s383, 1
      %p387 = scmp.eq.s32.totalorder %s50, 1
      %p388 = scmp.ne.s32.totalorder %s383, %s385
      %p389 = scmp.eq.s32.totalorder %s50, 0
      %p390 = por %p388, %p389
      %p391 = scmp.ne.s32.totalorder %s383, %s385
      %p392 = scmp.eq.s32.totalorder %s55, 1
      %p393 = por %p391, %p392
      %p394 = scmp.ne.s32.totalorder %s385, %s386
      %p395 = scmp.eq.s32.totalorder %s55, 0
      %p396 = por %p394, %p395
      %p397 = scmp.ne.s32.totalorder %s385, %s386
      %p398 = scmp.eq.s32.totalorder %s56, 1
      %p399 = por %p397, %p398
      %p401 = scmp.ne.s32.totalorder %s386, %s400
      %p402 = scmp.eq.s32.totalorder %s56, 0
      %p403 = por %p401, %p402
      %s405 = sadd.s32 %s404, 1
      %p408 = scmp.eq.s32.totalorder %s50, 1
      %p409 = scmp.ne.s32.totalorder %s404, %s406
      %p410 = scmp.eq.s32.totalorder %s50, 0
      %p411 = por %p409, %p410
      %p412 = scmp.ne.s32.totalorder %s404, %s406
      %p413 = scmp.eq.s32.totalorder %s55, 1
      %p414 = por %p412, %p413
      %p415 = scmp.ne.s32.totalorder %s406, %s407
      %p416 = scmp.eq.s32.totalorder %s55, 0
      %p417 = por %p415, %p416
      %p418 = scmp.ne.s32.totalorder %s406, %s407
      %p419 = scmp.eq.s32.totalorder %s56, 1
      %p420 = por %p418, %p419
      %p422 = scmp.ne.s32.totalorder %s407, %s421
      %p423 = scmp.eq.s32.totalorder %s56, 0
      %p424 = por %p422, %p423
      %s426 = sadd.s32 %s425, 1
      %p429 = scmp.eq.s32.totalorder %s50, 1
      %p430 = scmp.ne.s32.totalorder %s425, %s427
      %p431 = scmp.eq.s32.totalorder %s50, 0
      %p432 = por %p430, %p431
      %p433 = scmp.ne.s32.totalorder %s425, %s427
      %p434 = scmp.eq.s32.totalorder %s55, 1
      %p435 = por %p433, %p434
      %p436 = scmp.ne.s32.totalorder %s427, %s428
      %p437 = scmp.eq.s32.totalorder %s55, 0
      %p438 = por %p436, %p437
      %p439 = scmp.ne.s32.totalorder %s427, %s428
      %p440 = scmp.eq.s32.totalorder %s56, 1
      %p441 = por %p439, %p440
      %p443 = scmp.ne.s32.totalorder %s428, %s442
      %p444 = scmp.eq.s32.totalorder %s56, 0
      %p445 = por %p443, %p444
      %s447 = sadd.s32 %s446, 1
      %p450 = scmp.eq.s32.totalorder %s50, 1
      %p451 = scmp.ne.s32.totalorder %s446, %s448
      %p452 = scmp.eq.s32.totalorder %s50, 0
      %p453 = por %p451, %p452
      %p454 = scmp.ne.s32.totalorder %s446, %s448
      %p455 = scmp.eq.s32.totalorder %s55, 1
      %p456 = por %p454, %p455
      %p457 = scmp.ne.s32.totalorder %s448, %s449
      %p458 = scmp.eq.s32.totalorder %s55, 0
      %p459 = por %p457, %p458
      %p460 = scmp.ne.s32.totalorder %s448, %s449
      %p461 = scmp.eq.s32.totalorder %s56, 1
      %p462 = por %p460, %p461
      %p464 = scmp.ne.s32.totalorder %s449, %s463
      %p465 = scmp.eq.s32.totalorder %s56, 0
      %p466 = por %p464, %p465
      %s468 = sadd.s32 %s467, 1
      %p471 = scmp.eq.s32.totalorder %s50, 1
      %p472 = scmp.ne.s32.totalorder %s467, %s469
      %p473 = scmp.eq.s32.totalorder %s50, 0
      %p474 = por %p472, %p473
      %p475 = scmp.ne.s32.totalorder %s467, %s469
      %p476 = scmp.eq.s32.totalorder %s55, 1
      %p477 = por %p475, %p476
      %p478 = scmp.ne.s32.totalorder %s469, %s470
      %p479 = scmp.eq.s32.totalorder %s55, 0
      %p480 = por %p478, %p479
      %p481 = scmp.ne.s32.totalorder %s469, %s470
      %p482 = scmp.eq.s32.totalorder %s56, 1
      %p483 = por %p481, %p482
      %p485 = scmp.ne.s32.totalorder %s470, %s484
      %p486 = scmp.eq.s32.totalorder %s56, 0
      %p487 = por %p485, %p486
      %s489 = sadd.s32 %s488, 1
      %p492 = scmp.eq.s32.totalorder %s50, 1
      %p493 = scmp.ne.s32.totalorder %s488, %s490
      %p494 = scmp.eq.s32.totalorder %s50, 0
      %p495 = por %p493, %p494
      %p496 = scmp.ne.s32.totalorder %s488, %s490
      %p497 = scmp.eq.s32.totalorder %s55, 1
      %p498 = por %p496, %p497
      %p499 = scmp.ne.s32.totalorder %s490, %s491
      %p500 = scmp.eq.s32.totalorder %s55, 0
      %p501 = por %p499, %p500
      %p502 = scmp.ne.s32.totalorder %s490, %s491
      %p503 = scmp.eq.s32.totalorder %s56, 1
      %p504 = por %p502, %p503
      %p506 = scmp.ne.s32.totalorder %s491, %s505
      %p507 = scmp.eq.s32.totalorder %s56, 0
      %p508 = por %p506, %p507
      %s509 = ssub.s32 %s50, %s57
      %p510 = scmp.eq.s32.totalorder %s509, 0
      %s512 = sadd.s32 %s511, 1
      %s513 = scalar_select %p510, %s511, %s512
      %p516 = pneg %p510
      %p517 = scmp.eq.s32.totalorder %s50, 1
      %p518 = por %p516, %p517
      %p519 = scmp.ne.s32.totalorder %s511, %s514
      %p520 = scmp.eq.s32.totalorder %s50, 0
      %p521 = por %p519, %p520
      %p522 = scmp.ne.s32.totalorder %s511, %s514
      %p523 = scmp.eq.s32.totalorder %s55, 1
      %p524 = por %p522, %p523
      %p525 = scmp.ne.s32.totalorder %s514, %s515
      %p526 = scmp.eq.s32.totalorder %s55, 0
      %p527 = por %p525, %p526
      %p528 = scmp.ne.s32.totalorder %s514, %s515
      %p529 = scmp.eq.s32.totalorder %s56, 1
      %p530 = por %p528, %p529
      %p532 = scmp.ne.s32.totalorder %s515, %s531
      %p533 = scmp.eq.s32.totalorder %s56, 0
      %p534 = por %p532, %p533
      %s535 = ssub.s32 %s50, %s57
      %p536 = scmp.eq.s32.totalorder %s535, 0
      %s538 = sadd.s32 %s537, 1
      %s539 = scalar_select %p536, %s537, %s538
      %p542 = pneg %p536
      %p543 = scmp.eq.s32.totalorder %s50, 1
      %p544 = por %p542, %p543
      %p545 = scmp.ne.s32.totalorder %s537, %s540
      %p546 = scmp.eq.s32.totalorder %s50, 0
      %p547 = por %p545, %p546
      %p548 = scmp.ne.s32.totalorder %s537, %s540
      %p549 = scmp.eq.s32.totalorder %s55, 1
      %p550 = por %p548, %p549
      %p551 = scmp.ne.s32.totalorder %s540, %s541
      %p552 = scmp.eq.s32.totalorder %s55, 0
      %p553 = por %p551, %p552
      %p554 = scmp.ne.s32.totalorder %s540, %s541
      %p555 = scmp.eq.s32.totalorder %s56, 1
      %p556 = por %p554, %p555
      %p558 = scmp.ne.s32.totalorder %s541, %s557
      %p559 = scmp.eq.s32.totalorder %s56, 0
      %p560 = por %p558, %p559
      %p561 = scmp.le.s32.totalorder 1, %s50
      %p562 = scmp.lt.s32.totalorder %s50, 3
      %p563 = pnand %p561, %p562
      %p564 = pneg %p563
      // Predicated region
      $region9: #{tpu_custom_call.1} parent=5 // pred_check
        _
      $region10: #{tpu_custom_call.1} parent=5 // pred_check_branch
        %566 = sbr.rel (%p563) target = $region12
      $region11: #{tpu_custom_call.1} parent=5 // pred_region
        %s567 = ssub.s32 %s50, 1
        // Predicated region
        $region13: #{tpu_custom_call.1} parent=11 // pred_check
          %p568 = pneg %p123
        $region14: #{tpu_custom_call.1} parent=11 // pred_check_branch
          %570 = sbr.rel (%p568) target = $region16
        $region15: #{tpu_custom_call.1} parent=11 // pred_region
          %s572 = ssub.s32 16, 16
          %573 = vsyncadd [#allocation6], %s572
          %s575 = sshll.u32 [#allocation7], 4
          %s576 = int_to_ptr.vmem [resolvable:$true] %s575
          %578 = dma.hbm_to_vmem [thread:$0]  %s2, 16, %s576, [#allocation6]
        $region16: #{tpu_custom_call.1} parent=11 // pred_fallthru
          _
        // Predicated region
        $region17: #{tpu_custom_call.1} parent=11 // pred_check
          %p579 = pneg %p144
        $region18: #{tpu_custom_call.1} parent=11 // pred_check_branch
          %581 = sbr.rel (%p579) target = $region20
        $region19: #{tpu_custom_call.1} parent=11 // pred_region
          %s583 = ssub.s32 16, 16
          %584 = vsyncadd [#allocation9], %s583
          %s586 = sshll.u32 [#allocation8], 4
          %s587 = int_to_ptr.vmem [resolvable:$true] %s586
          %589 = dma.hbm_to_vmem [thread:$0]  %s3, 16, %s587, [#allocation9]
        $region20: #{tpu_custom_call.1} parent=11 // pred_fallthru
          _
        // Predicated region
        $region21: #{tpu_custom_call.1} parent=11 // pred_check
          %p590 = pneg %p165
        $region22: #{tpu_custom_call.1} parent=11 // pred_check_branch
          %592 = sbr.rel (%p590) target = $region24
        $region23: #{tpu_custom_call.1} parent=11 // pred_region
          %s594 = ssub.s32 1024, 1024
          %595 = vsyncadd [#allocation9], %s594
          %s596 = sshll.u32 [#allocation10], 4
          %s597 = int_to_ptr.vmem [resolvable:$true] %s596
          %602 = dma.hbm_to_vmem [thread:$0]  %s4, 1024, %s597, [#allocation9], 128, 128, 8
        $region24: #{tpu_custom_call.1} parent=11 // pred_fallthru
          _
        // Predicated region
        $region25: #{tpu_custom_call.1} parent=11 // pred_check
          %p603 = pneg %p186
        $region26: #{tpu_custom_call.1} parent=11 // pred_check_branch
          %605 = sbr.rel (%p603) target = $region28
        $region27: #{tpu_custom_call.1} parent=11 // pred_region
          %s607 = ssub.s32 512, 512
          %608 = vsyncadd [#allocation12], %s607
          %s609 = sshll.u32 [#allocation11], 4
          %s610 = int_to_ptr.vmem [resolvable:$true] %s609
          %615 = dma.hbm_to_vmem [thread:$0]  %s5, 512, %s610, [#allocation12], 64, 64, 4
        $region28: #{tpu_custom_call.1} parent=11 // pred_fallthru
          _
        // Predicated region
        $region29: #{tpu_custom_call.1} parent=11 // pred_check
          %p616 = pneg %p207
        $region30: #{tpu_custom_call.1} parent=11 // pred_check_branch
          %618 = sbr.rel (%p616) target = $region32
        $region31: #{tpu_custom_call.1} parent=11 // pred_region
          %s620 = ssub.s32 16, 16
          %621 = vsyncadd [#allocation12], %s620
          %s623 = sshll.u32 [#allocation13], 4
          %s624 = int_to_ptr.vmem [resolvable:$true] %s623
          %626 = dma.hbm_to_vmem [thread:$0]  %s6, 16, %s624, [#allocation12]
        $region32: #{tpu_custom_call.1} parent=11 // pred_fallthru
          _
        // Predicated region
        $region33: #{tpu_custom_call.1} parent=11 // pred_check
          %p627 = pneg %p228
        $region34: #{tpu_custom_call.1} parent=11 // pred_check_branch
          %629 = sbr.rel (%p627) target = $region36
        $region35: #{tpu_custom_call.1} parent=11 // pred_region
          %s631 = ssub.s32 16, 16
          %632 = vsyncadd [#allocation15], %s631
          %s634 = sshll.u32 [#allocation14], 4
          %s635 = int_to_ptr.vmem [resolvable:$true] %s634
          %637 = dma.hbm_to_vmem [thread:$0]  %s7, 16, %s635, [#allocation15]
        $region36: #{tpu_custom_call.1} parent=11 // pred_fallthru
          _
        // Predicated region
        $region37: #{tpu_custom_call.1} parent=11 // pred_check
          %p638 = pneg %p249
        $region38: #{tpu_custom_call.1} parent=11 // pred_check_branch
          %640 = sbr.rel (%p638) target = $region40
        $region39: #{tpu_custom_call.1} parent=11 // pred_region
          %s642 = ssub.s32 16, 16
          %643 = vsyncadd [#allocation15], %s642
          %s645 = sshll.u32 [#allocation16], 4
          %s646 = int_to_ptr.vmem [resolvable:$true] %s645
          %648 = dma.hbm_to_vmem [thread:$0]  %s8, 16, %s646, [#allocation15]
        $region40: #{tpu_custom_call.1} parent=11 // pred_fallthru
          _
        // Predicated region
        $region41: #{tpu_custom_call.1} parent=11 // pred_check
          %p649 = pneg %p270
        $region42: #{tpu_custom_call.1} parent=11 // pred_check_branch
          %651 = sbr.rel (%p649) target = $region44
        $region43: #{tpu_custom_call.1} parent=11 // pred_region
          %s653 = ssub.s32 16, 16
          %654 = vsyncadd [#allocation18], %s653
          %s656 = sshll.u32 [#allocation17], 4
          %s657 = int_to_ptr.vmem [resolvable:$true] %s656
          %659 = dma.hbm_to_vmem [thread:$0]  %s9, 16, %s657, [#allocation18]
        $region44: #{tpu_custom_call.1} parent=11 // pred_fallthru
          _
        // Predicated region
        $region45: #{tpu_custom_call.1} parent=11 // pred_check
          %p660 = pneg %p291
        $region46: #{tpu_custom_call.1} parent=11 // pred_check_branch
          %662 = sbr.rel (%p660) target = $region48
        $region47: #{tpu_custom_call.1} parent=11 // pred_region
          %s664 = ssub.s32 16, 16
          %665 = vsyncadd [#allocation18], %s664
          %s667 = sshll.u32 [#allocation19], 4
          %s668 = int_to_ptr.vmem [resolvable:$true] %s667
          %670 = dma.hbm_to_vmem [thread:$0]  %s10, 16, %s668, [#allocation18]
        $region48: #{tpu_custom_call.1} parent=11 // pred_fallthru
          _
        // Predicated region
        $region49: #{tpu_custom_call.1} parent=11 // pred_check
          %p671 = pneg %p312
        $region50: #{tpu_custom_call.1} parent=11 // pred_check_branch
          %673 = sbr.rel (%p671) target = $region52
        $region51: #{tpu_custom_call.1} parent=11 // pred_region
          %s675 = ssub.s32 512, 512
          %676 = vsyncadd [#allocation21], %s675
          %s677 = sshll.u32 [#allocation20], 4
          %s678 = int_to_ptr.vmem [resolvable:$true] %s677
          %683 = dma.hbm_to_vmem [thread:$0]  %s11, 512, %s678, [#allocation21], 64, 64, 4
        $region52: #{tpu_custom_call.1} parent=11 // pred_fallthru
          _
        // Predicated region
        $region53: #{tpu_custom_call.1} parent=11 // pred_check
          %p684 = pneg %p333
        $region54: #{tpu_custom_call.1} parent=11 // pred_check_branch
          %686 = sbr.rel (%p684) target = $region56
        $region55: #{tpu_custom_call.1} parent=11 // pred_region
          %s688 = ssub.s32 512, 512
          %689 = vsyncadd [#allocation21], %s688
          %s690 = sshll.u32 [#allocation22], 4
          %s691 = int_to_ptr.vmem [resolvable:$true] %s690
          %696 = dma.hbm_to_vmem [thread:$0]  %s12, 512, %s691, [#allocation21], 64, 64, 4
        $region56: #{tpu_custom_call.1} parent=11 // pred_fallthru
          _
        // Predicated region
        $region57: #{tpu_custom_call.1} parent=11 // pred_check
          %p697 = pneg %p354
        $region58: #{tpu_custom_call.1} parent=11 // pred_check_branch
          %699 = sbr.rel (%p697) target = $region60
        $region59: #{tpu_custom_call.1} parent=11 // pred_region
          %s701 = ssub.s32 512, 512
          %702 = vsyncadd [#allocation24], %s701
          %s703 = sshll.u32 [#allocation23], 4
          %s704 = int_to_ptr.vmem [resolvable:$true] %s703
          %709 = dma.hbm_to_vmem [thread:$0]  %s13, 512, %s704, [#allocation24], 64, 64, 4
        $region60: #{tpu_custom_call.1} parent=11 // pred_fallthru
          _
        // Predicated region
        $region61: #{tpu_custom_call.1} parent=11 // pred_check
          %p710 = pneg %p375
        $region62: #{tpu_custom_call.1} parent=11 // pred_check_branch
          %712 = sbr.rel (%p710) target = $region64
        $region63: #{tpu_custom_call.1} parent=11 // pred_region
          %s714 = ssub.s32 16, 16
          %715 = vsyncadd [#allocation24], %s714
          %s717 = sshll.u32 [#allocation25], 4
          %s718 = int_to_ptr.vmem [resolvable:$true] %s717
          %720 = dma.hbm_to_vmem [thread:$0]  %s14, 16, %s718, [#allocation24]
        $region64: #{tpu_custom_call.1} parent=11 // pred_fallthru
          _
        // Predicated region
        $region65: #{tpu_custom_call.1} parent=11 // pred_check
          %p721 = pneg %p396
        $region66: #{tpu_custom_call.1} parent=11 // pred_check_branch
          %723 = sbr.rel (%p721) target = $region68
        $region67: #{tpu_custom_call.1} parent=11 // pred_region
          %s725 = ssub.s32 16, 16
          %726 = vsyncadd [#allocation27], %s725
          %s728 = sshll.u32 [#allocation26], 4
          %s729 = int_to_ptr.vmem [resolvable:$true] %s728
          %731 = dma.hbm_to_vmem [thread:$0]  %s15, 16, %s729, [#allocation27]
        $region68: #{tpu_custom_call.1} parent=11 // pred_fallthru
          _
        // Predicated region
        $region69: #{tpu_custom_call.1} parent=11 // pred_check
          %p732 = pneg %p417
        $region70: #{tpu_custom_call.1} parent=11 // pred_check_branch
          %734 = sbr.rel (%p732) target = $region72
        $region71: #{tpu_custom_call.1} parent=11 // pred_region
          %s736 = ssub.s32 16, 16
          %737 = vsyncadd [#allocation27], %s736
          %s739 = sshll.u32 [#allocation28], 4
          %s740 = int_to_ptr.vmem [resolvable:$true] %s739
          %742 = dma.hbm_to_vmem [thread:$0]  %s16, 16, %s740, [#allocation27]
        $region72: #{tpu_custom_call.1} parent=11 // pred_fallthru
          _
        // Predicated region
        $region73: #{tpu_custom_call.1} parent=11 // pred_check
          %p743 = pneg %p438
        $region74: #{tpu_custom_call.1} parent=11 // pred_check_branch
          %745 = sbr.rel (%p743) target = $region76
        $region75: #{tpu_custom_call.1} parent=11 // pred_region
          %s747 = ssub.s32 1024, 1024
          %748 = vsyncadd [#allocation30], %s747
          %s749 = sshll.u32 [#allocation29], 4
          %s750 = int_to_ptr.vmem [resolvable:$true] %s749
          %755 = dma.hbm_to_vmem [thread:$0]  %s17, 1024, %s750, [#allocation30], 128, 128, 8
        $region76: #{tpu_custom_call.1} parent=11 // pred_fallthru
          _
        // Predicated region
        $region77: #{tpu_custom_call.1} parent=11 // pred_check
          %p756 = pneg %p459
        $region78: #{tpu_custom_call.1} parent=11 // pred_check_branch
          %758 = sbr.rel (%p756) target = $region80
        $region79: #{tpu_custom_call.1} parent=11 // pred_region
          %s760 = ssub.s32 32, 32
          %761 = vsyncadd [#allocation30], %s760
          %s763 = sshll.u32 [#allocation31], 4
          %s764 = int_to_ptr.vmem [resolvable:$true] %s763
          %766 = dma.hbm_to_vmem [thread:$0]  %s18, 32, %s764, [#allocation30]
        $region80: #{tpu_custom_call.1} parent=11 // pred_fallthru
          _
        // Predicated region
        $region81: #{tpu_custom_call.1} parent=11 // pred_check
          %p767 = pneg %p480
        $region82: #{tpu_custom_call.1} parent=11 // pred_check_branch
          %769 = sbr.rel (%p767) target = $region84
        $region83: #{tpu_custom_call.1} parent=11 // pred_region
          %s771 = ssub.s32 2048, 2048
          %772 = vsyncadd [#allocation33], %s771
          %s773 = sshll.u32 [#allocation32], 4
          %s774 = int_to_ptr.vmem [resolvable:$true] %s773
          %779 = dma.hbm_to_vmem [thread:$0]  %s19, 2048, %s774, [#allocation33], 64, 64, 4
        $region84: #{tpu_custom_call.1} parent=11 // pred_fallthru
          _
        // Predicated region
        $region85: #{tpu_custom_call.1} parent=11 // pred_check
          %p780 = pneg %p501
        $region86: #{tpu_custom_call.1} parent=11 // pred_check_branch
          %782 = sbr.rel (%p780) target = $region88
        $region87: #{tpu_custom_call.1} parent=11 // pred_region
          %s784 = ssub.s32 16, 16
          %785 = vsyncadd [#allocation33], %s784
          %s787 = sshll.u32 [#allocation34], 4
          %s788 = int_to_ptr.vmem [resolvable:$true] %s787
          %790 = dma.hbm_to_vmem [thread:$0]  %s20, 16, %s788, [#allocation33]
        $region88: #{tpu_custom_call.1} parent=11 // pred_fallthru
          _
      $region12: #{tpu_custom_call.1} parent=5 // pred_fallthru
        _
      %p791 = scmp.lt.s32.totalorder %s50, 2
      // Predicated region
      $region89: #{tpu_custom_call.1} parent=5 // pred_check
        %p792 = pneg %p791
      $region90: #{tpu_custom_call.1} parent=5 // pred_check_branch
        %794 = sbr.rel (%p792) target = $region92
      $region91: #{tpu_custom_call.1} parent=5 // pred_region
        // Predicated region
        $region93: #{tpu_custom_call.1} parent=91 // pred_check
          %p795 = pneg %p70
        $region94: #{tpu_custom_call.1} parent=91 // pred_check_branch
          %797 = sbr.rel (%p795) target = $region96
        $region95: #{tpu_custom_call.1} parent=91 // pred_region
          %s798 = sand.u32 %s60, 1
          %s799 = scalar_lea.sflag [#allocation3], %s798
          %s800 = sand.u32 %s60, 1
          %s801 = smul.addr %s800, 8
          %s802 = scalar_lea.vmem [#allocation2], %s801
          %s804 = ssub.s32 128, 128
          %805 = vsyncadd %s799, %s804
          %s806 = smul.addr %s50, 2
          %s807 = smul.addr %s806, 64
          %s808 = scalar_lea.hbm %s0, %s807
          %s809 = sshll.u32 %s802, 4
          %s810 = int_to_ptr.vmem [resolvable:$true] %s809
          %815 = dma.hbm_to_vmem [thread:$0]  %s808, 128, %s810, %s799, 64, 64, 4
        $region96: #{tpu_custom_call.1} parent=91 // pred_fallthru
          _
        // Predicated region
        $region97: #{tpu_custom_call.1} parent=91 // pred_check
          %p816 = pneg %p96
        $region98: #{tpu_custom_call.1} parent=91 // pred_check_branch
          %818 = sbr.rel (%p816) target = $region100
        $region99: #{tpu_custom_call.1} parent=91 // pred_region
          %s819 = sand.u32 %s50, 1
          %s820 = scalar_lea.sflag [#allocation6], %s819
          %s821 = sand.u32 %s86, 1
          %s822 = smul.addr %s821, 8
          %s823 = scalar_lea.vmem [#allocation5], %s822
          %s825 = ssub.s32 128, 128
          %826 = vsyncadd %s820, %s825
          %s827 = smul.addr %s50, 2
          %s828 = smul.addr %s827, 64
          %s829 = scalar_lea.hbm %s1, %s828
          %s830 = sshll.u32 %s823, 4
          %s831 = int_to_ptr.vmem [resolvable:$true] %s830
          %836 = dma.hbm_to_vmem [thread:$0]  %s829, 128, %s831, %s820, 64, 64, 4
        $region100: #{tpu_custom_call.1} parent=91 // pred_fallthru
          _
      $region92: #{tpu_custom_call.1} parent=5 // pred_fallthru
        _
      %p837 = scmp.le.s32.totalorder 1, %s50
      %p838 = scmp.lt.s32.totalorder %s50, 3
      %p839 = pnand %p837, %p838
      %p840 = pneg %p839
      // Predicated region
      $region101: #{tpu_custom_call.1} parent=5 // pred_check
        _
      $region102: #{tpu_custom_call.1} parent=5 // pred_check_branch
        %842 = sbr.rel (%p839) target = $region104
      $region103: #{tpu_custom_call.1} parent=5 // pred_region
        %s843 = ssub.s32 %s50, 1
        %s844 = sand.u32 %s63, 1
        %s845 = scalar_lea.sflag [#allocation3], %s844
        %s846 = sand.u32 %s63, 1
        %s847 = smul.addr %s846, 8
        %s848 = scalar_lea.vmem [#allocation2], %s847
        // Predicated region
        $region105: #{tpu_custom_call.1} parent=103 // pred_check
          %p849 = pneg %p76
        $region106: #{tpu_custom_call.1} parent=103 // pred_check_branch
          %851 = sbr.rel (%p849) target = $region108
        $region107: #{tpu_custom_call.1} parent=103 // pred_region
          %852 = dma.done %s845, 128
        $region108: #{tpu_custom_call.1} parent=103 // pred_fallthru
          _
        %s853 = sand.u32 %s55, 1
        %s854 = scalar_lea.sflag [#allocation6], %s853
        %s855 = sand.u32 %s89, 1
        %s856 = smul.addr %s855, 8
        %s857 = scalar_lea.vmem [#allocation5], %s856
        // Predicated region
        $region109: #{tpu_custom_call.1} parent=103 // pred_check
          %p858 = pneg %p102
        $region110: #{tpu_custom_call.1} parent=103 // pred_check_branch
          %860 = sbr.rel (%p858) target = $region112
        $region111: #{tpu_custom_call.1} parent=103 // pred_region
          %861 = dma.done %s854, 128
        $region112: #{tpu_custom_call.1} parent=103 // pred_fallthru
          _
        // Predicated region
        $region113: #{tpu_custom_call.1} parent=103 // pred_check
          %p862 = pneg %p123
        $region114: #{tpu_custom_call.1} parent=103 // pred_check_branch
          %864 = sbr.rel (%p862) target = $region116
        $region115: #{tpu_custom_call.1} parent=103 // pred_region
          %865 = dma.done [#allocation6], 16
        $region116: #{tpu_custom_call.1} parent=103 // pred_fallthru
          _
        // Predicated region
        $region117: #{tpu_custom_call.1} parent=103 // pred_check
          %p866 = pneg %p144
        $region118: #{tpu_custom_call.1} parent=103 // pred_check_branch
          %868 = sbr.rel (%p866) target = $region120
        $region119: #{tpu_custom_call.1} parent=103 // pred_region
          %869 = dma.done [#allocation9], 16
        $region120: #{tpu_custom_call.1} parent=103 // pred_fallthru
          _
        // Predicated region
        $region121: #{tpu_custom_call.1} parent=103 // pred_check
          %p870 = pneg %p165
        $region122: #{tpu_custom_call.1} parent=103 // pred_check_branch
          %872 = sbr.rel (%p870) target = $region124
        $region123: #{tpu_custom_call.1} parent=103 // pred_region
          %873 = dma.done [#allocation9], 1024
        $region124: #{tpu_custom_call.1} parent=103 // pred_fallthru
          _
        // Predicated region
        $region125: #{tpu_custom_call.1} parent=103 // pred_check
          %p874 = pneg %p186
        $region126: #{tpu_custom_call.1} parent=103 // pred_check_branch
          %876 = sbr.rel (%p874) target = $region128
        $region127: #{tpu_custom_call.1} parent=103 // pred_region
          %877 = dma.done [#allocation12], 512
        $region128: #{tpu_custom_call.1} parent=103 // pred_fallthru
          _
        // Predicated region
        $region129: #{tpu_custom_call.1} parent=103 // pred_check
          %p878 = pneg %p207
        $region130: #{tpu_custom_call.1} parent=103 // pred_check_branch
          %880 = sbr.rel (%p878) target = $region132
        $region131: #{tpu_custom_call.1} parent=103 // pred_region
          %881 = dma.done [#allocation12], 16
        $region132: #{tpu_custom_call.1} parent=103 // pred_fallthru
          _
        // Predicated region
        $region133: #{tpu_custom_call.1} parent=103 // pred_check
          %p882 = pneg %p228
        $region134: #{tpu_custom_call.1} parent=103 // pred_check_branch
          %884 = sbr.rel (%p882) target = $region136
        $region135: #{tpu_custom_call.1} parent=103 // pred_region
          %885 = dma.done [#allocation15], 16
        $region136: #{tpu_custom_call.1} parent=103 // pred_fallthru
          _
        // Predicated region
        $region137: #{tpu_custom_call.1} parent=103 // pred_check
          %p886 = pneg %p249
        $region138: #{tpu_custom_call.1} parent=103 // pred_check_branch
          %888 = sbr.rel (%p886) target = $region140
        $region139: #{tpu_custom_call.1} parent=103 // pred_region
          %889 = dma.done [#allocation15], 16
        $region140: #{tpu_custom_call.1} parent=103 // pred_fallthru
          _
        // Predicated region
        $region141: #{tpu_custom_call.1} parent=103 // pred_check
          %p890 = pneg %p270
        $region142: #{tpu_custom_call.1} parent=103 // pred_check_branch
          %892 = sbr.rel (%p890) target = $region144
        $region143: #{tpu_custom_call.1} parent=103 // pred_region
          %893 = dma.done [#allocation18], 16
        $region144: #{tpu_custom_call.1} parent=103 // pred_fallthru
          _
        // Predicated region
        $region145: #{tpu_custom_call.1} parent=103 // pred_check
          %p894 = pneg %p291
        $region146: #{tpu_custom_call.1} parent=103 // pred_check_branch
          %896 = sbr.rel (%p894) target = $region148
        $region147: #{tpu_custom_call.1} parent=103 // pred_region
          %897 = dma.done [#allocation18], 16
        $region148: #{tpu_custom_call.1} parent=103 // pred_fallthru
          _
        // Predicated region
        $region149: #{tpu_custom_call.1} parent=103 // pred_check
          %p898 = pneg %p312
        $region150: #{tpu_custom_call.1} parent=103 // pred_check_branch
          %900 = sbr.rel (%p898) target = $region152
        $region151: #{tpu_custom_call.1} parent=103 // pred_region
          %901 = dma.done [#allocation21], 512
        $region152: #{tpu_custom_call.1} parent=103 // pred_fallthru
          _
        // Predicated region
        $region153: #{tpu_custom_call.1} parent=103 // pred_check
          %p902 = pneg %p333
        $region154: #{tpu_custom_call.1} parent=103 // pred_check_branch
          %904 = sbr.rel (%p902) target = $region156
        $region155: #{tpu_custom_call.1} parent=103 // pred_region
          %905 = dma.done [#allocation21], 512
        $region156: #{tpu_custom_call.1} parent=103 // pred_fallthru
          _
        // Predicated region
        $region157: #{tpu_custom_call.1} parent=103 // pred_check
          %p906 = pneg %p354
        $region158: #{tpu_custom_call.1} parent=103 // pred_check_branch
          %908 = sbr.rel (%p906) target = $region160
        $region159: #{tpu_custom_call.1} parent=103 // pred_region
          %909 = dma.done [#allocation24], 512
        $region160: #{tpu_custom_call.1} parent=103 // pred_fallthru
          _
        // Predicated region
        $region161: #{tpu_custom_call.1} parent=103 // pred_check
          %p910 = pneg %p375
        $region162: #{tpu_custom_call.1} parent=103 // pred_check_branch
          %912 = sbr.rel (%p910) target = $region164
        $region163: #{tpu_custom_call.1} parent=103 // pred_region
          %913 = dma.done [#allocation24], 16
        $region164: #{tpu_custom_call.1} parent=103 // pred_fallthru
          _
        // Predicated region
        $region165: #{tpu_custom_call.1} parent=103 // pred_check
          %p914 = pneg %p396
        $region166: #{tpu_custom_call.1} parent=103 // pred_check_branch
          %916 = sbr.rel (%p914) target = $region168
        $region167: #{tpu_custom_call.1} parent=103 // pred_region
          %917 = dma.done [#allocation27], 16
        $region168: #{tpu_custom_call.1} parent=103 // pred_fallthru
          _
        // Predicated region
        $region169: #{tpu_custom_call.1} parent=103 // pred_check
          %p918 = pneg %p417
        $region170: #{tpu_custom_call.1} parent=103 // pred_check_branch
          %920 = sbr.rel (%p918) target = $region172
        $region171: #{tpu_custom_call.1} parent=103 // pred_region
          %921 = dma.done [#allocation27], 16
        $region172: #{tpu_custom_call.1} parent=103 // pred_fallthru
          _
        // Predicated region
        $region173: #{tpu_custom_call.1} parent=103 // pred_check
          %p922 = pneg %p438
        $region174: #{tpu_custom_call.1} parent=103 // pred_check_branch
          %924 = sbr.rel (%p922) target = $region176
        $region175: #{tpu_custom_call.1} parent=103 // pred_region
          %925 = dma.done [#allocation30], 1024
        $region176: #{tpu_custom_call.1} parent=103 // pred_fallthru
          _
        // Predicated region
        $region177: #{tpu_custom_call.1} parent=103 // pred_check
          %p926 = pneg %p459
        $region178: #{tpu_custom_call.1} parent=103 // pred_check_branch
          %928 = sbr.rel (%p926) target = $region180
        $region179: #{tpu_custom_call.1} parent=103 // pred_region
          %929 = dma.done [#allocation30], 32
        $region180: #{tpu_custom_call.1} parent=103 // pred_fallthru
          _
        // Predicated region
        $region181: #{tpu_custom_call.1} parent=103 // pred_check
          %p930 = pneg %p480
        $region182: #{tpu_custom_call.1} parent=103 // pred_check_branch
          %932 = sbr.rel (%p930) target = $region184
        $region183: #{tpu_custom_call.1} parent=103 // pred_region
          %933 = dma.done [#allocation33], 2048
        $region184: #{tpu_custom_call.1} parent=103 // pred_fallthru
          _
        // Predicated region
        $region185: #{tpu_custom_call.1} parent=103 // pred_check
          %p934 = pneg %p501
        $region186: #{tpu_custom_call.1} parent=103 // pred_check_branch
          %936 = sbr.rel (%p934) target = $region188
        $region187: #{tpu_custom_call.1} parent=103 // pred_region
          %937 = dma.done [#allocation33], 16
        $region188: #{tpu_custom_call.1} parent=103 // pred_fallthru
          _
        %s938 = sand.u32 %s63, 1
        %s939 = scalar_lea.sflag [#allocation3], %s938
        %s940 = sand.u32 %s63, 1
        %s941 = smul.addr %s940, 8
        %s942 = scalar_lea.vmem [#allocation2], %s941
        %p943 = pneg %p76
        %p944 = pneg %p73
        %s945 = sand.u32 %s55, 1
        %s946 = scalar_lea.sflag [#allocation6], %s945
        %s947 = sand.u32 %s89, 1
        %s948 = smul.addr %s947, 8
        %s949 = scalar_lea.vmem [#allocation5], %s948
        %p950 = pneg %p102
        %p951 = pneg %p99
        %p952 = pneg %p123
        %p953 = pneg %p120
        %p954 = pneg %p144
        %p955 = pneg %p141
        %p956 = pneg %p165
        %p957 = pneg %p162
        %p958 = pneg %p186
        %p959 = pneg %p183
        %p960 = pneg %p207
        %p961 = pneg %p204
        %p962 = pneg %p228
        %p963 = pneg %p225
        %p964 = pneg %p249
        %p965 = pneg %p246
        %p966 = pneg %p270
        %p967 = pneg %p267
        %p968 = pneg %p291
        %p969 = pneg %p288
        %p970 = pneg %p312
        %p971 = pneg %p309
        %p972 = pneg %p333
        %p973 = pneg %p330
        %p974 = pneg %p354
        %p975 = pneg %p351
        %p976 = pneg %p375
        %p977 = pneg %p372
        %p978 = pneg %p396
        %p979 = pneg %p393
        %p980 = pneg %p417
        %p981 = pneg %p414
        %p982 = pneg %p438
        %p983 = pneg %p435
        %p984 = pneg %p459
        %p985 = pneg %p456
        %p986 = pneg %p480
        %p987 = pneg %p477
        %p988 = pneg %p501
        %p989 = pneg %p498
        %p990 = pneg %p527
        %p991 = pneg %p524
        %s992 = sand.u32 %s514, 1
        %s993 = scalar_lea.sflag [#allocation4], %s992
        %s994 = sand.u32 %s514, 1
        %s995 = smul.addr %s994, 8
        %s996 = scalar_lea.vmem [#allocation35], %s995
        %p997 = pneg %p553
        %p998 = pneg %p550
        %s999 = sand.u32 %s540, 1
        %s1000 = scalar_lea.sflag [#allocation37], %s999
        %s1001 = sand.u32 %s540, 1
        %s1002 = smul.addr %s1001, 8
        %s1003 = scalar_lea.vmem [#allocation36], %s1002
        %v1005 = vld [vmem:[%s848] sm:$0xf]
        %v1006 = vld [vmem:[%s848 + $0x4] sm:$0xf]
        %v1007 = vunpack.c.l.bf16 %v1005
        %v1008 = vunpack.c.l.bf16 %v1006
        %v1009 = vld [vmem:[#allocation7] sm:$0x1]
        %v1010 = vld [vmem:[#allocation8] sm:$0x1]
        %vm1011 = vcmask 523264
        %v1012 = vsel %vm1011, %v1007, 0.0
        %1013 = vadd.xlane.f32.xlu0 %v1012
        %v1014 = vpop.xlane.xlu0 %1013
        %v1015 = vsel %vm1011, %v1008, 0.0
        %1016 = vadd.xlane.f32.xlu0 %v1015
        %v1017 = vpop.xlane.xlu0 %1016
        %v1018 = vrcp.pop 64.0
        %v1019 = vmul.f32 %v1014, %v1018
        %v1020 = vmul.f32 %v1017, %v1018
        %v1021 = vsub.f32 %v1007, %v1019
        %v1022 = vsub.f32 %v1008, %v1020
        %v1023 = vmul.f32 %v1021, %v1021
        %v1024 = vmul.f32 %v1022, %v1022
        %v1025 = vsel %vm1011, %v1023, 0.0
        %1026 = vadd.xlane.f32.xlu0 %v1025
        %v1027 = vpop.xlane.xlu0 %1026
        %v1028 = vsel %vm1011, %v1024, 0.0
        %1029 = vadd.xlane.f32.xlu0 %v1028
        %v1030 = vpop.xlane.xlu0 %1029
        %v1031 = vmul.f32 %v1027, %v1018
        %v1032 = vmul.f32 %v1030, %v1018
        %v1033 = vadd.f32 %v1031, 1e-05
        %v1034 = vadd.f32 %v1032, 1e-05
        %v1035 = vrsqrt.pop %v1033
        %v1036 = vrsqrt.pop %v1034
        %v1037 = vmul.f32 %v1021, %v1035
        %v1038 = vmul.f32 %v1022, %v1036
        %v1040 = vlaneseq
        %v1041 = vshrl.u32 %v1040, 7
        %v1042 = vsub.s32 0, %v1041
        %v1043 = vrot.slane %v1009, %v1042
        %v1045 = vmul.f32 %v1037, %v1043
        %v1046 = vmul.f32 %v1038, %v1043
        %v1048 = vlaneseq
        %v1049 = vshrl.u32 %v1048, 7
        %v1050 = vsub.s32 0, %v1049
        %v1051 = vrot.slane %v1010, %v1050
        %v1053 = vadd.f32 %v1045, %v1051
        %v1054 = vadd.f32 %v1046, %v1051
        %v1055 = vpack.c.bf16 %v1054, %v1053
        %v1056 = vld [vmem:[#allocation10] sm:$0xff]
        %v1057 = vld [vmem:[#allocation10 + $0x8] sm:$0xff]
        %v1058 = vld [vmem:[#allocation10 + $0x10] sm:$0xff]
        %v1059 = vld [vmem:[#allocation10 + $0x18] sm:$0xff]
        %v1060 = vld [vmem:[#allocation10 + $0x20] sm:$0xff]
        %v1061 = vld [vmem:[#allocation10 + $0x28] sm:$0xff]
        %v1062 = vld [vmem:[#allocation10 + $0x30] sm:$0xff]
        %v1063 = vld [vmem:[#allocation10 + $0x38] sm:$0xff]
        %v1072 = vunpack.c.l.b16 %v1056
        %v1073 = vunpack.c.h.b16 %v1056
        %v1074 = vunpack.c.l.b16 %v1057
        %v1075 = vunpack.c.h.b16 %v1057
        %v1076 = vunpack.c.l.b16 %v1058
        %v1077 = vunpack.c.h.b16 %v1058
        %v1078 = vunpack.c.l.b16 %v1059
        %v1079 = vunpack.c.h.b16 %v1059
        %v1080 = vunpack.c.l.b16 %v1060
        %v1081 = vunpack.c.h.b16 %v1060
        %v1082 = vunpack.c.l.b16 %v1061
        %v1083 = vunpack.c.h.b16 %v1061
        %v1084 = vunpack.c.l.b16 %v1062
        %v1085 = vunpack.c.h.b16 %v1062
        %v1086 = vunpack.c.l.b16 %v1063
        %v1087 = vunpack.c.h.b16 %v1063
        %v1088 = vpack.c.b16 %v1074, %v1072
        %v1089 = vpack.c.b16 %v1075, %v1073
        %v1090 = vpack.c.b16 %v1078, %v1076
        %v1091 = vpack.c.b16 %v1079, %v1077
        %v1092 = vpack.c.b16 %v1082, %v1080
        %v1093 = vpack.c.b16 %v1083, %v1081
        %v1094 = vpack.c.b16 %v1086, %v1084
        %v1095 = vpack.c.b16 %v1087, %v1085
        %v1105 = vsel %vm1011, %v1055, 0
        %1107 = vmatprep.subr.bf16.mxu0 %v1089
        %1108 = vmatpush1.bf16.msra.mxu0 %v1088
        %1109 = vmatprep.subr.bf16.mxu0 %v1091
        %1110 = vmatpush1.bf16.msra.mxu0 %v1090
        %1111 = vmatprep.subr.bf16.mxu0 %v1093
        %1112 = vmatpush1.bf16.msra.mxu0 %v1092
        %1113 = vmatprep.subr.bf16.mxu0 %v1095
        %1114 = vmatpush1.bf16.msra.mxu0 %v1094
        %1115 = vmatprep.subr.bf16.mxu0 0
        %1116 = vmatpush1.bf16.msra.mxu0 0
        %1117 = vmatprep.subr.bf16.mxu0 0
        %1118 = vmatpush1.bf16.msra.mxu0 0
        %1119 = vmatprep.subr.bf16.mxu0 0
        %1120 = vmatpush1.bf16.msra.mxu0 0
        %1121 = vmatprep.subr.bf16.mxu0 0
        %1122 = vmatpush1.bf16.msra.mxu0 0
        %1123 = vmatprep.subr.bf16.mxu0 0
        %1124 = vmatpush1.bf16.msra.mxu0 0
        %1125 = vmatprep.subr.bf16.mxu0 0
        %1126 = vmatpush1.bf16.msra.mxu0 0
        %1127 = vmatprep.subr.bf16.mxu0 0
        %1128 = vmatpush1.bf16.msra.mxu0 0
        %1129 = vmatprep.subr.bf16.mxu0 0
        %1130 = vmatpush1.bf16.msra.mxu0 0
        %1131 = vmatprep.subr.bf16.mxu0 0
        %1132 = vmatpush1.bf16.msra.mxu0 0
        %1133 = vmatprep.subr.bf16.mxu0 0
        %1134 = vmatpush1.bf16.msra.mxu0 0
        %1135 = vmatprep.subr.bf16.mxu0 0
        %1136 = vmatpush1.bf16.msra.mxu0 0
        %1137 = vmatprep.subr.bf16.mxu0 0
        %1138 = vmatpush1.bf16.msra.mxu0 0
        %1139 = vmatprep.mubr.bf16.mxu0 0
        %1140 = vmatmul.mubr.bf16.gmra.mrb[0].mxu0 %v1105
        %v1141 = vpop.f32.mrb[0].mxu0
        %v1142 = vadd.f32 0.0, %v1141
        %v1143 = vpop.f32.mrb[0].mxu0
        %v1144 = vadd.f32 0.0, %v1143
        %v1145 = vpop.f32.mrb[0].mxu0
        %v1146 = vadd.f32 0.0, %v1145
        %v1147 = vpop.f32.mrb[0].mxu0
        %v1148 = vadd.f32 0.0, %v1147
        %1149 = vdwg.mxu0
        %v1150 = vpack.c.bf16 %v1146, %v1142
        %v1151 = vpack.c.bf16 %v1148, %v1144
        %1153 = vrot.lane.b32.xlu0 %v1150, 64
        %v1154 = vpop.permute.xlu0 %1153
        %vm1155 = vcmask 130048
        %v1157 = vsel %vm1155, %v1150, 0
        %v1160 = vsel %vm1155, %v1154, 0
        %1162 = vmatprep.subr.bf16.mxu0 0
        %1163 = vmatpush1.bf16.xpose.msra.mxu0 %v1160
        %1164 = vmatprep.subr.bf16.mxu0 0
        %1165 = vmatpush1.bf16.xpose.msra.mxu0 0
        %1166 = vmatprep.subr.bf16.mxu0 0
        %1167 = vmatpush1.bf16.xpose.msra.mxu0 0
        %1168 = vmatprep.subr.bf16.mxu0 0
        %1169 = vmatpush1.bf16.xpose.msra.mxu0 0
        %1170 = vmatprep.subr.bf16.mxu0 0
        %1171 = vmatpush1.bf16.xpose.msra.mxu0 0
        %1172 = vmatprep.subr.bf16.mxu0 0
        %1173 = vmatpush1.bf16.xpose.msra.mxu0 0
        %1174 = vmatprep.subr.bf16.mxu0 0
        %1175 = vmatpush1.bf16.xpose.msra.mxu0 0
        %1176 = vmatprep.subr.bf16.mxu0 0
        %1177 = vmatpush1.bf16.xpose.msra.mxu0 0
        %1178 = vmatprep.subr.bf16.mxu0 0
        %1179 = vmatpush1.bf16.xpose.msra.mxu0 0
        %1180 = vmatprep.subr.bf16.mxu0 0
        %1181 = vmatpush1.bf16.xpose.msra.mxu0 0
        %1182 = vmatprep.subr.bf16.mxu0 0
        %1183 = vmatpush1.bf16.xpose.msra.mxu0 0
        %1184 = vmatprep.subr.bf16.mxu0 0
        %1185 = vmatpush1.bf16.xpose.msra.mxu0 0
        %1186 = vmatprep.subr.bf16.mxu0 0
        %1187 = vmatpush1.bf16.xpose.msra.mxu0 0
        %1188 = vmatprep.subr.bf16.mxu0 0
        %1189 = vmatpush1.bf16.xpose.msra.mxu0 0
        %1190 = vmatprep.subr.bf16.mxu0 0
        %1191 = vmatpush1.bf16.xpose.msra.mxu0 0
        %1192 = vmatprep.subr.bf16.mxu0 0
        %1193 = vmatpush1.bf16.xpose.msra.mxu0 0
        %1194 = vmatprep.mubr.bf16.mxu0 0
        %1195 = vmatmul.mubr.bf16.gmra.mrb[0].mxu0 %v1157
        %v1196 = vpop.f32.mrb[0].mxu0
        %v1197 = vadd.f32 0.0, %v1196
        %v1198 = vpop.f32.mrb[0].mxu0
        %v1199 = vpop.f32.mrb[0].mxu0
        %v1200 = vadd.f32 0.0, %v1199
        %v1201 = vpop.f32.mrb[0].mxu0
        %1202 = vdwg.mxu0
        %v1203 = vsel %vm1155, %v1197, -inf
        %1204 = vmax.xlane.f32.xlu0 %v1203
        %v1205 = vpop.xlane.xlu0 %1204
        %v1206 = vsel %vm1155, %v1200, -inf
        %1207 = vmax.xlane.f32.xlu0 %v1206
        %v1208 = vpop.xlane.xlu0 %1207
        %v1209 = vsub.f32 %v1197, %v1205
        %v1210 = vsub.f32 %v1200, %v1208
        %v1211 = vmul.f32 %v1209, 1.442695
        %v1212 = vpow.pop %v1211
        %v1213 = vmul.f32 %v1210, 1.442695
        %v1214 = vpow.pop %v1213
        %v1215 = vsel %vm1155, %v1212, 0.0
        %1216 = vadd.xlane.f32.xlu0 %v1215
        %v1217 = vpop.xlane.xlu0 %1216
        %v1218 = vsel %vm1155, %v1214, 0.0
        %1219 = vadd.xlane.f32.xlu0 %v1218
        %v1220 = vpop.xlane.xlu0 %1219
        %v1221 = vpack.c.bf16 %v1214, %v1212
        %v1223 = vsel %vm1155, %v1221, 0
        %1225 = vmatprep.subr.bf16.mxu0 0
        %1226 = vmatpush1.bf16.msra.mxu0 %v1151
        %1227 = vmatprep.subr.bf16.mxu0 0
        %1228 = vmatpush1.bf16.msra.mxu0 0
        %1229 = vmatprep.subr.bf16.mxu0 0
        %1230 = vmatpush1.bf16.msra.mxu0 0
        %1231 = vmatprep.subr.bf16.mxu0 0
        %1232 = vmatpush1.bf16.msra.mxu0 0
        %1233 = vmatprep.subr.bf16.mxu0 0
        %1234 = vmatpush1.bf16.msra.mxu0 0
        %1235 = vmatprep.subr.bf16.mxu0 0
        %1236 = vmatpush1.bf16.msra.mxu0 0
        %1237 = vmatprep.subr.bf16.mxu0 0
        %1238 = vmatpush1.bf16.msra.mxu0 0
        %1239 = vmatprep.subr.bf16.mxu0 0
        %1240 = vmatpush1.bf16.msra.mxu0 0
        %1241 = vmatprep.subr.bf16.mxu0 0
        %1242 = vmatpush1.bf16.msra.mxu0 0
        %1243 = vmatprep.subr.bf16.mxu0 0
        %1244 = vmatpush1.bf16.msra.mxu0 0
        %1245 = vmatprep.subr.bf16.mxu0 0
        %1246 = vmatpush1.bf16.msra.mxu0 0
        %1247 = vmatprep.subr.bf16.mxu0 0
        %1248 = vmatpush1.bf16.msra.mxu0 0
        %1249 = vmatprep.subr.bf16.mxu0 0
        %1250 = vmatpush1.bf16.msra.mxu0 0
        %1251 = vmatprep.subr.bf16.mxu0 0
        %1252 = vmatpush1.bf16.msra.mxu0 0
        %1253 = vmatprep.subr.bf16.mxu0 0
        %1254 = vmatpush1.bf16.msra.mxu0 0
        %1255 = vmatprep.subr.bf16.mxu0 0
        %1256 = vmatpush1.bf16.msra.mxu0 0
        %1257 = vmatprep.mubr.bf16.mxu0 0
        %1258 = vmatmul.mubr.bf16.gmra.mrb[0].mxu0 %v1223
        %v1259 = vpop.f32.mrb[0].mxu0
        %v1260 = vadd.f32 0.0, %v1259
        %v1261 = vpop.f32.mrb[0].mxu0
        %v1262 = vpop.f32.mrb[0].mxu0
        %v1263 = vadd.f32 0.0, %v1262
        %v1264 = vpop.f32.mrb[0].mxu0
        %1265 = vdwg.mxu0
        %v1266 = vrcp.pop %v1217
        %v1267 = vrcp.pop %v1220
        %v1268 = vmul.f32 %v1260, %v1266
        %v1269 = vmul.f32 %v1263, %v1267
        %1270 = vrot.lane.b32.xlu0 %v1150, 112
        %v1271 = vpop.permute.xlu0 %1270
        %1272 = vrot.lane.b32.xlu0 %v1150, 48
        %v1273 = vpop.permute.xlu0 %1272
        %v1275 = vsel %vm1155, %v1271, 0
        %v1278 = vsel %vm1155, %v1273, 0
        %1280 = vmatprep.subr.bf16.mxu0 0
        %1281 = vmatpush1.bf16.xpose.msra.mxu0 %v1278
        %1282 = vmatprep.subr.bf16.mxu0 0
        %1283 = vmatpush1.bf16.xpose.msra.mxu0 0
        %1284 = vmatprep.subr.bf16.mxu0 0
        %1285 = vmatpush1.bf16.xpose.msra.mxu0 0
        %1286 = vmatprep.subr.bf16.mxu0 0
        %1287 = vmatpush1.bf16.xpose.msra.mxu0 0
        %1288 = vmatprep.subr.bf16.mxu0 0
        %1289 = vmatpush1.bf16.xpose.msra.mxu0 0
        %1290 = vmatprep.subr.bf16.mxu0 0
        %1291 = vmatpush1.bf16.xpose.msra.mxu0 0
        %1292 = vmatprep.subr.bf16.mxu0 0
        %1293 = vmatpush1.bf16.xpose.msra.mxu0 0
        %1294 = vmatprep.subr.bf16.mxu0 0
        %1295 = vmatpush1.bf16.xpose.msra.mxu0 0
        %1296 = vmatprep.subr.bf16.mxu0 0
        %1297 = vmatpush1.bf16.xpose.msra.mxu0 0
        %1298 = vmatprep.subr.bf16.mxu0 0
        %1299 = vmatpush1.bf16.xpose.msra.mxu0 0
        %1300 = vmatprep.subr.bf16.mxu0 0
        %1301 = vmatpush1.bf16.xpose.msra.mxu0 0
        %1302 = vmatprep.subr.bf16.mxu0 0
        %1303 = vmatpush1.bf16.xpose.msra.mxu0 0
        %1304 = vmatprep.subr.bf16.mxu0 0
        %1305 = vmatpush1.bf16.xpose.msra.mxu0 0
        %1306 = vmatprep.subr.bf16.mxu0 0
        %1307 = vmatpush1.bf16.xpose.msra.mxu0 0
        %1308 = vmatprep.subr.bf16.mxu0 0
        %1309 = vmatpush1.bf16.xpose.msra.mxu0 0
        %1310 = vmatprep.subr.bf16.mxu0 0
        %1311 = vmatpush1.bf16.xpose.msra.mxu0 0
        %1312 = vmatprep.mubr.bf16.mxu0 0
        %1313 = vmatmul.mubr.bf16.gmra.mrb[0].mxu0 %v1275
        %v1314 = vpop.f32.mrb[0].mxu0
        %v1315 = vadd.f32 0.0, %v1314
        %v1316 = vpop.f32.mrb[0].mxu0
        %v1317 = vpop.f32.mrb[0].mxu0
        %v1318 = vadd.f32 0.0, %v1317
        %v1319 = vpop.f32.mrb[0].mxu0
        %1320 = vdwg.mxu0
        %v1321 = vsel %vm1155, %v1315, -inf
        %1322 = vmax.xlane.f32.xlu0 %v1321
        %v1323 = vpop.xlane.xlu0 %1322
        %v1324 = vsel %vm1155, %v1318, -inf
        %1325 = vmax.xlane.f32.xlu0 %v1324
        %v1326 = vpop.xlane.xlu0 %1325
        %v1327 = vsub.f32 %v1315, %v1323
        %v1328 = vsub.f32 %v1318, %v1326
        %v1329 = vmul.f32 %v1327, 1.442695
        %v1330 = vpow.pop %v1329
        %v1331 = vmul.f32 %v1328, 1.442695
        %v1332 = vpow.pop %v1331
        %v1333 = vsel %vm1155, %v1330, 0.0
        %1334 = vadd.xlane.f32.xlu0 %v1333
        %v1335 = vpop.xlane.xlu0 %1334
        %v1336 = vsel %vm1155, %v1332, 0.0
        %1337 = vadd.xlane.f32.xlu0 %v1336
        %v1338 = vpop.xlane.xlu0 %1337
        %v1339 = vpack.c.bf16 %v1332, %v1330
        %1341 = vrot.lane.b32.xlu0 %v1151, 112
        %v1342 = vpop.permute.xlu0 %1341
        %v1345 = vsel %vm1155, %v1339, 0
        %1347 = vmatprep.subr.bf16.mxu0 0
        %1348 = vmatpush1.bf16.msra.mxu0 %v1342
        %1349 = vmatprep.subr.bf16.mxu0 0
        %1350 = vmatpush1.bf16.msra.mxu0 0
        %1351 = vmatprep.subr.bf16.mxu0 0
        %1352 = vmatpush1.bf16.msra.mxu0 0
        %1353 = vmatprep.subr.bf16.mxu0 0
        %1354 = vmatpush1.bf16.msra.mxu0 0
        %1355 = vmatprep.subr.bf16.mxu0 0
        %1356 = vmatpush1.bf16.msra.mxu0 0
        %1357 = vmatprep.subr.bf16.mxu0 0
        %1358 = vmatpush1.bf16.msra.mxu0 0
        %1359 = vmatprep.subr.bf16.mxu0 0
        %1360 = vmatpush1.bf16.msra.mxu0 0
        %1361 = vmatprep.subr.bf16.mxu0 0
        %1362 = vmatpush1.bf16.msra.mxu0 0
        %1363 = vmatprep.subr.bf16.mxu0 0
        %1364 = vmatpush1.bf16.msra.mxu0 0
        %1365 = vmatprep.subr.bf16.mxu0 0
        %1366 = vmatpush1.bf16.msra.mxu0 0
        %1367 = vmatprep.subr.bf16.mxu0 0
        %1368 = vmatpush1.bf16.msra.mxu0 0
        %1369 = vmatprep.subr.bf16.mxu0 0
        %1370 = vmatpush1.bf16.msra.mxu0 0
        %1371 = vmatprep.subr.bf16.mxu0 0
        %1372 = vmatpush1.bf16.msra.mxu0 0
        %1373 = vmatprep.subr.bf16.mxu0 0
        %1374 = vmatpush1.bf16.msra.mxu0 0
        %1375 = vmatprep.subr.bf16.mxu0 0
        %1376 = vmatpush1.bf16.msra.mxu0 0
        %1377 = vmatprep.subr.bf16.mxu0 0
        %1378 = vmatpush1.bf16.msra.mxu0 0
        %1379 = vmatprep.mubr.bf16.mxu0 0
        %1380 = vmatmul.mubr.bf16.gmra.mrb[0].mxu0 %v1345
        %v1381 = vpop.f32.mrb[0].mxu0
        %v1382 = vadd.f32 0.0, %v1381
        %v1383 = vpop.f32.mrb[0].mxu0
        %v1384 = vpop.f32.mrb[0].mxu0
        %v1385 = vadd.f32 0.0, %v1384
        %v1386 = vpop.f32.mrb[0].mxu0
        %1387 = vdwg.mxu0
        %v1388 = vrcp.pop %v1335
        %v1389 = vrcp.pop %v1338
        %v1390 = vmul.f32 %v1382, %v1388
        %v1391 = vmul.f32 %v1385, %v1389
        %1392 = vrot.lane.b32.xlu0 %v1150, 96
        %v1393 = vpop.permute.xlu0 %1392
        %1394 = vrot.lane.b32.xlu0 %v1150, 32
        %v1395 = vpop.permute.xlu0 %1394
        %v1397 = vsel %vm1155, %v1393, 0
        %v1400 = vsel %vm1155, %v1395, 0
        %1402 = vmatprep.subr.bf16.mxu0 0
        %1403 = vmatpush1.bf16.xpose.msra.mxu0 %v1400
        %1404 = vmatprep.subr.bf16.mxu0 0
        %1405 = vmatpush1.bf16.xpose.msra.mxu0 0
        %1406 = vmatprep.subr.bf16.mxu0 0
        %1407 = vmatpush1.bf16.xpose.msra.mxu0 0
        %1408 = vmatprep.subr.bf16.mxu0 0
        %1409 = vmatpush1.bf16.xpose.msra.mxu0 0
        %1410 = vmatprep.subr.bf16.mxu0 0
        %1411 = vmatpush1.bf16.xpose.msra.mxu0 0
        %1412 = vmatprep.subr.bf16.mxu0 0
        %1413 = vmatpush1.bf16.xpose.msra.mxu0 0
        %1414 = vmatprep.subr.bf16.mxu0 0
        %1415 = vmatpush1.bf16.xpose.msra.mxu0 0
        %1416 = vmatprep.subr.bf16.mxu0 0
        %1417 = vmatpush1.bf16.xpose.msra.mxu0 0
        %1418 = vmatprep.subr.bf16.mxu0 0
        %1419 = vmatpush1.bf16.xpose.msra.mxu0 0
        %1420 = vmatprep.subr.bf16.mxu0 0
        %1421 = vmatpush1.bf16.xpose.msra.mxu0 0
        %1422 = vmatprep.subr.bf16.mxu0 0
        %1423 = vmatpush1.bf16.xpose.msra.mxu0 0
        %1424 = vmatprep.subr.bf16.mxu0 0
        %1425 = vmatpush1.bf16.xpose.msra.mxu0 0
        %1426 = vmatprep.subr.bf16.mxu0 0
        %1427 = vmatpush1.bf16.xpose.msra.mxu0 0
        %1428 = vmatprep.subr.bf16.mxu0 0
        %1429 = vmatpush1.bf16.xpose.msra.mxu0 0
        %1430 = vmatprep.subr.bf16.mxu0 0
        %1431 = vmatpush1.bf16.xpose.msra.mxu0 0
        %1432 = vmatprep.subr.bf16.mxu0 0
        %1433 = vmatpush1.bf16.xpose.msra.mxu0 0
        %1434 = vmatprep.mubr.bf16.mxu0 0
        %1435 = vmatmul.mubr.bf16.gmra.mrb[0].mxu0 %v1397
        %v1436 = vpop.f32.mrb[0].mxu0
        %v1437 = vadd.f32 0.0, %v1436
        %v1438 = vpop.f32.mrb[0].mxu0
        %v1439 = vpop.f32.mrb[0].mxu0
        %v1440 = vadd.f32 0.0, %v1439
        %v1441 = vpop.f32.mrb[0].mxu0
        %1442 = vdwg.mxu0
        %v1443 = vsel %vm1155, %v1437, -inf
        %1444 = vmax.xlane.f32.xlu0 %v1443
        %v1445 = vpop.xlane.xlu0 %1444
        %v1446 = vsel %vm1155, %v1440, -inf
        %1447 = vmax.xlane.f32.xlu0 %v1446
        %v1448 = vpop.xlane.xlu0 %1447
        %v1449 = vsub.f32 %v1437, %v1445
        %v1450 = vsub.f32 %v1440, %v1448
        %v1451 = vmul.f32 %v1449, 1.442695
        %v1452 = vpow.pop %v1451
        %v1453 = vmul.f32 %v1450, 1.442695
        %v1454 = vpow.pop %v1453
        %v1455 = vsel %vm1155, %v1452, 0.0
        %1456 = vadd.xlane.f32.xlu0 %v1455
        %v1457 = vpop.xlane.xlu0 %1456
        %v1458 = vsel %vm1155, %v1454, 0.0
        %1459 = vadd.xlane.f32.xlu0 %v1458
        %v1460 = vpop.xlane.xlu0 %1459
        %v1461 = vpack.c.bf16 %v1454, %v1452
        %1462 = vrot.lane.b32.xlu0 %v1151, 96
        %v1463 = vpop.permute.xlu0 %1462
        %v1466 = vsel %vm1155, %v1461, 0
        %1468 = vmatprep.subr.bf16.mxu0 0
        %1469 = vmatpush1.bf16.msra.mxu0 %v1463
        %1470 = vmatprep.subr.bf16.mxu0 0
        %1471 = vmatpush1.bf16.msra.mxu0 0
        %1472 = vmatprep.subr.bf16.mxu0 0
        %1473 = vmatpush1.bf16.msra.mxu0 0
        %1474 = vmatprep.subr.bf16.mxu0 0
        %1475 = vmatpush1.bf16.msra.mxu0 0
        %1476 = vmatprep.subr.bf16.mxu0 0
        %1477 = vmatpush1.bf16.msra.mxu0 0
        %1478 = vmatprep.subr.bf16.mxu0 0
        %1479 = vmatpush1.bf16.msra.mxu0 0
        %1480 = vmatprep.subr.bf16.mxu0 0
        %1481 = vmatpush1.bf16.msra.mxu0 0
        %1482 = vmatprep.subr.bf16.mxu0 0
        %1483 = vmatpush1.bf16.msra.mxu0 0
        %1484 = vmatprep.subr.bf16.mxu0 0
        %1485 = vmatpush1.bf16.msra.mxu0 0
        %1486 = vmatprep.subr.bf16.mxu0 0
        %1487 = vmatpush1.bf16.msra.mxu0 0
        %1488 = vmatprep.subr.bf16.mxu0 0
        %1489 = vmatpush1.bf16.msra.mxu0 0
        %1490 = vmatprep.subr.bf16.mxu0 0
        %1491 = vmatpush1.bf16.msra.mxu0 0
        %1492 = vmatprep.subr.bf16.mxu0 0
        %1493 = vmatpush1.bf16.msra.mxu0 0
        %1494 = vmatprep.subr.bf16.mxu0 0
        %1495 = vmatpush1.bf16.msra.mxu0 0
        %1496 = vmatprep.subr.bf16.mxu0 0
        %1497 = vmatpush1.bf16.msra.mxu0 0
        %1498 = vmatprep.subr.bf16.mxu0 0
        %1499 = vmatpush1.bf16.msra.mxu0 0
        %1500 = vmatprep.mubr.bf16.mxu0 0
        %1501 = vmatmul.mubr.bf16.gmra.mrb[0].mxu0 %v1466
        %v1502 = vpop.f32.mrb[0].mxu0
        %v1503 = vadd.f32 0.0, %v1502
        %v1504 = vpop.f32.mrb[0].mxu0
        %v1505 = vpop.f32.mrb[0].mxu0
        %v1506 = vadd.f32 0.0, %v1505
        %v1507 = vpop.f32.mrb[0].mxu0
        %1508 = vdwg.mxu0
        %v1509 = vrcp.pop %v1457
        %v1510 = vrcp.pop %v1460
        %v1511 = vmul.f32 %v1503, %v1509
        %v1512 = vmul.f32 %v1506, %v1510
        %1513 = vrot.lane.b32.xlu0 %v1150, 80
        %v1514 = vpop.permute.xlu0 %1513
        %1515 = vrot.lane.b32.xlu0 %v1150, 16
        %v1516 = vpop.permute.xlu0 %1515
        %v1518 = vsel %vm1155, %v1514, 0
        %v1521 = vsel %vm1155, %v1516, 0
        %1523 = vmatprep.subr.bf16.mxu0 0
        %1524 = vmatpush1.bf16.xpose.msra.mxu0 %v1521
        %1525 = vmatprep.subr.bf16.mxu0 0
        %1526 = vmatpush1.bf16.xpose.msra.mxu0 0
        %1527 = vmatprep.subr.bf16.mxu0 0
        %1528 = vmatpush1.bf16.xpose.msra.mxu0 0
        %1529 = vmatprep.subr.bf16.mxu0 0
        %1530 = vmatpush1.bf16.xpose.msra.mxu0 0
        %1531 = vmatprep.subr.bf16.mxu0 0
        %1532 = vmatpush1.bf16.xpose.msra.mxu0 0
        %1533 = vmatprep.subr.bf16.mxu0 0
        %1534 = vmatpush1.bf16.xpose.msra.mxu0 0
        %1535 = vmatprep.subr.bf16.mxu0 0
        %1536 = vmatpush1.bf16.xpose.msra.mxu0 0
        %1537 = vmatprep.subr.bf16.mxu0 0
        %1538 = vmatpush1.bf16.xpose.msra.mxu0 0
        %1539 = vmatprep.subr.bf16.mxu0 0
        %1540 = vmatpush1.bf16.xpose.msra.mxu0 0
        %1541 = vmatprep.subr.bf16.mxu0 0
        %1542 = vmatpush1.bf16.xpose.msra.mxu0 0
        %1543 = vmatprep.subr.bf16.mxu0 0
        %1544 = vmatpush1.bf16.xpose.msra.mxu0 0
        %1545 = vmatprep.subr.bf16.mxu0 0
        %1546 = vmatpush1.bf16.xpose.msra.mxu0 0
        %1547 = vmatprep.subr.bf16.mxu0 0
        %1548 = vmatpush1.bf16.xpose.msra.mxu0 0
        %1549 = vmatprep.subr.bf16.mxu0 0
        %1550 = vmatpush1.bf16.xpose.msra.mxu0 0
        %1551 = vmatprep.subr.bf16.mxu0 0
        %1552 = vmatpush1.bf16.xpose.msra.mxu0 0
        %1553 = vmatprep.subr.bf16.mxu0 0
        %1554 = vmatpush1.bf16.xpose.msra.mxu0 0
        %1555 = vmatprep.mubr.bf16.mxu0 0
        %1556 = vmatmul.mubr.bf16.gmra.mrb[0].mxu0 %v1518
        %v1557 = vpop.f32.mrb[0].mxu0
        %v1558 = vadd.f32 0.0, %v1557
        %v1559 = vpop.f32.mrb[0].mxu0
        %v1560 = vpop.f32.mrb[0].mxu0
        %v1561 = vadd.f32 0.0, %v1560
        %v1562 = vpop.f32.mrb[0].mxu0
        %1563 = vdwg.mxu0
        %v1564 = vsel %vm1155, %v1558, -inf
        %1565 = vmax.xlane.f32.xlu0 %v1564
        %v1566 = vpop.xlane.xlu0 %1565
        %v1567 = vsel %vm1155, %v1561, -inf
        %1568 = vmax.xlane.f32.xlu0 %v1567
        %v1569 = vpop.xlane.xlu0 %1568
        %v1570 = vsub.f32 %v1558, %v1566
        %v1571 = vsub.f32 %v1561, %v1569
        %v1572 = vmul.f32 %v1570, 1.442695
        %v1573 = vpow.pop %v1572
        %v1574 = vmul.f32 %v1571, 1.442695
        %v1575 = vpow.pop %v1574
        %v1576 = vsel %vm1155, %v1573, 0.0
        %1577 = vadd.xlane.f32.xlu0 %v1576
        %v1578 = vpop.xlane.xlu0 %1577
        %v1579 = vsel %vm1155, %v1575, 0.0
        %1580 = vadd.xlane.f32.xlu0 %v1579
        %v1581 = vpop.xlane.xlu0 %1580
        %v1582 = vpack.c.bf16 %v1575, %v1573
        %1583 = vrot.lane.b32.xlu0 %v1151, 80
        %v1584 = vpop.permute.xlu0 %1583
        %v1587 = vsel %vm1155, %v1582, 0
        %1589 = vmatprep.subr.bf16.mxu0 0
        %1590 = vmatpush1.bf16.msra.mxu0 %v1584
        %1591 = vmatprep.subr.bf16.mxu0 0
        %1592 = vmatpush1.bf16.msra.mxu0 0
        %1593 = vmatprep.subr.bf16.mxu0 0
        %1594 = vmatpush1.bf16.msra.mxu0 0
        %1595 = vmatprep.subr.bf16.mxu0 0
        %1596 = vmatpush1.bf16.msra.mxu0 0
        %1597 = vmatprep.subr.bf16.mxu0 0
        %1598 = vmatpush1.bf16.msra.mxu0 0
        %1599 = vmatprep.subr.bf16.mxu0 0
        %1600 = vmatpush1.bf16.msra.mxu0 0
        %1601 = vmatprep.subr.bf16.mxu0 0
        %1602 = vmatpush1.bf16.msra.mxu0 0
        %1603 = vmatprep.subr.bf16.mxu0 0
        %1604 = vmatpush1.bf16.msra.mxu0 0
        %1605 = vmatprep.subr.bf16.mxu0 0
        %1606 = vmatpush1.bf16.msra.mxu0 0
        %1607 = vmatprep.subr.bf16.mxu0 0
        %1608 = vmatpush1.bf16.msra.mxu0 0
        %1609 = vmatprep.subr.bf16.mxu0 0
        %1610 = vmatpush1.bf16.msra.mxu0 0
        %1611 = vmatprep.subr.bf16.mxu0 0
        %1612 = vmatpush1.bf16.msra.mxu0 0
        %1613 = vmatprep.subr.bf16.mxu0 0
        %1614 = vmatpush1.bf16.msra.mxu0 0
        %1615 = vmatprep.subr.bf16.mxu0 0
        %1616 = vmatpush1.bf16.msra.mxu0 0
        %1617 = vmatprep.subr.bf16.mxu0 0
        %1618 = vmatpush1.bf16.msra.mxu0 0
        %1619 = vmatprep.subr.bf16.mxu0 0
        %1620 = vmatpush1.bf16.msra.mxu0 0
        %1621 = vmatprep.mubr.bf16.mxu0 0
        %1622 = vmatmul.mubr.bf16.gmra.mrb[0].mxu0 %v1587
        %v1623 = vpop.f32.mrb[0].mxu0
        %v1624 = vadd.f32 0.0, %v1623
        %v1625 = vpop.f32.mrb[0].mxu0
        %v1626 = vpop.f32.mrb[0].mxu0
        %v1627 = vadd.f32 0.0, %v1626
        %v1628 = vpop.f32.mrb[0].mxu0
        %1629 = vdwg.mxu0
        %v1630 = vrcp.pop %v1578
        %v1631 = vrcp.pop %v1581
        %v1632 = vmul.f32 %v1624, %v1630
        %v1633 = vmul.f32 %v1627, %v1631
        %1636 = vrot.lane.b32.xlu0 %v1390, 16
        %v1637 = vpop.permute.xlu0 %1636
        %1638 = vrot.lane.b32.xlu0 %v1391, 16
        %v1639 = vpop.permute.xlu0 %1638
        %1644 = vrot.lane.b32.xlu0 %v1511, 32
        %v1645 = vpop.permute.xlu0 %1644
        %1646 = vrot.lane.b32.xlu0 %v1512, 32
        %v1647 = vpop.permute.xlu0 %1646
        %1652 = vrot.lane.b32.xlu0 %v1632, 48
        %v1653 = vpop.permute.xlu0 %1652
        %1654 = vrot.lane.b32.xlu0 %v1633, 48
        %v1655 = vpop.permute.xlu0 %1654
        %v1658 = vsel %vm1155, %v1268, %v1637
        %v1659 = vsel %vm1155, %v1269, %v1639
        %vm1660 = vcmask 261120
        %v1661 = vsel %vm1660, %v1658, %v1645
        %v1662 = vsel %vm1660, %v1659, %v1647
        %vm1663 = vcmask 392192
        %v1664 = vsel %vm1663, %v1661, %v1653
        %v1665 = vsel %vm1663, %v1662, %v1655
        %v1666 = vpack.c.bf16 %v1665, %v1664
        %v1667 = vld [vmem:[#allocation11] sm:$0xf]
        %v1668 = vld [vmem:[#allocation11 + $0x4] sm:$0xf]
        %v1669 = vld [vmem:[#allocation11 + $0x8] sm:$0xf]
        %v1670 = vld [vmem:[#allocation11 + $0xc] sm:$0xf]
        %v1671 = vld [vmem:[#allocation11 + $0x10] sm:$0xf]
        %v1672 = vld [vmem:[#allocation11 + $0x14] sm:$0xf]
        %v1673 = vld [vmem:[#allocation11 + $0x18] sm:$0xf]
        %v1674 = vld [vmem:[#allocation11 + $0x1c] sm:$0xf]
        %v1675 = vld [vmem:[#allocation13] sm:$0x1]
        %v1677 = vlaneseq
        %v1678 = vshrl.u32 %v1677, 7
        %v1679 = vsub.s32 0, %v1678
        %v1680 = vrot.slane %v1675, %v1679
        %v1690 = vunpack.c.l.b16 %v1667
        %v1691 = vunpack.c.l.b16 %v1668
        %v1692 = vunpack.c.l.b16 %v1669
        %v1693 = vunpack.c.l.b16 %v1670
        %v1694 = vunpack.c.l.b16 %v1671
        %v1695 = vunpack.c.l.b16 %v1672
        %v1696 = vunpack.c.l.b16 %v1673
        %v1697 = vunpack.c.l.b16 %v1674
        %v1698 = vpack.c.b16 %v1691, %v1690
        %v1699 = vpack.c.b16 %v1693, %v1692
        %v1700 = vpack.c.b16 %v1695, %v1694
        %v1701 = vpack.c.b16 %v1697, %v1696
        %v1707 = vsel %vm1011, %v1666, 0
        %1709 = vmatprep.subr.bf16.mxu0 0
        %1710 = vmatpush1.bf16.msra.mxu0 %v1698
        %1711 = vmatprep.subr.bf16.mxu0 0
        %1712 = vmatpush1.bf16.msra.mxu0 %v1699
        %1713 = vmatprep.subr.bf16.mxu0 0
        %1714 = vmatpush1.bf16.msra.mxu0 %v1700
        %1715 = vmatprep.subr.bf16.mxu0 0
        %1716 = vmatpush1.bf16.msra.mxu0 %v1701
        %1717 = vmatprep.subr.bf16.mxu0 0
        %1718 = vmatpush1.bf16.msra.mxu0 0
        %1719 = vmatprep.subr.bf16.mxu0 0
        %1720 = vmatpush1.bf16.msra.mxu0 0
        %1721 = vmatprep.subr.bf16.mxu0 0
        %1722 = vmatpush1.bf16.msra.mxu0 0
        %1723 = vmatprep.subr.bf16.mxu0 0
        %1724 = vmatpush1.bf16.msra.mxu0 0
        %1725 = vmatprep.subr.bf16.mxu0 0
        %1726 = vmatpush1.bf16.msra.mxu0 0
        %1727 = vmatprep.subr.bf16.mxu0 0
        %1728 = vmatpush1.bf16.msra.mxu0 0
        %1729 = vmatprep.subr.bf16.mxu0 0
        %1730 = vmatpush1.bf16.msra.mxu0 0
        %1731 = vmatprep.subr.bf16.mxu0 0
        %1732 = vmatpush1.bf16.msra.mxu0 0
        %1733 = vmatprep.subr.bf16.mxu0 0
        %1734 = vmatpush1.bf16.msra.mxu0 0
        %1735 = vmatprep.subr.bf16.mxu0 0
        %1736 = vmatpush1.bf16.msra.mxu0 0
        %1737 = vmatprep.subr.bf16.mxu0 0
        %1738 = vmatpush1.bf16.msra.mxu0 0
        %1739 = vmatprep.subr.bf16.mxu0 0
        %1740 = vmatpush1.bf16.msra.mxu0 0
        %1741 = vmatprep.mubr.bf16.mxu0 0
        %1742 = vmatmul.mubr.bf16.gmra.mrb[0].mxu0 %v1707
        %v1743 = vpop.f32.mrb[0].mxu0
        %v1744 = vadd.f32 %v1680, %v1743
        %v1745 = vpop.f32.mrb[0].mxu0
        %v1746 = vpop.f32.mrb[0].mxu0
        %v1747 = vadd.f32 %v1680, %v1746
        %v1748 = vpop.f32.mrb[0].mxu0
        %1749 = vdwg.mxu0
        %v1750 = vadd.f32 %v1007, %v1744
        %v1751 = vadd.f32 %v1008, %v1747
        %v1752 = vld [vmem:[#allocation26] sm:$0x1]
        %v1753 = vld [vmem:[#allocation28] sm:$0x1]
        %v1754 = vsel %vm1011, %v1750, 0.0
        %1755 = vadd.xlane.f32.xlu0 %v1754
        %v1756 = vpop.xlane.xlu0 %1755
        %v1757 = vsel %vm1011, %v1751, 0.0
        %1758 = vadd.xlane.f32.xlu0 %v1757
        %v1759 = vpop.xlane.xlu0 %1758
        %v1760 = vmul.f32 %v1756, %v1018
        %v1761 = vmul.f32 %v1759, %v1018
        %v1762 = vsub.f32 %v1750, %v1760
        %v1763 = vsub.f32 %v1751, %v1761
        %v1764 = vmul.f32 %v1762, %v1762
        %v1765 = vmul.f32 %v1763, %v1763
        %v1766 = vsel %vm1011, %v1764, 0.0
        %1767 = vadd.xlane.f32.xlu0 %v1766
        %v1768 = vpop.xlane.xlu0 %1767
        %v1769 = vsel %vm1011, %v1765, 0.0
        %1770 = vadd.xlane.f32.xlu0 %v1769
        %v1771 = vpop.xlane.xlu0 %1770
        %v1772 = vmul.f32 %v1768, %v1018
        %v1773 = vmul.f32 %v1771, %v1018
        %v1774 = vadd.f32 %v1772, 1e-05
        %v1775 = vadd.f32 %v1773, 1e-05
        %v1776 = vrsqrt.pop %v1774
        %v1777 = vrsqrt.pop %v1775
        %v1778 = vmul.f32 %v1762, %v1776
        %v1779 = vmul.f32 %v1763, %v1777
        %v1781 = vlaneseq
        %v1782 = vshrl.u32 %v1781, 7
        %v1783 = vsub.s32 0, %v1782
        %v1784 = vrot.slane %v1752, %v1783
        %v1786 = vmul.f32 %v1778, %v1784
        %v1787 = vmul.f32 %v1779, %v1784
        %v1789 = vlaneseq
        %v1790 = vshrl.u32 %v1789, 7
        %v1791 = vsub.s32 0, %v1790
        %v1792 = vrot.slane %v1753, %v1791
        %v1794 = vadd.f32 %v1786, %v1792
        %v1795 = vadd.f32 %v1787, %v1792
        %v1796 = vpack.c.bf16 %v1795, %v1794
        %v1797 = vld [vmem:[#allocation29] sm:$0xff]
        %v1798 = vld [vmem:[#allocation29 + $0x8] sm:$0xff]
        %v1799 = vld [vmem:[#allocation29 + $0x10] sm:$0xff]
        %v1800 = vld [vmem:[#allocation29 + $0x18] sm:$0xff]
        %v1801 = vld [vmem:[#allocation29 + $0x20] sm:$0xff]
        %v1802 = vld [vmem:[#allocation29 + $0x28] sm:$0xff]
        %v1803 = vld [vmem:[#allocation29 + $0x30] sm:$0xff]
        %v1804 = vld [vmem:[#allocation29 + $0x38] sm:$0xff]
        %v1805 = vld [vmem:[#allocation31] sm:$0x3]
        %v1807 = vlaneseq
        %v1808 = vshrl.u32 %v1807, 7
        %v1809 = vsub.s32 0, %v1808
        %v1810 = vrot.slane %v1805, %v1809
        %v1811 = vlaneseq
        %v1812 = vshrl.u32 %v1811, 7
        %v1813 = vsub.s32 1, %v1812
        %v1814 = vrot.slane %v1805, %v1813
        %v1825 = vunpack.c.l.b16 %v1797
        %v1826 = vunpack.c.h.b16 %v1797
        %v1827 = vunpack.c.l.b16 %v1798
        %v1828 = vunpack.c.h.b16 %v1798
        %v1829 = vunpack.c.l.b16 %v1799
        %v1830 = vunpack.c.h.b16 %v1799
        %v1831 = vunpack.c.l.b16 %v1800
        %v1832 = vunpack.c.h.b16 %v1800
        %v1833 = vunpack.c.l.b16 %v1801
        %v1834 = vunpack.c.h.b16 %v1801
        %v1835 = vunpack.c.l.b16 %v1802
        %v1836 = vunpack.c.h.b16 %v1802
        %v1837 = vunpack.c.l.b16 %v1803
        %v1838 = vunpack.c.h.b16 %v1803
        %v1839 = vunpack.c.l.b16 %v1804
        %v1840 = vunpack.c.h.b16 %v1804
        %v1841 = vpack.c.b16 %v1827, %v1825
        %v1842 = vpack.c.b16 %v1828, %v1826
        %v1843 = vpack.c.b16 %v1831, %v1829
        %v1844 = vpack.c.b16 %v1832, %v1830
        %v1845 = vpack.c.b16 %v1835, %v1833
        %v1846 = vpack.c.b16 %v1836, %v1834
        %v1847 = vpack.c.b16 %v1839, %v1837
        %v1848 = vpack.c.b16 %v1840, %v1838
        %v1858 = vsel %vm1011, %v1796, 0
        %1860 = vmatprep.subr.bf16.mxu0 %v1842
        %1861 = vmatpush1.bf16.msra.mxu0 %v1841
        %1862 = vmatprep.subr.bf16.mxu0 %v1844
        %1863 = vmatpush1.bf16.msra.mxu0 %v1843
        %1864 = vmatprep.subr.bf16.mxu0 %v1846
        %1865 = vmatpush1.bf16.msra.mxu0 %v1845
        %1866 = vmatprep.subr.bf16.mxu0 %v1848
        %1867 = vmatpush1.bf16.msra.mxu0 %v1847
        %1868 = vmatprep.subr.bf16.mxu0 0
        %1869 = vmatpush1.bf16.msra.mxu0 0
        %1870 = vmatprep.subr.bf16.mxu0 0
        %1871 = vmatpush1.bf16.msra.mxu0 0
        %1872 = vmatprep.subr.bf16.mxu0 0
        %1873 = vmatpush1.bf16.msra.mxu0 0
        %1874 = vmatprep.subr.bf16.mxu0 0
        %1875 = vmatpush1.bf16.msra.mxu0 0
        %1876 = vmatprep.subr.bf16.mxu0 0
        %1877 = vmatpush1.bf16.msra.mxu0 0
        %1878 = vmatprep.subr.bf16.mxu0 0
        %1879 = vmatpush1.bf16.msra.mxu0 0
        %1880 = vmatprep.subr.bf16.mxu0 0
        %1881 = vmatpush1.bf16.msra.mxu0 0
        %1882 = vmatprep.subr.bf16.mxu0 0
        %1883 = vmatpush1.bf16.msra.mxu0 0
        %1884 = vmatprep.subr.bf16.mxu0 0
        %1885 = vmatpush1.bf16.msra.mxu0 0
        %1886 = vmatprep.subr.bf16.mxu0 0
        %1887 = vmatpush1.bf16.msra.mxu0 0
        %1888 = vmatprep.subr.bf16.mxu0 0
        %1889 = vmatpush1.bf16.msra.mxu0 0
        %1890 = vmatprep.subr.bf16.mxu0 0
        %1891 = vmatpush1.bf16.msra.mxu0 0
        %1892 = vmatprep.mubr.bf16.mxu0 0
        %1893 = vmatmul.mubr.bf16.gmra.mrb[0].mxu0 %v1858
        %v1894 = vpop.f32.mrb[0].mxu0
        %v1895 = vadd.f32 %v1810, %v1894
        %v1896 = vpop.f32.mrb[0].mxu0
        %v1897 = vadd.f32 %v1814, %v1896
        %v1898 = vpop.f32.mrb[0].mxu0
        %v1899 = vadd.f32 %v1810, %v1898
        %v1900 = vpop.f32.mrb[0].mxu0
        %v1901 = vadd.f32 %v1814, %v1900
        %1902 = vdwg.mxu0
        %v1903 = vmul.f32 %v1895, %v1895
        %v1904 = vmul.f32 %v1897, %v1897
        %v1905 = vmul.f32 %v1899, %v1899
        %v1906 = vmul.f32 %v1901, %v1901
        %v1907 = vmul.f32 %v1895, %v1903
        %v1908 = vmul.f32 %v1897, %v1904
        %v1909 = vmul.f32 %v1899, %v1905
        %v1910 = vmul.f32 %v1901, %v1906
        %v1911 = vmul.f32 %v1907, 0.044715
        %v1912 = vmul.f32 %v1908, 0.044715
        %v1913 = vmul.f32 %v1909, 0.044715
        %v1914 = vmul.f32 %v1910, 0.044715
        %v1915 = vadd.f32 %v1895, %v1911
        %v1916 = vadd.f32 %v1897, %v1912
        %v1917 = vadd.f32 %v1899, %v1913
        %v1918 = vadd.f32 %v1901, %v1914
        %v1919 = vmul.f32 %v1915, 0.7978846
        %v1920 = vmul.f32 %v1916, 0.7978846
        %v1921 = vmul.f32 %v1917, 0.7978846
        %v1922 = vmul.f32 %v1918, 0.7978846
        %v1923 = vtanh.pop %v1919
        %v1924 = vtanh.pop %v1920
        %v1925 = vtanh.pop %v1921
        %v1926 = vtanh.pop %v1922
        %v1927 = vadd.f32 %v1923, 1.0
        %v1928 = vadd.f32 %v1924, 1.0
        %v1929 = vadd.f32 %v1925, 1.0
        %v1930 = vadd.f32 %v1926, 1.0
        %v1931 = vmul.f32 %v1927, 0.5
        %v1932 = vmul.f32 %v1928, 0.5
        %v1933 = vmul.f32 %v1929, 0.5
        %v1934 = vmul.f32 %v1930, 0.5
        %v1935 = vmul.f32 %v1895, %v1931
        %v1936 = vmul.f32 %v1897, %v1932
        %v1937 = vmul.f32 %v1899, %v1933
        %v1938 = vmul.f32 %v1901, %v1934
        %v1939 = vpack.c.bf16 %v1937, %v1935
        %v1940 = vpack.c.bf16 %v1938, %v1936
        %v1941 = vld [vmem:[#allocation32] sm:$0xf]
        %v1942 = vld [vmem:[#allocation32 + $0x4] sm:$0xf]
        %v1943 = vld [vmem:[#allocation32 + $0x8] sm:$0xf]
        %v1944 = vld [vmem:[#allocation32 + $0xc] sm:$0xf]
        %v1945 = vld [vmem:[#allocation32 + $0x10] sm:$0xf]
        %v1946 = vld [vmem:[#allocation32 + $0x14] sm:$0xf]
        %v1947 = vld [vmem:[#allocation32 + $0x18] sm:$0xf]
        %v1948 = vld [vmem:[#allocation32 + $0x1c] sm:$0xf]
        %v1949 = vld [vmem:[#allocation32 + $0x20] sm:$0xf]
        %v1950 = vld [vmem:[#allocation32 + $0x24] sm:$0xf]
        %v1951 = vld [vmem:[#allocation32 + $0x28] sm:$0xf]
        %v1952 = vld [vmem:[#allocation32 + $0x2c] sm:$0xf]
        %v1953 = vld [vmem:[#allocation32 + $0x30] sm:$0xf]
        %v1954 = vld [vmem:[#allocation32 + $0x34] sm:$0xf]
        %v1955 = vld [vmem:[#allocation32 + $0x38] sm:$0xf]
        %v1956 = vld [vmem:[#allocation32 + $0x3c] sm:$0xf]
        %v1957 = vld [vmem:[#allocation32 + $0x40] sm:$0xf]
        %v1958 = vld [vmem:[#allocation32 + $0x44] sm:$0xf]
        %v1959 = vld [vmem:[#allocation32 + $0x48] sm:$0xf]
        %v1960 = vld [vmem:[#allocation32 + $0x4c] sm:$0xf]
        %v1961 = vld [vmem:[#allocation32 + $0x50] sm:$0xf]
        %v1962 = vld [vmem:[#allocation32 + $0x54] sm:$0xf]
        %v1963 = vld [vmem:[#allocation32 + $0x58] sm:$0xf]
        %v1964 = vld [vmem:[#allocation32 + $0x5c] sm:$0xf]
        %v1965 = vld [vmem:[#allocation32 + $0x60] sm:$0xf]
        %v1966 = vld [vmem:[#allocation32 + $0x64] sm:$0xf]
        %v1967 = vld [vmem:[#allocation32 + $0x68] sm:$0xf]
        %v1968 = vld [vmem:[#allocation32 + $0x6c] sm:$0xf]
        %v1969 = vld [vmem:[#allocation32 + $0x70] sm:$0xf]
        %v1970 = vld [vmem:[#allocation32 + $0x74] sm:$0xf]
        %v1971 = vld [vmem:[#allocation32 + $0x78] sm:$0xf]
        %v1972 = vld [vmem:[#allocation32 + $0x7c] sm:$0xf]
        %v1973 = vld [vmem:[#allocation34] sm:$0x1]
        %v1975 = vlaneseq
        %v1976 = vshrl.u32 %v1975, 7
        %v1977 = vsub.s32 0, %v1976
        %v1978 = vrot.slane %v1973, %v1977
        %v2012 = vunpack.c.l.b16 %v1941
        %v2013 = vunpack.c.l.b16 %v1942
        %v2014 = vunpack.c.l.b16 %v1943
        %v2015 = vunpack.c.l.b16 %v1944
        %v2016 = vunpack.c.l.b16 %v1945
        %v2017 = vunpack.c.l.b16 %v1946
        %v2018 = vunpack.c.l.b16 %v1947
        %v2019 = vunpack.c.l.b16 %v1948
        %v2020 = vunpack.c.l.b16 %v1949
        %v2021 = vunpack.c.l.b16 %v1950
        %v2022 = vunpack.c.l.b16 %v1951
        %v2023 = vunpack.c.l.b16 %v1952
        %v2024 = vunpack.c.l.b16 %v1953
        %v2025 = vunpack.c.l.b16 %v1954
        %v2026 = vunpack.c.l.b16 %v1955
        %v2027 = vunpack.c.l.b16 %v1956
        %v2028 = vunpack.c.l.b16 %v1957
        %v2029 = vunpack.c.l.b16 %v1958
        %v2030 = vunpack.c.l.b16 %v1959
        %v2031 = vunpack.c.l.b16 %v1960
        %v2032 = vunpack.c.l.b16 %v1961
        %v2033 = vunpack.c.l.b16 %v1962
        %v2034 = vunpack.c.l.b16 %v1963
        %v2035 = vunpack.c.l.b16 %v1964
        %v2036 = vunpack.c.l.b16 %v1965
        %v2037 = vunpack.c.l.b16 %v1966
        %v2038 = vunpack.c.l.b16 %v1967
        %v2039 = vunpack.c.l.b16 %v1968
        %v2040 = vunpack.c.l.b16 %v1969
        %v2041 = vunpack.c.l.b16 %v1970
        %v2042 = vunpack.c.l.b16 %v1971
        %v2043 = vunpack.c.l.b16 %v1972
        %v2044 = vpack.c.b16 %v2013, %v2012
        %v2045 = vpack.c.b16 %v2015, %v2014
        %v2046 = vpack.c.b16 %v2017, %v2016
        %v2047 = vpack.c.b16 %v2019, %v2018
        %v2048 = vpack.c.b16 %v2021, %v2020
        %v2049 = vpack.c.b16 %v2023, %v2022
        %v2050 = vpack.c.b16 %v2025, %v2024
        %v2051 = vpack.c.b16 %v2027, %v2026
        %v2052 = vpack.c.b16 %v2029, %v2028
        %v2053 = vpack.c.b16 %v2031, %v2030
        %v2054 = vpack.c.b16 %v2033, %v2032
        %v2055 = vpack.c.b16 %v2035, %v2034
        %v2056 = vpack.c.b16 %v2037, %v2036
        %v2057 = vpack.c.b16 %v2039, %v2038
        %v2058 = vpack.c.b16 %v2041, %v2040
        %v2059 = vpack.c.b16 %v2043, %v2042
        %2076 = vmatprep.subr.bf16.mxu0 0
        %2077 = vmatpush1.bf16.msra.mxu0 %v2044
        %2078 = vmatprep.subr.bf16.mxu0 0
        %2079 = vmatpush1.bf16.msra.mxu0 %v2045
        %2080 = vmatprep.subr.bf16.mxu0 0
        %2081 = vmatpush1.bf16.msra.mxu0 %v2046
        %2082 = vmatprep.subr.bf16.mxu0 0
        %2083 = vmatpush1.bf16.msra.mxu0 %v2047
        %2084 = vmatprep.subr.bf16.mxu0 0
        %2085 = vmatpush1.bf16.msra.mxu0 %v2048
        %2086 = vmatprep.subr.bf16.mxu0 0
        %2087 = vmatpush1.bf16.msra.mxu0 %v2049
        %2088 = vmatprep.subr.bf16.mxu0 0
        %2089 = vmatpush1.bf16.msra.mxu0 %v2050
        %2090 = vmatprep.subr.bf16.mxu0 0
        %2091 = vmatpush1.bf16.msra.mxu0 %v2051
        %2092 = vmatprep.subr.bf16.mxu0 0
        %2093 = vmatpush1.bf16.msra.mxu0 %v2052
        %2094 = vmatprep.subr.bf16.mxu0 0
        %2095 = vmatpush1.bf16.msra.mxu0 %v2053
        %2096 = vmatprep.subr.bf16.mxu0 0
        %2097 = vmatpush1.bf16.msra.mxu0 %v2054
        %2098 = vmatprep.subr.bf16.mxu0 0
        %2099 = vmatpush1.bf16.msra.mxu0 %v2055
        %2100 = vmatprep.subr.bf16.mxu0 0
        %2101 = vmatpush1.bf16.msra.mxu0 %v2056
        %2102 = vmatprep.subr.bf16.mxu0 0
        %2103 = vmatpush1.bf16.msra.mxu0 %v2057
        %2104 = vmatprep.subr.bf16.mxu0 0
        %2105 = vmatpush1.bf16.msra.mxu0 %v2058
        %2106 = vmatprep.subr.bf16.mxu0 0
        %2107 = vmatpush1.bf16.msra.mxu0 %v2059
        %2108 = vmatprep.mubr.bf16.mxu0 %v1940
        %2109 = vmatmul.mubr.bf16.gmra.mrb[0].mxu0 %v1939
        %v2110 = vpop.f32.mrb[0].mxu0
        %v2111 = vadd.f32 %v1978, %v2110
        %v2112 = vpop.f32.mrb[0].mxu0
        %v2113 = vpop.f32.mrb[0].mxu0
        %v2114 = vadd.f32 %v1978, %v2113
        %v2115 = vpop.f32.mrb[0].mxu0
        %2116 = vdwg.mxu0
        %v2117 = vadd.f32 %v1750, %v2111
        %v2118 = vadd.f32 %v1751, %v2114
        %v2119 = vpack.c.bf16 %v2118, %v2117
        %v2121 = vunpack.c.l.b16 %v2119
        %v2122 = vunpack.c.h.b16 %v2119
        %v2123 = vpack.c.b16 %v2121, %v2121
        %v2124 = vpack.c.b16 %v2122, %v2122
        %vm2127 = vcmask 519168
        %2128 = vst.msk [vmem:[%s996] sm:$0xf] %vm2127, %v2123
        %2129 = vst.msk [vmem:[%s996 + $0x4] sm:$0xf] %vm2127, %v2124
        %v2130 = vld [vmem:[%s857] sm:$0xf]
        %v2131 = vld [vmem:[%s857 + $0x4] sm:$0xf]
        %v2132 = vunpack.c.l.bf16 %v2130
        %v2133 = vunpack.c.l.bf16 %v2131
        %v2134 = vld [vmem:[#allocation14] sm:$0x1]
        %v2135 = vld [vmem:[#allocation16] sm:$0x1]
        %v2137 = vlaneseq
        %v2138 = vshrl.u32 %v2137, 7
        %v2139 = vsub.s32 0, %v2138
        %v2140 = vrot.slane %v2134, %v2139
        %v2142 = vmul.f32 %v1037, %v2140
        %v2143 = vmul.f32 %v1038, %v2140
        %v2145 = vlaneseq
        %v2146 = vshrl.u32 %v2145, 7
        %v2147 = vsub.s32 0, %v2146
        %v2148 = vrot.slane %v2135, %v2147
        %v2150 = vadd.f32 %v2142, %v2148
        %v2151 = vadd.f32 %v2143, %v2148
        %v2152 = vld [vmem:[#allocation17] sm:$0x1]
        %v2153 = vld [vmem:[#allocation19] sm:$0x1]
        %v2154 = vsel %vm1011, %v2150, 0.0
        %2155 = vadd.xlane.f32.xlu0 %v2154
        %v2156 = vpop.xlane.xlu0 %2155
        %v2157 = vsel %vm1011, %v2151, 0.0
        %2158 = vadd.xlane.f32.xlu0 %v2157
        %v2159 = vpop.xlane.xlu0 %2158
        %v2160 = vmul.f32 %v2156, %v1018
        %v2161 = vmul.f32 %v2159, %v1018
        %v2162 = vsub.f32 %v2150, %v2160
        %v2163 = vsub.f32 %v2151, %v2161
        %v2164 = vmul.f32 %v2162, %v2162
        %v2165 = vmul.f32 %v2163, %v2163
        %v2166 = vsel %vm1011, %v2164, 0.0
        %2167 = vadd.xlane.f32.xlu0 %v2166
        %v2168 = vpop.xlane.xlu0 %2167
        %v2169 = vsel %vm1011, %v2165, 0.0
        %2170 = vadd.xlane.f32.xlu0 %v2169
        %v2171 = vpop.xlane.xlu0 %2170
        %v2172 = vmul.f32 %v2168, %v1018
        %v2173 = vmul.f32 %v2171, %v1018
        %v2174 = vadd.f32 %v2172, 1e-05
        %v2175 = vadd.f32 %v2173, 1e-05
        %v2176 = vrsqrt.pop %v2174
        %v2177 = vrsqrt.pop %v2175
        %v2178 = vmul.f32 %v2162, %v2176
        %v2179 = vmul.f32 %v2163, %v2177
        %v2181 = vlaneseq
        %v2182 = vshrl.u32 %v2181, 7
        %v2183 = vsub.s32 0, %v2182
        %v2184 = vrot.slane %v2152, %v2183
        %v2186 = vmul.f32 %v2178, %v2184
        %v2187 = vmul.f32 %v2179, %v2184
        %v2189 = vlaneseq
        %v2190 = vshrl.u32 %v2189, 7
        %v2191 = vsub.s32 0, %v2190
        %v2192 = vrot.slane %v2153, %v2191
        %v2194 = vadd.f32 %v2186, %v2192
        %v2195 = vadd.f32 %v2187, %v2192
        %v2196 = vsel %vm1011, %v2132, 0.0
        %2197 = vadd.xlane.f32.xlu0 %v2196
        %v2198 = vpop.xlane.xlu0 %2197
        %v2199 = vsel %vm1011, %v2133, 0.0
        %2200 = vadd.xlane.f32.xlu0 %v2199
        %v2201 = vpop.xlane.xlu0 %2200
        %v2202 = vmul.f32 %v2198, %v1018
        %v2203 = vmul.f32 %v2201, %v1018
        %v2204 = vsub.f32 %v2132, %v2202
        %v2205 = vsub.f32 %v2133, %v2203
        %v2206 = vmul.f32 %v2204, %v2204
        %v2207 = vmul.f32 %v2205, %v2205
        %v2208 = vsel %vm1011, %v2206, 0.0
        %2209 = vadd.xlane.f32.xlu0 %v2208
        %v2210 = vpop.xlane.xlu0 %2209
        %v2211 = vsel %vm1011, %v2207, 0.0
        %2212 = vadd.xlane.f32.xlu0 %v2211
        %v2213 = vpop.xlane.xlu0 %2212
        %v2214 = vmul.f32 %v2210, %v1018
        %v2215 = vmul.f32 %v2213, %v1018
        %v2216 = vadd.f32 %v2214, 1e-05
        %v2217 = vadd.f32 %v2215, 1e-05
        %v2218 = vrsqrt.pop %v2216
        %v2219 = vrsqrt.pop %v2217
        %v2220 = vmul.f32 %v2204, %v2218
        %v2221 = vmul.f32 %v2205, %v2219
        %v2222 = vmul.f32 %v2220, %v2184
        %v2223 = vmul.f32 %v2221, %v2184
        %v2224 = vadd.f32 %v2222, %v2192
        %v2225 = vadd.f32 %v2223, %v2192
        %v2226 = vpack.c.bf16 %v2195, %v2194
        %v2227 = vld [vmem:[#allocation20] sm:$0xf]
        %v2228 = vld [vmem:[#allocation20 + $0x4] sm:$0xf]
        %v2229 = vld [vmem:[#allocation20 + $0x8] sm:$0xf]
        %v2230 = vld [vmem:[#allocation20 + $0xc] sm:$0xf]
        %v2231 = vld [vmem:[#allocation20 + $0x10] sm:$0xf]
        %v2232 = vld [vmem:[#allocation20 + $0x14] sm:$0xf]
        %v2233 = vld [vmem:[#allocation20 + $0x18] sm:$0xf]
        %v2234 = vld [vmem:[#allocation20 + $0x1c] sm:$0xf]
        %v2243 = vunpack.c.l.b16 %v2227
        %v2244 = vunpack.c.l.b16 %v2228
        %v2245 = vunpack.c.l.b16 %v2229
        %v2246 = vunpack.c.l.b16 %v2230
        %v2247 = vunpack.c.l.b16 %v2231
        %v2248 = vunpack.c.l.b16 %v2232
        %v2249 = vunpack.c.l.b16 %v2233
        %v2250 = vunpack.c.l.b16 %v2234
        %v2251 = vpack.c.b16 %v2244, %v2243
        %v2252 = vpack.c.b16 %v2246, %v2245
        %v2253 = vpack.c.b16 %v2248, %v2247
        %v2254 = vpack.c.b16 %v2250, %v2249
        %v2260 = vsel %vm1011, %v2226, 0
        %2262 = vmatprep.subr.bf16.mxu0 0
        %2263 = vmatpush1.bf16.msra.mxu0 %v2251
        %2264 = vmatprep.subr.bf16.mxu0 0
        %2265 = vmatpush1.bf16.msra.mxu0 %v2252
        %2266 = vmatprep.subr.bf16.mxu0 0
        %2267 = vmatpush1.bf16.msra.mxu0 %v2253
        %2268 = vmatprep.subr.bf16.mxu0 0
        %2269 = vmatpush1.bf16.msra.mxu0 %v2254
        %2270 = vmatprep.subr.bf16.mxu0 0
        %2271 = vmatpush1.bf16.msra.mxu0 0
        %2272 = vmatprep.subr.bf16.mxu0 0
        %2273 = vmatpush1.bf16.msra.mxu0 0
        %2274 = vmatprep.subr.bf16.mxu0 0
        %2275 = vmatpush1.bf16.msra.mxu0 0
        %2276 = vmatprep.subr.bf16.mxu0 0
        %2277 = vmatpush1.bf16.msra.mxu0 0
        %2278 = vmatprep.subr.bf16.mxu0 0
        %2279 = vmatpush1.bf16.msra.mxu0 0
        %2280 = vmatprep.subr.bf16.mxu0 0
        %2281 = vmatpush1.bf16.msra.mxu0 0
        %2282 = vmatprep.subr.bf16.mxu0 0
        %2283 = vmatpush1.bf16.msra.mxu0 0
        %2284 = vmatprep.subr.bf16.mxu0 0
        %2285 = vmatpush1.bf16.msra.mxu0 0
        %2286 = vmatprep.subr.bf16.mxu0 0
        %2287 = vmatpush1.bf16.msra.mxu0 0
        %2288 = vmatprep.subr.bf16.mxu0 0
        %2289 = vmatpush1.bf16.msra.mxu0 0
        %2290 = vmatprep.subr.bf16.mxu0 0
        %2291 = vmatpush1.bf16.msra.mxu0 0
        %2292 = vmatprep.subr.bf16.mxu0 0
        %2293 = vmatpush1.bf16.msra.mxu0 0
        %2294 = vmatprep.mubr.bf16.mxu0 0
        %2295 = vmatmul.mubr.bf16.gmra.mrb[0].mxu0 %v2260
        %v2296 = vpop.f32.mrb[0].mxu0
        %v2297 = vadd.f32 0.0, %v2296
        %v2298 = vpop.f32.mrb[0].mxu0
        %v2299 = vpop.f32.mrb[0].mxu0
        %v2300 = vadd.f32 0.0, %v2299
        %v2301 = vpop.f32.mrb[0].mxu0
        %2302 = vdwg.mxu0
        %v2303 = vpack.c.bf16 %v2300, %v2297
        %v2304 = vld [vmem:[#allocation22] sm:$0xf]
        %v2305 = vld [vmem:[#allocation22 + $0x4] sm:$0xf]
        %v2306 = vld [vmem:[#allocation22 + $0x8] sm:$0xf]
        %v2307 = vld [vmem:[#allocation22 + $0xc] sm:$0xf]
        %v2308 = vld [vmem:[#allocation22 + $0x10] sm:$0xf]
        %v2309 = vld [vmem:[#allocation22 + $0x14] sm:$0xf]
        %v2310 = vld [vmem:[#allocation22 + $0x18] sm:$0xf]
        %v2311 = vld [vmem:[#allocation22 + $0x1c] sm:$0xf]
        %v2320 = vunpack.c.l.b16 %v2304
        %v2321 = vunpack.c.l.b16 %v2305
        %v2322 = vunpack.c.l.b16 %v2306
        %v2323 = vunpack.c.l.b16 %v2307
        %v2324 = vunpack.c.l.b16 %v2308
        %v2325 = vunpack.c.l.b16 %v2309
        %v2326 = vunpack.c.l.b16 %v2310
        %v2327 = vunpack.c.l.b16 %v2311
        %v2328 = vpack.c.b16 %v2321, %v2320
        %v2329 = vpack.c.b16 %v2323, %v2322
        %v2330 = vpack.c.b16 %v2325, %v2324
        %v2331 = vpack.c.b16 %v2327, %v2326
        %2336 = vmatprep.subr.bf16.mxu0 0
        %2337 = vmatpush1.bf16.msra.mxu0 %v2328
        %2338 = vmatprep.subr.bf16.mxu0 0
        %2339 = vmatpush1.bf16.msra.mxu0 %v2329
        %2340 = vmatprep.subr.bf16.mxu0 0
        %2341 = vmatpush1.bf16.msra.mxu0 %v2330
        %2342 = vmatprep.subr.bf16.mxu0 0
        %2343 = vmatpush1.bf16.msra.mxu0 %v2331
        %2344 = vmatprep.subr.bf16.mxu0 0
        %2345 = vmatpush1.bf16.msra.mxu0 0
        %2346 = vmatprep.subr.bf16.mxu0 0
        %2347 = vmatpush1.bf16.msra.mxu0 0
        %2348 = vmatprep.subr.bf16.mxu0 0
        %2349 = vmatpush1.bf16.msra.mxu0 0
        %2350 = vmatprep.subr.bf16.mxu0 0
        %2351 = vmatpush1.bf16.msra.mxu0 0
        %2352 = vmatprep.subr.bf16.mxu0 0
        %2353 = vmatpush1.bf16.msra.mxu0 0
        %2354 = vmatprep.subr.bf16.mxu0 0
        %2355 = vmatpush1.bf16.msra.mxu0 0
        %2356 = vmatprep.subr.bf16.mxu0 0
        %2357 = vmatpush1.bf16.msra.mxu0 0
        %2358 = vmatprep.subr.bf16.mxu0 0
        %2359 = vmatpush1.bf16.msra.mxu0 0
        %2360 = vmatprep.subr.bf16.mxu0 0
        %2361 = vmatpush1.bf16.msra.mxu0 0
        %2362 = vmatprep.subr.bf16.mxu0 0
        %2363 = vmatpush1.bf16.msra.mxu0 0
        %2364 = vmatprep.subr.bf16.mxu0 0
        %2365 = vmatpush1.bf16.msra.mxu0 0
        %2366 = vmatprep.subr.bf16.mxu0 0
        %2367 = vmatpush1.bf16.msra.mxu0 0
        %2368 = vmatprep.mubr.bf16.mxu0 0
        %2369 = vmatmul.mubr.bf16.gmra.mrb[0].mxu0 %v2260
        %v2370 = vpop.f32.mrb[0].mxu0
        %v2371 = vadd.f32 0.0, %v2370
        %v2372 = vpop.f32.mrb[0].mxu0
        %v2373 = vpop.f32.mrb[0].mxu0
        %v2374 = vadd.f32 0.0, %v2373
        %v2375 = vpop.f32.mrb[0].mxu0
        %2376 = vdwg.mxu0
        %v2377 = vpack.c.bf16 %v2374, %v2371
        %v2378 = vpack.c.bf16 %v2225, %v2224
        %v2380 = vsel %vm1011, %v2378, 0
        %2382 = vmatprep.subr.bf16.mxu0 0
        %2383 = vmatpush1.bf16.msra.mxu0 %v2328
        %2384 = vmatprep.subr.bf16.mxu0 0
        %2385 = vmatpush1.bf16.msra.mxu0 %v2329
        %2386 = vmatprep.subr.bf16.mxu0 0
        %2387 = vmatpush1.bf16.msra.mxu0 %v2330
        %2388 = vmatprep.subr.bf16.mxu0 0
        %2389 = vmatpush1.bf16.msra.mxu0 %v2331
        %2390 = vmatprep.subr.bf16.mxu0 0
        %2391 = vmatpush1.bf16.msra.mxu0 0
        %2392 = vmatprep.subr.bf16.mxu0 0
        %2393 = vmatpush1.bf16.msra.mxu0 0
        %2394 = vmatprep.subr.bf16.mxu0 0
        %2395 = vmatpush1.bf16.msra.mxu0 0
        %2396 = vmatprep.subr.bf16.mxu0 0
        %2397 = vmatpush1.bf16.msra.mxu0 0
        %2398 = vmatprep.subr.bf16.mxu0 0
        %2399 = vmatpush1.bf16.msra.mxu0 0
        %2400 = vmatprep.subr.bf16.mxu0 0
        %2401 = vmatpush1.bf16.msra.mxu0 0
        %2402 = vmatprep.subr.bf16.mxu0 0
        %2403 = vmatpush1.bf16.msra.mxu0 0
        %2404 = vmatprep.subr.bf16.mxu0 0
        %2405 = vmatpush1.bf16.msra.mxu0 0
        %2406 = vmatprep.subr.bf16.mxu0 0
        %2407 = vmatpush1.bf16.msra.mxu0 0
        %2408 = vmatprep.subr.bf16.mxu0 0
        %2409 = vmatpush1.bf16.msra.mxu0 0
        %2410 = vmatprep.subr.bf16.mxu0 0
        %2411 = vmatpush1.bf16.msra.mxu0 0
        %2412 = vmatprep.subr.bf16.mxu0 0
        %2413 = vmatpush1.bf16.msra.mxu0 0
        %2414 = vmatprep.mubr.bf16.mxu0 0
        %2415 = vmatmul.mubr.bf16.gmra.mrb[0].mxu0 %v2380
        %v2416 = vpop.f32.mrb[0].mxu0
        %v2417 = vadd.f32 0.0, %v2416
        %v2418 = vpop.f32.mrb[0].mxu0
        %v2419 = vpop.f32.mrb[0].mxu0
        %v2420 = vadd.f32 0.0, %v2419
        %v2421 = vpop.f32.mrb[0].mxu0
        %2422 = vdwg.mxu0
        %v2423 = vpack.c.bf16 %v2420, %v2417
        %v2425 = vsel %vm1155, %v2303, 0
        %v2428 = vsel %vm1155, %v2377, 0
        %2430 = vmatprep.subr.bf16.mxu0 0
        %2431 = vmatpush1.bf16.xpose.msra.mxu0 %v2428
        %2432 = vmatprep.subr.bf16.mxu0 0
        %2433 = vmatpush1.bf16.xpose.msra.mxu0 0
        %2434 = vmatprep.subr.bf16.mxu0 0
        %2435 = vmatpush1.bf16.xpose.msra.mxu0 0
        %2436 = vmatprep.subr.bf16.mxu0 0
        %2437 = vmatpush1.bf16.xpose.msra.mxu0 0
        %2438 = vmatprep.subr.bf16.mxu0 0
        %2439 = vmatpush1.bf16.xpose.msra.mxu0 0
        %2440 = vmatprep.subr.bf16.mxu0 0
        %2441 = vmatpush1.bf16.xpose.msra.mxu0 0
        %2442 = vmatprep.subr.bf16.mxu0 0
        %2443 = vmatpush1.bf16.xpose.msra.mxu0 0
        %2444 = vmatprep.subr.bf16.mxu0 0
        %2445 = vmatpush1.bf16.xpose.msra.mxu0 0
        %2446 = vmatprep.subr.bf16.mxu0 0
        %2447 = vmatpush1.bf16.xpose.msra.mxu0 0
        %2448 = vmatprep.subr.bf16.mxu0 0
        %2449 = vmatpush1.bf16.xpose.msra.mxu0 0
        %2450 = vmatprep.subr.bf16.mxu0 0
        %2451 = vmatpush1.bf16.xpose.msra.mxu0 0
        %2452 = vmatprep.subr.bf16.mxu0 0
        %2453 = vmatpush1.bf16.xpose.msra.mxu0 0
        %2454 = vmatprep.subr.bf16.mxu0 0
        %2455 = vmatpush1.bf16.xpose.msra.mxu0 0
        %2456 = vmatprep.subr.bf16.mxu0 0
        %2457 = vmatpush1.bf16.xpose.msra.mxu0 0
        %2458 = vmatprep.subr.bf16.mxu0 0
        %2459 = vmatpush1.bf16.xpose.msra.mxu0 0
        %2460 = vmatprep.subr.bf16.mxu0 0
        %2461 = vmatpush1.bf16.xpose.msra.mxu0 0
        %2462 = vmatprep.mubr.bf16.mxu0 0
        %2463 = vmatmul.mubr.bf16.gmra.mrb[0].mxu0 %v2425
        %v2464 = vpop.f32.mrb[0].mxu0
        %v2465 = vadd.f32 0.0, %v2464
        %v2466 = vpop.f32.mrb[0].mxu0
        %v2467 = vpop.f32.mrb[0].mxu0
        %v2468 = vadd.f32 0.0, %v2467
        %v2469 = vpop.f32.mrb[0].mxu0
        %2470 = vdwg.mxu0
        %v2472 = vsel %vm1155, %v2423, 0
        %2474 = vmatprep.subr.bf16.mxu0 0
        %2475 = vmatpush1.bf16.xpose.msra.mxu0 %v2472
        %2476 = vmatprep.subr.bf16.mxu0 0
        %2477 = vmatpush1.bf16.xpose.msra.mxu0 0
        %2478 = vmatprep.subr.bf16.mxu0 0
        %2479 = vmatpush1.bf16.xpose.msra.mxu0 0
        %2480 = vmatprep.subr.bf16.mxu0 0
        %2481 = vmatpush1.bf16.xpose.msra.mxu0 0
        %2482 = vmatprep.subr.bf16.mxu0 0
        %2483 = vmatpush1.bf16.xpose.msra.mxu0 0
        %2484 = vmatprep.subr.bf16.mxu0 0
        %2485 = vmatpush1.bf16.xpose.msra.mxu0 0
        %2486 = vmatprep.subr.bf16.mxu0 0
        %2487 = vmatpush1.bf16.xpose.msra.mxu0 0
        %2488 = vmatprep.subr.bf16.mxu0 0
        %2489 = vmatpush1.bf16.xpose.msra.mxu0 0
        %2490 = vmatprep.subr.bf16.mxu0 0
        %2491 = vmatpush1.bf16.xpose.msra.mxu0 0
        %2492 = vmatprep.subr.bf16.mxu0 0
        %2493 = vmatpush1.bf16.xpose.msra.mxu0 0
        %2494 = vmatprep.subr.bf16.mxu0 0
        %2495 = vmatpush1.bf16.xpose.msra.mxu0 0
        %2496 = vmatprep.subr.bf16.mxu0 0
        %2497 = vmatpush1.bf16.xpose.msra.mxu0 0
        %2498 = vmatprep.subr.bf16.mxu0 0
        %2499 = vmatpush1.bf16.xpose.msra.mxu0 0
        %2500 = vmatprep.subr.bf16.mxu0 0
        %2501 = vmatpush1.bf16.xpose.msra.mxu0 0
        %2502 = vmatprep.subr.bf16.mxu0 0
        %2503 = vmatpush1.bf16.xpose.msra.mxu0 0
        %2504 = vmatprep.subr.bf16.mxu0 0
        %2505 = vmatpush1.bf16.xpose.msra.mxu0 0
        %2506 = vmatprep.mubr.bf16.mxu0 0
        %2507 = vmatmul.mubr.bf16.gmra.mrb[0].mxu0 %v2425
        %v2508 = vpop.f32.mrb[0].mxu0
        %v2509 = vadd.f32 0.0, %v2508
        %v2510 = vpop.f32.mrb[0].mxu0
        %v2511 = vpop.f32.mrb[0].mxu0
        %v2512 = vadd.f32 0.0, %v2511
        %v2513 = vpop.f32.mrb[0].mxu0
        %2514 = vdwg.mxu0
        %v2515 = vsel %vm1155, %v2465, -inf
        %2516 = vmax.xlane.f32.xlu0 %v2515
        %v2517 = vpop.xlane.xlu0 %2516
        %v2518 = vsel %vm1155, %v2468, -inf
        %2519 = vmax.xlane.f32.xlu0 %v2518
        %v2520 = vpop.xlane.xlu0 %2519
        %v2521 = vsel %vm1155, %v2509, -inf
        %2522 = vmax.xlane.f32.xlu0 %v2521
        %v2523 = vpop.xlane.xlu0 %2522
        %v2524 = vsel %vm1155, %v2512, -inf
        %2525 = vmax.xlane.f32.xlu0 %v2524
        %v2526 = vpop.xlane.xlu0 %2525
        %v2527 = vmax.f32 %v2517, %v2523
        %v2528 = vmax.f32 %v2520, %v2526
        %v2529 = vsub.f32 %v2465, %v2527
        %v2530 = vsub.f32 %v2468, %v2528
        %v2531 = vmul.f32 %v2529, 1.442695
        %v2532 = vpow.pop %v2531
        %v2533 = vmul.f32 %v2530, 1.442695
        %v2534 = vpow.pop %v2533
        %v2535 = vsub.f32 %v2509, %v2527
        %v2536 = vsub.f32 %v2512, %v2528
        %v2537 = vmul.f32 %v2535, 1.442695
        %v2538 = vpow.pop %v2537
        %v2539 = vmul.f32 %v2536, 1.442695
        %v2540 = vpow.pop %v2539
        %v2541 = vsel %vm1155, %v2532, 0.0
        %2542 = vadd.xlane.f32.xlu0 %v2541
        %v2543 = vpop.xlane.xlu0 %2542
        %v2544 = vsel %vm1155, %v2534, 0.0
        %2545 = vadd.xlane.f32.xlu0 %v2544
        %v2546 = vpop.xlane.xlu0 %2545
        %v2547 = vsel %vm1155, %v2538, 0.0
        %2548 = vadd.xlane.f32.xlu0 %v2547
        %v2549 = vpop.xlane.xlu0 %2548
        %v2550 = vsel %vm1155, %v2540, 0.0
        %2551 = vadd.xlane.f32.xlu0 %v2550
        %v2552 = vpop.xlane.xlu0 %2551
        %v2553 = vadd.f32 %v2543, %v2549
        %v2554 = vadd.f32 %v2546, %v2552
        %v2555 = vpack.c.bf16 %v2534, %v2532
        %v2556 = vpack.c.bf16 %v2540, %v2538
        %2558 = vrot.lane.b32.xlu0 %v2423, 64
        %v2559 = vpop.permute.xlu0 %2558
        %v2562 = vsel %vm1155, %v2556, 0
        %2564 = vmatprep.subr.bf16.mxu0 0
        %2565 = vmatpush1.bf16.msra.mxu0 %v2559
        %2566 = vmatprep.subr.bf16.mxu0 0
        %2567 = vmatpush1.bf16.msra.mxu0 0
        %2568 = vmatprep.subr.bf16.mxu0 0
        %2569 = vmatpush1.bf16.msra.mxu0 0
        %2570 = vmatprep.subr.bf16.mxu0 0
        %2571 = vmatpush1.bf16.msra.mxu0 0
        %2572 = vmatprep.subr.bf16.mxu0 0
        %2573 = vmatpush1.bf16.msra.mxu0 0
        %2574 = vmatprep.subr.bf16.mxu0 0
        %2575 = vmatpush1.bf16.msra.mxu0 0
        %2576 = vmatprep.subr.bf16.mxu0 0
        %2577 = vmatpush1.bf16.msra.mxu0 0
        %2578 = vmatprep.subr.bf16.mxu0 0
        %2579 = vmatpush1.bf16.msra.mxu0 0
        %2580 = vmatprep.subr.bf16.mxu0 0
        %2581 = vmatpush1.bf16.msra.mxu0 0
        %2582 = vmatprep.subr.bf16.mxu0 0
        %2583 = vmatpush1.bf16.msra.mxu0 0
        %2584 = vmatprep.subr.bf16.mxu0 0
        %2585 = vmatpush1.bf16.msra.mxu0 0
        %2586 = vmatprep.subr.bf16.mxu0 0
        %2587 = vmatpush1.bf16.msra.mxu0 0
        %2588 = vmatprep.subr.bf16.mxu0 0
        %2589 = vmatpush1.bf16.msra.mxu0 0
        %2590 = vmatprep.subr.bf16.mxu0 0
        %2591 = vmatpush1.bf16.msra.mxu0 0
        %2592 = vmatprep.subr.bf16.mxu0 0
        %2593 = vmatpush1.bf16.msra.mxu0 0
        %2594 = vmatprep.subr.bf16.mxu0 0
        %2595 = vmatpush1.bf16.msra.mxu0 0
        %2596 = vmatprep.mubr.bf16.mxu0 0
        %2597 = vmatmul.mubr.bf16.gmra.mrb[0].mxu0 %v2562
        %v2598 = vpop.f32.mrb[0].mxu0
        %v2599 = vadd.f32 0.0, %v2598
        %v2600 = vpop.f32.mrb[0].mxu0
        %v2601 = vpop.f32.mrb[0].mxu0
        %v2602 = vadd.f32 0.0, %v2601
        %v2603 = vpop.f32.mrb[0].mxu0
        %2604 = vdwg.mxu0
        %2606 = vrot.lane.b32.xlu0 %v2377, 64
        %v2607 = vpop.permute.xlu0 %2606
        %v2610 = vsel %vm1155, %v2555, 0
        %2612 = vmatprep.subr.bf16.mxu0 0
        %2613 = vmatpush1.bf16.msra.mxu0 %v2607
        %2614 = vmatprep.subr.bf16.mxu0 0
        %2615 = vmatpush1.bf16.msra.mxu0 0
        %2616 = vmatprep.subr.bf16.mxu0 0
        %2617 = vmatpush1.bf16.msra.mxu0 0
        %2618 = vmatprep.subr.bf16.mxu0 0
        %2619 = vmatpush1.bf16.msra.mxu0 0
        %2620 = vmatprep.subr.bf16.mxu0 0
        %2621 = vmatpush1.bf16.msra.mxu0 0
        %2622 = vmatprep.subr.bf16.mxu0 0
        %2623 = vmatpush1.bf16.msra.mxu0 0
        %2624 = vmatprep.subr.bf16.mxu0 0
        %2625 = vmatpush1.bf16.msra.mxu0 0
        %2626 = vmatprep.subr.bf16.mxu0 0
        %2627 = vmatpush1.bf16.msra.mxu0 0
        %2628 = vmatprep.subr.bf16.mxu0 0
        %2629 = vmatpush1.bf16.msra.mxu0 0
        %2630 = vmatprep.subr.bf16.mxu0 0
        %2631 = vmatpush1.bf16.msra.mxu0 0
        %2632 = vmatprep.subr.bf16.mxu0 0
        %2633 = vmatpush1.bf16.msra.mxu0 0
        %2634 = vmatprep.subr.bf16.mxu0 0
        %2635 = vmatpush1.bf16.msra.mxu0 0
        %2636 = vmatprep.subr.bf16.mxu0 0
        %2637 = vmatpush1.bf16.msra.mxu0 0
        %2638 = vmatprep.subr.bf16.mxu0 0
        %2639 = vmatpush1.bf16.msra.mxu0 0
        %2640 = vmatprep.subr.bf16.mxu0 0
        %2641 = vmatpush1.bf16.msra.mxu0 0
        %2642 = vmatprep.subr.bf16.mxu0 0
        %2643 = vmatpush1.bf16.msra.mxu0 0
        %2644 = vmatprep.mubr.bf16.mxu0 0
        %2645 = vmatmul.mubr.bf16.gmra.mrb[0].mxu0 %v2610
        %v2646 = vpop.f32.mrb[0].mxu0
        %v2647 = vadd.f32 %v2599, %v2646
        %v2648 = vpop.f32.mrb[0].mxu0
        %v2649 = vpop.f32.mrb[0].mxu0
        %v2650 = vadd.f32 %v2602, %v2649
        %v2651 = vpop.f32.mrb[0].mxu0
        %2652 = vdwg.mxu0
        %v2653 = vrcp.pop %v2553
        %v2654 = vrcp.pop %v2554
        %v2655 = vmul.f32 %v2647, %v2653
        %v2656 = vmul.f32 %v2650, %v2654
        %2658 = vrot.lane.b32.xlu0 %v2303, 112
        %v2659 = vpop.permute.xlu0 %2658
        %2660 = vrot.lane.b32.xlu0 %v2377, 112
        %v2661 = vpop.permute.xlu0 %2660
        %v2663 = vsel %vm1155, %v2659, 0
        %v2666 = vsel %vm1155, %v2661, 0
        %2668 = vmatprep.subr.bf16.mxu0 0
        %2669 = vmatpush1.bf16.xpose.msra.mxu0 %v2666
        %2670 = vmatprep.subr.bf16.mxu0 0
        %2671 = vmatpush1.bf16.xpose.msra.mxu0 0
        %2672 = vmatprep.subr.bf16.mxu0 0
        %2673 = vmatpush1.bf16.xpose.msra.mxu0 0
        %2674 = vmatprep.subr.bf16.mxu0 0
        %2675 = vmatpush1.bf16.xpose.msra.mxu0 0
        %2676 = vmatprep.subr.bf16.mxu0 0
        %2677 = vmatpush1.bf16.xpose.msra.mxu0 0
        %2678 = vmatprep.subr.bf16.mxu0 0
        %2679 = vmatpush1.bf16.xpose.msra.mxu0 0
        %2680 = vmatprep.subr.bf16.mxu0 0
        %2681 = vmatpush1.bf16.xpose.msra.mxu0 0
        %2682 = vmatprep.subr.bf16.mxu0 0
        %2683 = vmatpush1.bf16.xpose.msra.mxu0 0
        %2684 = vmatprep.subr.bf16.mxu0 0
        %2685 = vmatpush1.bf16.xpose.msra.mxu0 0
        %2686 = vmatprep.subr.bf16.mxu0 0
        %2687 = vmatpush1.bf16.xpose.msra.mxu0 0
        %2688 = vmatprep.subr.bf16.mxu0 0
        %2689 = vmatpush1.bf16.xpose.msra.mxu0 0
        %2690 = vmatprep.subr.bf16.mxu0 0
        %2691 = vmatpush1.bf16.xpose.msra.mxu0 0
        %2692 = vmatprep.subr.bf16.mxu0 0
        %2693 = vmatpush1.bf16.xpose.msra.mxu0 0
        %2694 = vmatprep.subr.bf16.mxu0 0
        %2695 = vmatpush1.bf16.xpose.msra.mxu0 0
        %2696 = vmatprep.subr.bf16.mxu0 0
        %2697 = vmatpush1.bf16.xpose.msra.mxu0 0
        %2698 = vmatprep.subr.bf16.mxu0 0
        %2699 = vmatpush1.bf16.xpose.msra.mxu0 0
        %2700 = vmatprep.mubr.bf16.mxu0 0
        %2701 = vmatmul.mubr.bf16.gmra.mrb[0].mxu0 %v2663
        %v2702 = vpop.f32.mrb[0].mxu0
        %v2703 = vadd.f32 0.0, %v2702
        %v2704 = vpop.f32.mrb[0].mxu0
        %v2705 = vpop.f32.mrb[0].mxu0
        %v2706 = vadd.f32 0.0, %v2705
        %v2707 = vpop.f32.mrb[0].mxu0
        %2708 = vdwg.mxu0
        %2709 = vrot.lane.b32.xlu0 %v2423, 112
        %v2710 = vpop.permute.xlu0 %2709
        %v2712 = vsel %vm1155, %v2710, 0
        %2714 = vmatprep.subr.bf16.mxu0 0
        %2715 = vmatpush1.bf16.xpose.msra.mxu0 %v2712
        %2716 = vmatprep.subr.bf16.mxu0 0
        %2717 = vmatpush1.bf16.xpose.msra.mxu0 0
        %2718 = vmatprep.subr.bf16.mxu0 0
        %2719 = vmatpush1.bf16.xpose.msra.mxu0 0
        %2720 = vmatprep.subr.bf16.mxu0 0
        %2721 = vmatpush1.bf16.xpose.msra.mxu0 0
        %2722 = vmatprep.subr.bf16.mxu0 0
        %2723 = vmatpush1.bf16.xpose.msra.mxu0 0
        %2724 = vmatprep.subr.bf16.mxu0 0
        %2725 = vmatpush1.bf16.xpose.msra.mxu0 0
        %2726 = vmatprep.subr.bf16.mxu0 0
        %2727 = vmatpush1.bf16.xpose.msra.mxu0 0
        %2728 = vmatprep.subr.bf16.mxu0 0
        %2729 = vmatpush1.bf16.xpose.msra.mxu0 0
        %2730 = vmatprep.subr.bf16.mxu0 0
        %2731 = vmatpush1.bf16.xpose.msra.mxu0 0
        %2732 = vmatprep.subr.bf16.mxu0 0
        %2733 = vmatpush1.bf16.xpose.msra.mxu0 0
        %2734 = vmatprep.subr.bf16.mxu0 0
        %2735 = vmatpush1.bf16.xpose.msra.mxu0 0
        %2736 = vmatprep.subr.bf16.mxu0 0
        %2737 = vmatpush1.bf16.xpose.msra.mxu0 0
        %2738 = vmatprep.subr.bf16.mxu0 0
        %2739 = vmatpush1.bf16.xpose.msra.mxu0 0
        %2740 = vmatprep.subr.bf16.mxu0 0
        %2741 = vmatpush1.bf16.xpose.msra.mxu0 0
        %2742 = vmatprep.subr.bf16.mxu0 0
        %2743 = vmatpush1.bf16.xpose.msra.mxu0 0
        %2744 = vmatprep.subr.bf16.mxu0 0
        %2745 = vmatpush1.bf16.xpose.msra.mxu0 0
        %2746 = vmatprep.mubr.bf16.mxu0 0
        %2747 = vmatmul.mubr.bf16.gmra.mrb[0].mxu0 %v2663
        %v2748 = vpop.f32.mrb[0].mxu0
        %v2749 = vadd.f32 0.0, %v2748
        %v2750 = vpop.f32.mrb[0].mxu0
        %v2751 = vpop.f32.mrb[0].mxu0
        %v2752 = vadd.f32 0.0, %v2751
        %v2753 = vpop.f32.mrb[0].mxu0
        %2754 = vdwg.mxu0
        %v2755 = vsel %vm1155, %v2703, -inf
        %2756 = vmax.xlane.f32.xlu0 %v2755
        %v2757 = vpop.xlane.xlu0 %2756
        %v2758 = vsel %vm1155, %v2706, -inf
        %2759 = vmax.xlane.f32.xlu0 %v2758
        %v2760 = vpop.xlane.xlu0 %2759
        %v2761 = vsel %vm1155, %v2749, -inf
        %2762 = vmax.xlane.f32.xlu0 %v2761
        %v2763 = vpop.xlane.xlu0 %2762
        %v2764 = vsel %vm1155, %v2752, -inf
        %2765 = vmax.xlane.f32.xlu0 %v2764
        %v2766 = vpop.xlane.xlu0 %2765
        %v2767 = vmax.f32 %v2757, %v2763
        %v2768 = vmax.f32 %v2760, %v2766
        %v2769 = vsub.f32 %v2703, %v2767
        %v2770 = vsub.f32 %v2706, %v2768
        %v2771 = vmul.f32 %v2769, 1.442695
        %v2772 = vpow.pop %v2771
        %v2773 = vmul.f32 %v2770, 1.442695
        %v2774 = vpow.pop %v2773
        %v2775 = vsub.f32 %v2749, %v2767
        %v2776 = vsub.f32 %v2752, %v2768
        %v2777 = vmul.f32 %v2775, 1.442695
        %v2778 = vpow.pop %v2777
        %v2779 = vmul.f32 %v2776, 1.442695
        %v2780 = vpow.pop %v2779
        %v2781 = vsel %vm1155, %v2772, 0.0
        %2782 = vadd.xlane.f32.xlu0 %v2781
        %v2783 = vpop.xlane.xlu0 %2782
        %v2784 = vsel %vm1155, %v2774, 0.0
        %2785 = vadd.xlane.f32.xlu0 %v2784
        %v2786 = vpop.xlane.xlu0 %2785
        %v2787 = vsel %vm1155, %v2778, 0.0
        %2788 = vadd.xlane.f32.xlu0 %v2787
        %v2789 = vpop.xlane.xlu0 %2788
        %v2790 = vsel %vm1155, %v2780, 0.0
        %2791 = vadd.xlane.f32.xlu0 %v2790
        %v2792 = vpop.xlane.xlu0 %2791
        %v2793 = vadd.f32 %v2783, %v2789
        %v2794 = vadd.f32 %v2786, %v2792
        %v2795 = vpack.c.bf16 %v2774, %v2772
        %v2796 = vpack.c.bf16 %v2780, %v2778
        %2797 = vrot.lane.b32.xlu0 %v2423, 48
        %v2798 = vpop.permute.xlu0 %2797
        %v2801 = vsel %vm1155, %v2796, 0
        %2803 = vmatprep.subr.bf16.mxu0 0
        %2804 = vmatpush1.bf16.msra.mxu0 %v2798
        %2805 = vmatprep.subr.bf16.mxu0 0
        %2806 = vmatpush1.bf16.msra.mxu0 0
        %2807 = vmatprep.subr.bf16.mxu0 0
        %2808 = vmatpush1.bf16.msra.mxu0 0
        %2809 = vmatprep.subr.bf16.mxu0 0
        %2810 = vmatpush1.bf16.msra.mxu0 0
        %2811 = vmatprep.subr.bf16.mxu0 0
        %2812 = vmatpush1.bf16.msra.mxu0 0
        %2813 = vmatprep.subr.bf16.mxu0 0
        %2814 = vmatpush1.bf16.msra.mxu0 0
        %2815 = vmatprep.subr.bf16.mxu0 0
        %2816 = vmatpush1.bf16.msra.mxu0 0
        %2817 = vmatprep.subr.bf16.mxu0 0
        %2818 = vmatpush1.bf16.msra.mxu0 0
        %2819 = vmatprep.subr.bf16.mxu0 0
        %2820 = vmatpush1.bf16.msra.mxu0 0
        %2821 = vmatprep.subr.bf16.mxu0 0
        %2822 = vmatpush1.bf16.msra.mxu0 0
        %2823 = vmatprep.subr.bf16.mxu0 0
        %2824 = vmatpush1.bf16.msra.mxu0 0
        %2825 = vmatprep.subr.bf16.mxu0 0
        %2826 = vmatpush1.bf16.msra.mxu0 0
        %2827 = vmatprep.subr.bf16.mxu0 0
        %2828 = vmatpush1.bf16.msra.mxu0 0
        %2829 = vmatprep.subr.bf16.mxu0 0
        %2830 = vmatpush1.bf16.msra.mxu0 0
        %2831 = vmatprep.subr.bf16.mxu0 0
        %2832 = vmatpush1.bf16.msra.mxu0 0
        %2833 = vmatprep.subr.bf16.mxu0 0
        %2834 = vmatpush1.bf16.msra.mxu0 0
        %2835 = vmatprep.mubr.bf16.mxu0 0
        %2836 = vmatmul.mubr.bf16.gmra.mrb[0].mxu0 %v2801
        %v2837 = vpop.f32.mrb[0].mxu0
        %v2838 = vadd.f32 0.0, %v2837
        %v2839 = vpop.f32.mrb[0].mxu0
        %v2840 = vpop.f32.mrb[0].mxu0
        %v2841 = vadd.f32 0.0, %v2840
        %v2842 = vpop.f32.mrb[0].mxu0
        %2843 = vdwg.mxu0
        %2844 = vrot.lane.b32.xlu0 %v2377, 48
        %v2845 = vpop.permute.xlu0 %2844
        %v2848 = vsel %vm1155, %v2795, 0
        %2850 = vmatprep.subr.bf16.mxu0 0
        %2851 = vmatpush1.bf16.msra.mxu0 %v2845
        %2852 = vmatprep.subr.bf16.mxu0 0
        %2853 = vmatpush1.bf16.msra.mxu0 0
        %2854 = vmatprep.subr.bf16.mxu0 0
        %2855 = vmatpush1.bf16.msra.mxu0 0
        %2856 = vmatprep.subr.bf16.mxu0 0
        %2857 = vmatpush1.bf16.msra.mxu0 0
        %2858 = vmatprep.subr.bf16.mxu0 0
        %2859 = vmatpush1.bf16.msra.mxu0 0
        %2860 = vmatprep.subr.bf16.mxu0 0
        %2861 = vmatpush1.bf16.msra.mxu0 0
        %2862 = vmatprep.subr.bf16.mxu0 0
        %2863 = vmatpush1.bf16.msra.mxu0 0
        %2864 = vmatprep.subr.bf16.mxu0 0
        %2865 = vmatpush1.bf16.msra.mxu0 0
        %2866 = vmatprep.subr.bf16.mxu0 0
        %2867 = vmatpush1.bf16.msra.mxu0 0
        %2868 = vmatprep.subr.bf16.mxu0 0
        %2869 = vmatpush1.bf16.msra.mxu0 0
        %2870 = vmatprep.subr.bf16.mxu0 0
        %2871 = vmatpush1.bf16.msra.mxu0 0
        %2872 = vmatprep.subr.bf16.mxu0 0
        %2873 = vmatpush1.bf16.msra.mxu0 0
        %2874 = vmatprep.subr.bf16.mxu0 0
        %2875 = vmatpush1.bf16.msra.mxu0 0
        %2876 = vmatprep.subr.bf16.mxu0 0
        %2877 = vmatpush1.bf16.msra.mxu0 0
        %2878 = vmatprep.subr.bf16.mxu0 0
        %2879 = vmatpush1.bf16.msra.mxu0 0
        %2880 = vmatprep.subr.bf16.mxu0 0
        %2881 = vmatpush1.bf16.msra.mxu0 0
        %2882 = vmatprep.mubr.bf16.mxu0 0
        %2883 = vmatmul.mubr.bf16.gmra.mrb[0].mxu0 %v2848
        %v2884 = vpop.f32.mrb[0].mxu0
        %v2885 = vadd.f32 %v2838, %v2884
        %v2886 = vpop.f32.mrb[0].mxu0
        %v2887 = vpop.f32.mrb[0].mxu0
        %v2888 = vadd.f32 %v2841, %v2887
        %v2889 = vpop.f32.mrb[0].mxu0
        %2890 = vdwg.mxu0
        %v2891 = vrcp.pop %v2793
        %v2892 = vrcp.pop %v2794
        %v2893 = vmul.f32 %v2885, %v2891
        %v2894 = vmul.f32 %v2888, %v2892
        %2895 = vrot.lane.b32.xlu0 %v2303, 96
        %v2896 = vpop.permute.xlu0 %2895
        %2897 = vrot.lane.b32.xlu0 %v2377, 96
        %v2898 = vpop.permute.xlu0 %2897
        %v2900 = vsel %vm1155, %v2896, 0
        %v2903 = vsel %vm1155, %v2898, 0
        %2905 = vmatprep.subr.bf16.mxu0 0
        %2906 = vmatpush1.bf16.xpose.msra.mxu0 %v2903
        %2907 = vmatprep.subr.bf16.mxu0 0
        %2908 = vmatpush1.bf16.xpose.msra.mxu0 0
        %2909 = vmatprep.subr.bf16.mxu0 0
        %2910 = vmatpush1.bf16.xpose.msra.mxu0 0
        %2911 = vmatprep.subr.bf16.mxu0 0
        %2912 = vmatpush1.bf16.xpose.msra.mxu0 0
        %2913 = vmatprep.subr.bf16.mxu0 0
        %2914 = vmatpush1.bf16.xpose.msra.mxu0 0
        %2915 = vmatprep.subr.bf16.mxu0 0
        %2916 = vmatpush1.bf16.xpose.msra.mxu0 0
        %2917 = vmatprep.subr.bf16.mxu0 0
        %2918 = vmatpush1.bf16.xpose.msra.mxu0 0
        %2919 = vmatprep.subr.bf16.mxu0 0
        %2920 = vmatpush1.bf16.xpose.msra.mxu0 0
        %2921 = vmatprep.subr.bf16.mxu0 0
        %2922 = vmatpush1.bf16.xpose.msra.mxu0 0
        %2923 = vmatprep.subr.bf16.mxu0 0
        %2924 = vmatpush1.bf16.xpose.msra.mxu0 0
        %2925 = vmatprep.subr.bf16.mxu0 0
        %2926 = vmatpush1.bf16.xpose.msra.mxu0 0
        %2927 = vmatprep.subr.bf16.mxu0 0
        %2928 = vmatpush1.bf16.xpose.msra.mxu0 0
        %2929 = vmatprep.subr.bf16.mxu0 0
        %2930 = vmatpush1.bf16.xpose.msra.mxu0 0
        %2931 = vmatprep.subr.bf16.mxu0 0
        %2932 = vmatpush1.bf16.xpose.msra.mxu0 0
        %2933 = vmatprep.subr.bf16.mxu0 0
        %2934 = vmatpush1.bf16.xpose.msra.mxu0 0
        %2935 = vmatprep.subr.bf16.mxu0 0
        %2936 = vmatpush1.bf16.xpose.msra.mxu0 0
        %2937 = vmatprep.mubr.bf16.mxu0 0
        %2938 = vmatmul.mubr.bf16.gmra.mrb[0].mxu0 %v2900
        %v2939 = vpop.f32.mrb[0].mxu0
        %v2940 = vadd.f32 0.0, %v2939
        %v2941 = vpop.f32.mrb[0].mxu0
        %v2942 = vpop.f32.mrb[0].mxu0
        %v2943 = vadd.f32 0.0, %v2942
        %v2944 = vpop.f32.mrb[0].mxu0
        %2945 = vdwg.mxu0
        %2946 = vrot.lane.b32.xlu0 %v2423, 96
        %v2947 = vpop.permute.xlu0 %2946
        %v2949 = vsel %vm1155, %v2947, 0
        %2951 = vmatprep.subr.bf16.mxu0 0
        %2952 = vmatpush1.bf16.xpose.msra.mxu0 %v2949
        %2953 = vmatprep.subr.bf16.mxu0 0
        %2954 = vmatpush1.bf16.xpose.msra.mxu0 0
        %2955 = vmatprep.subr.bf16.mxu0 0
        %2956 = vmatpush1.bf16.xpose.msra.mxu0 0
        %2957 = vmatprep.subr.bf16.mxu0 0
        %2958 = vmatpush1.bf16.xpose.msra.mxu0 0
        %2959 = vmatprep.subr.bf16.mxu0 0
        %2960 = vmatpush1.bf16.xpose.msra.mxu0 0
        %2961 = vmatprep.subr.bf16.mxu0 0
        %2962 = vmatpush1.bf16.xpose.msra.mxu0 0
        %2963 = vmatprep.subr.bf16.mxu0 0
        %2964 = vmatpush1.bf16.xpose.msra.mxu0 0
        %2965 = vmatprep.subr.bf16.mxu0 0
        %2966 = vmatpush1.bf16.xpose.msra.mxu0 0
        %2967 = vmatprep.subr.bf16.mxu0 0
        %2968 = vmatpush1.bf16.xpose.msra.mxu0 0
        %2969 = vmatprep.subr.bf16.mxu0 0
        %2970 = vmatpush1.bf16.xpose.msra.mxu0 0
        %2971 = vmatprep.subr.bf16.mxu0 0
        %2972 = vmatpush1.bf16.xpose.msra.mxu0 0
        %2973 = vmatprep.subr.bf16.mxu0 0
        %2974 = vmatpush1.bf16.xpose.msra.mxu0 0
        %2975 = vmatprep.subr.bf16.mxu0 0
        %2976 = vmatpush1.bf16.xpose.msra.mxu0 0
        %2977 = vmatprep.subr.bf16.mxu0 0
        %2978 = vmatpush1.bf16.xpose.msra.mxu0 0
        %2979 = vmatprep.subr.bf16.mxu0 0
        %2980 = vmatpush1.bf16.xpose.msra.mxu0 0
        %2981 = vmatprep.subr.bf16.mxu0 0
        %2982 = vmatpush1.bf16.xpose.msra.mxu0 0
        %2983 = vmatprep.mubr.bf16.mxu0 0
        %2984 = vmatmul.mubr.bf16.gmra.mrb[0].mxu0 %v2900
        %v2985 = vpop.f32.mrb[0].mxu0
        %v2986 = vadd.f32 0.0, %v2985
        %v2987 = vpop.f32.mrb[0].mxu0
        %v2988 = vpop.f32.mrb[0].mxu0
        %v2989 = vadd.f32 0.0, %v2988
        %v2990 = vpop.f32.mrb[0].mxu0
        %2991 = vdwg.mxu0
        %v2992 = vsel %vm1155, %v2940, -inf
        %2993 = vmax.xlane.f32.xlu0 %v2992
        %v2994 = vpop.xlane.xlu0 %2993
        %v2995 = vsel %vm1155, %v2943, -inf
        %2996 = vmax.xlane.f32.xlu0 %v2995
        %v2997 = vpop.xlane.xlu0 %2996
        %v2998 = vsel %vm1155, %v2986, -inf
        %2999 = vmax.xlane.f32.xlu0 %v2998
        %v3000 = vpop.xlane.xlu0 %2999
        %v3001 = vsel %vm1155, %v2989, -inf
        %3002 = vmax.xlane.f32.xlu0 %v3001
        %v3003 = vpop.xlane.xlu0 %3002
        %v3004 = vmax.f32 %v2994, %v3000
        %v3005 = vmax.f32 %v2997, %v3003
        %v3006 = vsub.f32 %v2940, %v3004
        %v3007 = vsub.f32 %v2943, %v3005
        %v3008 = vmul.f32 %v3006, 1.442695
        %v3009 = vpow.pop %v3008
        %v3010 = vmul.f32 %v3007, 1.442695
        %v3011 = vpow.pop %v3010
        %v3012 = vsub.f32 %v2986, %v3004
        %v3013 = vsub.f32 %v2989, %v3005
        %v3014 = vmul.f32 %v3012, 1.442695
        %v3015 = vpow.pop %v3014
        %v3016 = vmul.f32 %v3013, 1.442695
        %v3017 = vpow.pop %v3016
        %v3018 = vsel %vm1155, %v3009, 0.0
        %3019 = vadd.xlane.f32.xlu0 %v3018
        %v3020 = vpop.xlane.xlu0 %3019
        %v3021 = vsel %vm1155, %v3011, 0.0
        %3022 = vadd.xlane.f32.xlu0 %v3021
        %v3023 = vpop.xlane.xlu0 %3022
        %v3024 = vsel %vm1155, %v3015, 0.0
        %3025 = vadd.xlane.f32.xlu0 %v3024
        %v3026 = vpop.xlane.xlu0 %3025
        %v3027 = vsel %vm1155, %v3017, 0.0
        %3028 = vadd.xlane.f32.xlu0 %v3027
        %v3029 = vpop.xlane.xlu0 %3028
        %v3030 = vadd.f32 %v3020, %v3026
        %v3031 = vadd.f32 %v3023, %v3029
        %v3032 = vpack.c.bf16 %v3011, %v3009
        %v3033 = vpack.c.bf16 %v3017, %v3015
        %3034 = vrot.lane.b32.xlu0 %v2423, 32
        %v3035 = vpop.permute.xlu0 %3034
        %v3038 = vsel %vm1155, %v3033, 0
        %3040 = vmatprep.subr.bf16.mxu0 0
        %3041 = vmatpush1.bf16.msra.mxu0 %v3035
        %3042 = vmatprep.subr.bf16.mxu0 0
        %3043 = vmatpush1.bf16.msra.mxu0 0
        %3044 = vmatprep.subr.bf16.mxu0 0
        %3045 = vmatpush1.bf16.msra.mxu0 0
        %3046 = vmatprep.subr.bf16.mxu0 0
        %3047 = vmatpush1.bf16.msra.mxu0 0
        %3048 = vmatprep.subr.bf16.mxu0 0
        %3049 = vmatpush1.bf16.msra.mxu0 0
        %3050 = vmatprep.subr.bf16.mxu0 0
        %3051 = vmatpush1.bf16.msra.mxu0 0
        %3052 = vmatprep.subr.bf16.mxu0 0
        %3053 = vmatpush1.bf16.msra.mxu0 0
        %3054 = vmatprep.subr.bf16.mxu0 0
        %3055 = vmatpush1.bf16.msra.mxu0 0
        %3056 = vmatprep.subr.bf16.mxu0 0
        %3057 = vmatpush1.bf16.msra.mxu0 0
        %3058 = vmatprep.subr.bf16.mxu0 0
        %3059 = vmatpush1.bf16.msra.mxu0 0
        %3060 = vmatprep.subr.bf16.mxu0 0
        %3061 = vmatpush1.bf16.msra.mxu0 0
        %3062 = vmatprep.subr.bf16.mxu0 0
        %3063 = vmatpush1.bf16.msra.mxu0 0
        %3064 = vmatprep.subr.bf16.mxu0 0
        %3065 = vmatpush1.bf16.msra.mxu0 0
        %3066 = vmatprep.subr.bf16.mxu0 0
        %3067 = vmatpush1.bf16.msra.mxu0 0
        %3068 = vmatprep.subr.bf16.mxu0 0
        %3069 = vmatpush1.bf16.msra.mxu0 0
        %3070 = vmatprep.subr.bf16.mxu0 0
        %3071 = vmatpush1.bf16.msra.mxu0 0
        %3072 = vmatprep.mubr.bf16.mxu0 0
        %3073 = vmatmul.mubr.bf16.gmra.mrb[0].mxu0 %v3038
        %v3074 = vpop.f32.mrb[0].mxu0
        %v3075 = vadd.f32 0.0, %v3074
        %v3076 = vpop.f32.mrb[0].mxu0
        %v3077 = vpop.f32.mrb[0].mxu0
        %v3078 = vadd.f32 0.0, %v3077
        %v3079 = vpop.f32.mrb[0].mxu0
        %3080 = vdwg.mxu0
        %3081 = vrot.lane.b32.xlu0 %v2377, 32
        %v3082 = vpop.permute.xlu0 %3081
        %v3085 = vsel %vm1155, %v3032, 0
        %3087 = vmatprep.subr.bf16.mxu0 0
        %3088 = vmatpush1.bf16.msra.mxu0 %v3082
        %3089 = vmatprep.subr.bf16.mxu0 0
        %3090 = vmatpush1.bf16.msra.mxu0 0
        %3091 = vmatprep.subr.bf16.mxu0 0
        %3092 = vmatpush1.bf16.msra.mxu0 0
        %3093 = vmatprep.subr.bf16.mxu0 0
        %3094 = vmatpush1.bf16.msra.mxu0 0
        %3095 = vmatprep.subr.bf16.mxu0 0
        %3096 = vmatpush1.bf16.msra.mxu0 0
        %3097 = vmatprep.subr.bf16.mxu0 0
        %3098 = vmatpush1.bf16.msra.mxu0 0
        %3099 = vmatprep.subr.bf16.mxu0 0
        %3100 = vmatpush1.bf16.msra.mxu0 0
        %3101 = vmatprep.subr.bf16.mxu0 0
        %3102 = vmatpush1.bf16.msra.mxu0 0
        %3103 = vmatprep.subr.bf16.mxu0 0
        %3104 = vmatpush1.bf16.msra.mxu0 0
        %3105 = vmatprep.subr.bf16.mxu0 0
        %3106 = vmatpush1.bf16.msra.mxu0 0
        %3107 = vmatprep.subr.bf16.mxu0 0
        %3108 = vmatpush1.bf16.msra.mxu0 0
        %3109 = vmatprep.subr.bf16.mxu0 0
        %3110 = vmatpush1.bf16.msra.mxu0 0
        %3111 = vmatprep.subr.bf16.mxu0 0
        %3112 = vmatpush1.bf16.msra.mxu0 0
        %3113 = vmatprep.subr.bf16.mxu0 0
        %3114 = vmatpush1.bf16.msra.mxu0 0
        %3115 = vmatprep.subr.bf16.mxu0 0
        %3116 = vmatpush1.bf16.msra.mxu0 0
        %3117 = vmatprep.subr.bf16.mxu0 0
        %3118 = vmatpush1.bf16.msra.mxu0 0
        %3119 = vmatprep.mubr.bf16.mxu0 0
        %3120 = vmatmul.mubr.bf16.gmra.mrb[0].mxu0 %v3085
        %v3121 = vpop.f32.mrb[0].mxu0
        %v3122 = vadd.f32 %v3075, %v3121
        %v3123 = vpop.f32.mrb[0].mxu0
        %v3124 = vpop.f32.mrb[0].mxu0
        %v3125 = vadd.f32 %v3078, %v3124
        %v3126 = vpop.f32.mrb[0].mxu0
        %3127 = vdwg.mxu0
        %v3128 = vrcp.pop %v3030
        %v3129 = vrcp.pop %v3031
        %v3130 = vmul.f32 %v3122, %v3128
        %v3131 = vmul.f32 %v3125, %v3129
        %3132 = vrot.lane.b32.xlu0 %v2303, 80
        %v3133 = vpop.permute.xlu0 %3132
        %3134 = vrot.lane.b32.xlu0 %v2377, 80
        %v3135 = vpop.permute.xlu0 %3134
        %v3137 = vsel %vm1155, %v3133, 0
        %v3140 = vsel %vm1155, %v3135, 0
        %3142 = vmatprep.subr.bf16.mxu0 0
        %3143 = vmatpush1.bf16.xpose.msra.mxu0 %v3140
        %3144 = vmatprep.subr.bf16.mxu0 0
        %3145 = vmatpush1.bf16.xpose.msra.mxu0 0
        %3146 = vmatprep.subr.bf16.mxu0 0
        %3147 = vmatpush1.bf16.xpose.msra.mxu0 0
        %3148 = vmatprep.subr.bf16.mxu0 0
        %3149 = vmatpush1.bf16.xpose.msra.mxu0 0
        %3150 = vmatprep.subr.bf16.mxu0 0
        %3151 = vmatpush1.bf16.xpose.msra.mxu0 0
        %3152 = vmatprep.subr.bf16.mxu0 0
        %3153 = vmatpush1.bf16.xpose.msra.mxu0 0
        %3154 = vmatprep.subr.bf16.mxu0 0
        %3155 = vmatpush1.bf16.xpose.msra.mxu0 0
        %3156 = vmatprep.subr.bf16.mxu0 0
        %3157 = vmatpush1.bf16.xpose.msra.mxu0 0
        %3158 = vmatprep.subr.bf16.mxu0 0
        %3159 = vmatpush1.bf16.xpose.msra.mxu0 0
        %3160 = vmatprep.subr.bf16.mxu0 0
        %3161 = vmatpush1.bf16.xpose.msra.mxu0 0
        %3162 = vmatprep.subr.bf16.mxu0 0
        %3163 = vmatpush1.bf16.xpose.msra.mxu0 0
        %3164 = vmatprep.subr.bf16.mxu0 0
        %3165 = vmatpush1.bf16.xpose.msra.mxu0 0
        %3166 = vmatprep.subr.bf16.mxu0 0
        %3167 = vmatpush1.bf16.xpose.msra.mxu0 0
        %3168 = vmatprep.subr.bf16.mxu0 0
        %3169 = vmatpush1.bf16.xpose.msra.mxu0 0
        %3170 = vmatprep.subr.bf16.mxu0 0
        %3171 = vmatpush1.bf16.xpose.msra.mxu0 0
        %3172 = vmatprep.subr.bf16.mxu0 0
        %3173 = vmatpush1.bf16.xpose.msra.mxu0 0
        %3174 = vmatprep.mubr.bf16.mxu0 0
        %3175 = vmatmul.mubr.bf16.gmra.mrb[0].mxu0 %v3137
        %v3176 = vpop.f32.mrb[0].mxu0
        %v3177 = vadd.f32 0.0, %v3176
        %v3178 = vpop.f32.mrb[0].mxu0
        %v3179 = vpop.f32.mrb[0].mxu0
        %v3180 = vadd.f32 0.0, %v3179
        %v3181 = vpop.f32.mrb[0].mxu0
        %3182 = vdwg.mxu0
        %3183 = vrot.lane.b32.xlu0 %v2423, 80
        %v3184 = vpop.permute.xlu0 %3183
        %v3186 = vsel %vm1155, %v3184, 0
        %3188 = vmatprep.subr.bf16.mxu0 0
        %3189 = vmatpush1.bf16.xpose.msra.mxu0 %v3186
        %3190 = vmatprep.subr.bf16.mxu0 0
        %3191 = vmatpush1.bf16.xpose.msra.mxu0 0
        %3192 = vmatprep.subr.bf16.mxu0 0
        %3193 = vmatpush1.bf16.xpose.msra.mxu0 0
        %3194 = vmatprep.subr.bf16.mxu0 0
        %3195 = vmatpush1.bf16.xpose.msra.mxu0 0
        %3196 = vmatprep.subr.bf16.mxu0 0
        %3197 = vmatpush1.bf16.xpose.msra.mxu0 0
        %3198 = vmatprep.subr.bf16.mxu0 0
        %3199 = vmatpush1.bf16.xpose.msra.mxu0 0
        %3200 = vmatprep.subr.bf16.mxu0 0
        %3201 = vmatpush1.bf16.xpose.msra.mxu0 0
        %3202 = vmatprep.subr.bf16.mxu0 0
        %3203 = vmatpush1.bf16.xpose.msra.mxu0 0
        %3204 = vmatprep.subr.bf16.mxu0 0
        %3205 = vmatpush1.bf16.xpose.msra.mxu0 0
        %3206 = vmatprep.subr.bf16.mxu0 0
        %3207 = vmatpush1.bf16.xpose.msra.mxu0 0
        %3208 = vmatprep.subr.bf16.mxu0 0
        %3209 = vmatpush1.bf16.xpose.msra.mxu0 0
        %3210 = vmatprep.subr.bf16.mxu0 0
        %3211 = vmatpush1.bf16.xpose.msra.mxu0 0
        %3212 = vmatprep.subr.bf16.mxu0 0
        %3213 = vmatpush1.bf16.xpose.msra.mxu0 0
        %3214 = vmatprep.subr.bf16.mxu0 0
        %3215 = vmatpush1.bf16.xpose.msra.mxu0 0
        %3216 = vmatprep.subr.bf16.mxu0 0
        %3217 = vmatpush1.bf16.xpose.msra.mxu0 0
        %3218 = vmatprep.subr.bf16.mxu0 0
        %3219 = vmatpush1.bf16.xpose.msra.mxu0 0
        %3220 = vmatprep.mubr.bf16.mxu0 0
        %3221 = vmatmul.mubr.bf16.gmra.mrb[0].mxu0 %v3137
        %v3222 = vpop.f32.mrb[0].mxu0
        %v3223 = vadd.f32 0.0, %v3222
        %v3224 = vpop.f32.mrb[0].mxu0
        %v3225 = vpop.f32.mrb[0].mxu0
        %v3226 = vadd.f32 0.0, %v3225
        %v3227 = vpop.f32.mrb[0].mxu0
        %3228 = vdwg.mxu0
        %v3229 = vsel %vm1155, %v3177, -inf
        %3230 = vmax.xlane.f32.xlu0 %v3229
        %v3231 = vpop.xlane.xlu0 %3230
        %v3232 = vsel %vm1155, %v3180, -inf
        %3233 = vmax.xlane.f32.xlu0 %v3232
        %v3234 = vpop.xlane.xlu0 %3233
        %v3235 = vsel %vm1155, %v3223, -inf
        %3236 = vmax.xlane.f32.xlu0 %v3235
        %v3237 = vpop.xlane.xlu0 %3236
        %v3238 = vsel %vm1155, %v3226, -inf
        %3239 = vmax.xlane.f32.xlu0 %v3238
        %v3240 = vpop.xlane.xlu0 %3239
        %v3241 = vmax.f32 %v3231, %v3237
        %v3242 = vmax.f32 %v3234, %v3240
        %v3243 = vsub.f32 %v3177, %v3241
        %v3244 = vsub.f32 %v3180, %v3242
        %v3245 = vmul.f32 %v3243, 1.442695
        %v3246 = vpow.pop %v3245
        %v3247 = vmul.f32 %v3244, 1.442695
        %v3248 = vpow.pop %v3247
        %v3249 = vsub.f32 %v3223, %v3241
        %v3250 = vsub.f32 %v3226, %v3242
        %v3251 = vmul.f32 %v3249, 1.442695
        %v3252 = vpow.pop %v3251
        %v3253 = vmul.f32 %v3250, 1.442695
        %v3254 = vpow.pop %v3253
        %v3255 = vsel %vm1155, %v3246, 0.0
        %3256 = vadd.xlane.f32.xlu0 %v3255
        %v3257 = vpop.xlane.xlu0 %3256
        %v3258 = vsel %vm1155, %v3248, 0.0
        %3259 = vadd.xlane.f32.xlu0 %v3258
        %v3260 = vpop.xlane.xlu0 %3259
        %v3261 = vsel %vm1155, %v3252, 0.0
        %3262 = vadd.xlane.f32.xlu0 %v3261
        %v3263 = vpop.xlane.xlu0 %3262
        %v3264 = vsel %vm1155, %v3254, 0.0
        %3265 = vadd.xlane.f32.xlu0 %v3264
        %v3266 = vpop.xlane.xlu0 %3265
        %v3267 = vadd.f32 %v3257, %v3263
        %v3268 = vadd.f32 %v3260, %v3266
        %v3269 = vpack.c.bf16 %v3248, %v3246
        %v3270 = vpack.c.bf16 %v3254, %v3252
        %3271 = vrot.lane.b32.xlu0 %v2423, 16
        %v3272 = vpop.permute.xlu0 %3271
        %v3275 = vsel %vm1155, %v3270, 0
        %3277 = vmatprep.subr.bf16.mxu0 0
        %3278 = vmatpush1.bf16.msra.mxu0 %v3272
        %3279 = vmatprep.subr.bf16.mxu0 0
        %3280 = vmatpush1.bf16.msra.mxu0 0
        %3281 = vmatprep.subr.bf16.mxu0 0
        %3282 = vmatpush1.bf16.msra.mxu0 0
        %3283 = vmatprep.subr.bf16.mxu0 0
        %3284 = vmatpush1.bf16.msra.mxu0 0
        %3285 = vmatprep.subr.bf16.mxu0 0
        %3286 = vmatpush1.bf16.msra.mxu0 0
        %3287 = vmatprep.subr.bf16.mxu0 0
        %3288 = vmatpush1.bf16.msra.mxu0 0
        %3289 = vmatprep.subr.bf16.mxu0 0
        %3290 = vmatpush1.bf16.msra.mxu0 0
        %3291 = vmatprep.subr.bf16.mxu0 0
        %3292 = vmatpush1.bf16.msra.mxu0 0
        %3293 = vmatprep.subr.bf16.mxu0 0
        %3294 = vmatpush1.bf16.msra.mxu0 0
        %3295 = vmatprep.subr.bf16.mxu0 0
        %3296 = vmatpush1.bf16.msra.mxu0 0
        %3297 = vmatprep.subr.bf16.mxu0 0
        %3298 = vmatpush1.bf16.msra.mxu0 0
        %3299 = vmatprep.subr.bf16.mxu0 0
        %3300 = vmatpush1.bf16.msra.mxu0 0
        %3301 = vmatprep.subr.bf16.mxu0 0
        %3302 = vmatpush1.bf16.msra.mxu0 0
        %3303 = vmatprep.subr.bf16.mxu0 0
        %3304 = vmatpush1.bf16.msra.mxu0 0
        %3305 = vmatprep.subr.bf16.mxu0 0
        %3306 = vmatpush1.bf16.msra.mxu0 0
        %3307 = vmatprep.subr.bf16.mxu0 0
        %3308 = vmatpush1.bf16.msra.mxu0 0
        %3309 = vmatprep.mubr.bf16.mxu0 0
        %3310 = vmatmul.mubr.bf16.gmra.mrb[0].mxu0 %v3275
        %v3311 = vpop.f32.mrb[0].mxu0
        %v3312 = vadd.f32 0.0, %v3311
        %v3313 = vpop.f32.mrb[0].mxu0
        %v3314 = vpop.f32.mrb[0].mxu0
        %v3315 = vadd.f32 0.0, %v3314
        %v3316 = vpop.f32.mrb[0].mxu0
        %3317 = vdwg.mxu0
        %3318 = vrot.lane.b32.xlu0 %v2377, 16
        %v3319 = vpop.permute.xlu0 %3318
        %v3322 = vsel %vm1155, %v3269, 0
        %3324 = vmatprep.subr.bf16.mxu0 0
        %3325 = vmatpush1.bf16.msra.mxu0 %v3319
        %3326 = vmatprep.subr.bf16.mxu0 0
        %3327 = vmatpush1.bf16.msra.mxu0 0
        %3328 = vmatprep.subr.bf16.mxu0 0
        %3329 = vmatpush1.bf16.msra.mxu0 0
        %3330 = vmatprep.subr.bf16.mxu0 0
        %3331 = vmatpush1.bf16.msra.mxu0 0
        %3332 = vmatprep.subr.bf16.mxu0 0
        %3333 = vmatpush1.bf16.msra.mxu0 0
        %3334 = vmatprep.subr.bf16.mxu0 0
        %3335 = vmatpush1.bf16.msra.mxu0 0
        %3336 = vmatprep.subr.bf16.mxu0 0
        %3337 = vmatpush1.bf16.msra.mxu0 0
        %3338 = vmatprep.subr.bf16.mxu0 0
        %3339 = vmatpush1.bf16.msra.mxu0 0
        %3340 = vmatprep.subr.bf16.mxu0 0
        %3341 = vmatpush1.bf16.msra.mxu0 0
        %3342 = vmatprep.subr.bf16.mxu0 0
        %3343 = vmatpush1.bf16.msra.mxu0 0
        %3344 = vmatprep.subr.bf16.mxu0 0
        %3345 = vmatpush1.bf16.msra.mxu0 0
        %3346 = vmatprep.subr.bf16.mxu0 0
        %3347 = vmatpush1.bf16.msra.mxu0 0
        %3348 = vmatprep.subr.bf16.mxu0 0
        %3349 = vmatpush1.bf16.msra.mxu0 0
        %3350 = vmatprep.subr.bf16.mxu0 0
        %3351 = vmatpush1.bf16.msra.mxu0 0
        %3352 = vmatprep.subr.bf16.mxu0 0
        %3353 = vmatpush1.bf16.msra.mxu0 0
        %3354 = vmatprep.subr.bf16.mxu0 0
        %3355 = vmatpush1.bf16.msra.mxu0 0
        %3356 = vmatprep.mubr.bf16.mxu0 0
        %3357 = vmatmul.mubr.bf16.gmra.mrb[0].mxu0 %v3322
        %v3358 = vpop.f32.mrb[0].mxu0
        %v3359 = vadd.f32 %v3312, %v3358
        %v3360 = vpop.f32.mrb[0].mxu0
        %v3361 = vpop.f32.mrb[0].mxu0
        %v3362 = vadd.f32 %v3315, %v3361
        %v3363 = vpop.f32.mrb[0].mxu0
        %3364 = vdwg.mxu0
        %v3365 = vrcp.pop %v3267
        %v3366 = vrcp.pop %v3268
        %v3367 = vmul.f32 %v3359, %v3365
        %v3368 = vmul.f32 %v3362, %v3366
        %3371 = vrot.lane.b32.xlu0 %v2893, 16
        %v3372 = vpop.permute.xlu0 %3371
        %3373 = vrot.lane.b32.xlu0 %v2894, 16
        %v3374 = vpop.permute.xlu0 %3373
        %3379 = vrot.lane.b32.xlu0 %v3130, 32
        %v3380 = vpop.permute.xlu0 %3379
        %3381 = vrot.lane.b32.xlu0 %v3131, 32
        %v3382 = vpop.permute.xlu0 %3381
        %3387 = vrot.lane.b32.xlu0 %v3367, 48
        %v3388 = vpop.permute.xlu0 %3387
        %3389 = vrot.lane.b32.xlu0 %v3368, 48
        %v3390 = vpop.permute.xlu0 %3389
        %v3393 = vsel %vm1155, %v2655, %v3372
        %v3394 = vsel %vm1155, %v2656, %v3374
        %v3395 = vsel %vm1660, %v3393, %v3380
        %v3396 = vsel %vm1660, %v3394, %v3382
        %v3397 = vsel %vm1663, %v3395, %v3388
        %v3398 = vsel %vm1663, %v3396, %v3390
        %v3399 = vpack.c.bf16 %v3398, %v3397
        %v3400 = vld [vmem:[#allocation23] sm:$0xf]
        %v3401 = vld [vmem:[#allocation23 + $0x4] sm:$0xf]
        %v3402 = vld [vmem:[#allocation23 + $0x8] sm:$0xf]
        %v3403 = vld [vmem:[#allocation23 + $0xc] sm:$0xf]
        %v3404 = vld [vmem:[#allocation23 + $0x10] sm:$0xf]
        %v3405 = vld [vmem:[#allocation23 + $0x14] sm:$0xf]
        %v3406 = vld [vmem:[#allocation23 + $0x18] sm:$0xf]
        %v3407 = vld [vmem:[#allocation23 + $0x1c] sm:$0xf]
        %v3408 = vld [vmem:[#allocation25] sm:$0x1]
        %v3410 = vlaneseq
        %v3411 = vshrl.u32 %v3410, 7
        %v3412 = vsub.s32 0, %v3411
        %v3413 = vrot.slane %v3408, %v3412
        %v3423 = vunpack.c.l.b16 %v3400
        %v3424 = vunpack.c.l.b16 %v3401
        %v3425 = vunpack.c.l.b16 %v3402
        %v3426 = vunpack.c.l.b16 %v3403
        %v3427 = vunpack.c.l.b16 %v3404
        %v3428 = vunpack.c.l.b16 %v3405
        %v3429 = vunpack.c.l.b16 %v3406
        %v3430 = vunpack.c.l.b16 %v3407
        %v3431 = vpack.c.b16 %v3424, %v3423
        %v3432 = vpack.c.b16 %v3426, %v3425
        %v3433 = vpack.c.b16 %v3428, %v3427
        %v3434 = vpack.c.b16 %v3430, %v3429
        %v3440 = vsel %vm1011, %v3399, 0
        %3442 = vmatprep.subr.bf16.mxu0 0
        %3443 = vmatpush1.bf16.msra.mxu0 %v3431
        %3444 = vmatprep.subr.bf16.mxu0 0
        %3445 = vmatpush1.bf16.msra.mxu0 %v3432
        %3446 = vmatprep.subr.bf16.mxu0 0
        %3447 = vmatpush1.bf16.msra.mxu0 %v3433
        %3448 = vmatprep.subr.bf16.mxu0 0
        %3449 = vmatpush1.bf16.msra.mxu0 %v3434
        %3450 = vmatprep.subr.bf16.mxu0 0
        %3451 = vmatpush1.bf16.msra.mxu0 0
        %3452 = vmatprep.subr.bf16.mxu0 0
        %3453 = vmatpush1.bf16.msra.mxu0 0
        %3454 = vmatprep.subr.bf16.mxu0 0
        %3455 = vmatpush1.bf16.msra.mxu0 0
        %3456 = vmatprep.subr.bf16.mxu0 0
        %3457 = vmatpush1.bf16.msra.mxu0 0
        %3458 = vmatprep.subr.bf16.mxu0 0
        %3459 = vmatpush1.bf16.msra.mxu0 0
        %3460 = vmatprep.subr.bf16.mxu0 0
        %3461 = vmatpush1.bf16.msra.mxu0 0
        %3462 = vmatprep.subr.bf16.mxu0 0
        %3463 = vmatpush1.bf16.msra.mxu0 0
        %3464 = vmatprep.subr.bf16.mxu0 0
        %3465 = vmatpush1.bf16.msra.mxu0 0
        %3466 = vmatprep.subr.bf16.mxu0 0
        %3467 = vmatpush1.bf16.msra.mxu0 0
        %3468 = vmatprep.subr.bf16.mxu0 0
        %3469 = vmatpush1.bf16.msra.mxu0 0
        %3470 = vmatprep.subr.bf16.mxu0 0
        %3471 = vmatpush1.bf16.msra.mxu0 0
        %3472 = vmatprep.subr.bf16.mxu0 0
        %3473 = vmatpush1.bf16.msra.mxu0 0
        %3474 = vmatprep.mubr.bf16.mxu0 0
        %3475 = vmatmul.mubr.bf16.gmra.mrb[0].mxu0 %v3440
        %v3476 = vpop.f32.mrb[0].mxu0
        %v3477 = vadd.f32 %v3413, %v3476
        %v3478 = vpop.f32.mrb[0].mxu0
        %v3479 = vpop.f32.mrb[0].mxu0
        %v3480 = vadd.f32 %v3413, %v3479
        %v3481 = vpop.f32.mrb[0].mxu0
        %3482 = vdwg.mxu0
        %v3483 = vadd.f32 %v1007, %v3477
        %v3484 = vadd.f32 %v1008, %v3480
        %v3485 = vld [vmem:[#allocation26] sm:$0x1]
        %v3486 = vld [vmem:[#allocation28] sm:$0x1]
        %v3487 = vsel %vm1011, %v3483, 0.0
        %3488 = vadd.xlane.f32.xlu0 %v3487
        %v3489 = vpop.xlane.xlu0 %3488
        %v3490 = vsel %vm1011, %v3484, 0.0
        %3491 = vadd.xlane.f32.xlu0 %v3490
        %v3492 = vpop.xlane.xlu0 %3491
        %v3493 = vmul.f32 %v3489, %v1018
        %v3494 = vmul.f32 %v3492, %v1018
        %v3495 = vsub.f32 %v3483, %v3493
        %v3496 = vsub.f32 %v3484, %v3494
        %v3497 = vmul.f32 %v3495, %v3495
        %v3498 = vmul.f32 %v3496, %v3496
        %v3499 = vsel %vm1011, %v3497, 0.0
        %3500 = vadd.xlane.f32.xlu0 %v3499
        %v3501 = vpop.xlane.xlu0 %3500
        %v3502 = vsel %vm1011, %v3498, 0.0
        %3503 = vadd.xlane.f32.xlu0 %v3502
        %v3504 = vpop.xlane.xlu0 %3503
        %v3505 = vmul.f32 %v3501, %v1018
        %v3506 = vmul.f32 %v3504, %v1018
        %v3507 = vadd.f32 %v3505, 1e-05
        %v3508 = vadd.f32 %v3506, 1e-05
        %v3509 = vrsqrt.pop %v3507
        %v3510 = vrsqrt.pop %v3508
        %v3511 = vmul.f32 %v3495, %v3509
        %v3512 = vmul.f32 %v3496, %v3510
        %v3514 = vlaneseq
        %v3515 = vshrl.u32 %v3514, 7
        %v3516 = vsub.s32 0, %v3515
        %v3517 = vrot.slane %v3485, %v3516
        %v3519 = vmul.f32 %v3511, %v3517
        %v3520 = vmul.f32 %v3512, %v3517
        %v3522 = vlaneseq
        %v3523 = vshrl.u32 %v3522, 7
        %v3524 = vsub.s32 0, %v3523
        %v3525 = vrot.slane %v3486, %v3524
        %v3527 = vadd.f32 %v3519, %v3525
        %v3528 = vadd.f32 %v3520, %v3525
        %v3529 = vpack.c.bf16 %v3528, %v3527
        %v3530 = vld [vmem:[#allocation29] sm:$0xff]
        %v3531 = vld [vmem:[#allocation29 + $0x8] sm:$0xff]
        %v3532 = vld [vmem:[#allocation29 + $0x10] sm:$0xff]
        %v3533 = vld [vmem:[#allocation29 + $0x18] sm:$0xff]
        %v3534 = vld [vmem:[#allocation29 + $0x20] sm:$0xff]
        %v3535 = vld [vmem:[#allocation29 + $0x28] sm:$0xff]
        %v3536 = vld [vmem:[#allocation29 + $0x30] sm:$0xff]
        %v3537 = vld [vmem:[#allocation29 + $0x38] sm:$0xff]
        %v3538 = vld [vmem:[#allocation31] sm:$0x3]
        %v3540 = vlaneseq
        %v3541 = vshrl.u32 %v3540, 7
        %v3542 = vsub.s32 0, %v3541
        %v3543 = vrot.slane %v3538, %v3542
        %v3544 = vlaneseq
        %v3545 = vshrl.u32 %v3544, 7
        %v3546 = vsub.s32 1, %v3545
        %v3547 = vrot.slane %v3538, %v3546
        %v3558 = vunpack.c.l.b16 %v3530
        %v3559 = vunpack.c.h.b16 %v3530
        %v3560 = vunpack.c.l.b16 %v3531
        %v3561 = vunpack.c.h.b16 %v3531
        %v3562 = vunpack.c.l.b16 %v3532
        %v3563 = vunpack.c.h.b16 %v3532
        %v3564 = vunpack.c.l.b16 %v3533
        %v3565 = vunpack.c.h.b16 %v3533
        %v3566 = vunpack.c.l.b16 %v3534
        %v3567 = vunpack.c.h.b16 %v3534
        %v3568 = vunpack.c.l.b16 %v3535
        %v3569 = vunpack.c.h.b16 %v3535
        %v3570 = vunpack.c.l.b16 %v3536
        %v3571 = vunpack.c.h.b16 %v3536
        %v3572 = vunpack.c.l.b16 %v3537
        %v3573 = vunpack.c.h.b16 %v3537
        %v3574 = vpack.c.b16 %v3560, %v3558
        %v3575 = vpack.c.b16 %v3561, %v3559
        %v3576 = vpack.c.b16 %v3564, %v3562
        %v3577 = vpack.c.b16 %v3565, %v3563
        %v3578 = vpack.c.b16 %v3568, %v3566
        %v3579 = vpack.c.b16 %v3569, %v3567
        %v3580 = vpack.c.b16 %v3572, %v3570
        %v3581 = vpack.c.b16 %v3573, %v3571
        %v3591 = vsel %vm1011, %v3529, 0
        %3593 = vmatprep.subr.bf16.mxu0 %v3575
        %3594 = vmatpush1.bf16.msra.mxu0 %v3574
        %3595 = vmatprep.subr.bf16.mxu0 %v3577
        %3596 = vmatpush1.bf16.msra.mxu0 %v3576
        %3597 = vmatprep.subr.bf16.mxu0 %v3579
        %3598 = vmatpush1.bf16.msra.mxu0 %v3578
        %3599 = vmatprep.subr.bf16.mxu0 %v3581
        %3600 = vmatpush1.bf16.msra.mxu0 %v3580
        %3601 = vmatprep.subr.bf16.mxu0 0
        %3602 = vmatpush1.bf16.msra.mxu0 0
        %3603 = vmatprep.subr.bf16.mxu0 0
        %3604 = vmatpush1.bf16.msra.mxu0 0
        %3605 = vmatprep.subr.bf16.mxu0 0
        %3606 = vmatpush1.bf16.msra.mxu0 0
        %3607 = vmatprep.subr.bf16.mxu0 0
        %3608 = vmatpush1.bf16.msra.mxu0 0
        %3609 = vmatprep.subr.bf16.mxu0 0
        %3610 = vmatpush1.bf16.msra.mxu0 0
        %3611 = vmatprep.subr.bf16.mxu0 0
        %3612 = vmatpush1.bf16.msra.mxu0 0
        %3613 = vmatprep.subr.bf16.mxu0 0
        %3614 = vmatpush1.bf16.msra.mxu0 0
        %3615 = vmatprep.subr.bf16.mxu0 0
        %3616 = vmatpush1.bf16.msra.mxu0 0
        %3617 = vmatprep.subr.bf16.mxu0 0
        %3618 = vmatpush1.bf16.msra.mxu0 0
        %3619 = vmatprep.subr.bf16.mxu0 0
        %3620 = vmatpush1.bf16.msra.mxu0 0
        %3621 = vmatprep.subr.bf16.mxu0 0
        %3622 = vmatpush1.bf16.msra.mxu0 0
        %3623 = vmatprep.subr.bf16.mxu0 0
        %3624 = vmatpush1.bf16.msra.mxu0 0
        %3625 = vmatprep.mubr.bf16.mxu0 0
        %3626 = vmatmul.mubr.bf16.gmra.mrb[0].mxu0 %v3591
        %v3627 = vpop.f32.mrb[0].mxu0
        %v3628 = vadd.f32 %v3543, %v3627
        %v3629 = vpop.f32.mrb[0].mxu0
        %v3630 = vadd.f32 %v3547, %v3629
        %v3631 = vpop.f32.mrb[0].mxu0
        %v3632 = vadd.f32 %v3543, %v3631
        %v3633 = vpop.f32.mrb[0].mxu0
        %v3634 = vadd.f32 %v3547, %v3633
        %3635 = vdwg.mxu0
        %v3636 = vmul.f32 %v3628, %v3628
        %v3637 = vmul.f32 %v3630, %v3630
        %v3638 = vmul.f32 %v3632, %v3632
        %v3639 = vmul.f32 %v3634, %v3634
        %v3640 = vmul.f32 %v3628, %v3636
        %v3641 = vmul.f32 %v3630, %v3637
        %v3642 = vmul.f32 %v3632, %v3638
        %v3643 = vmul.f32 %v3634, %v3639
        %v3644 = vmul.f32 %v3640, 0.044715
        %v3645 = vmul.f32 %v3641, 0.044715
        %v3646 = vmul.f32 %v3642, 0.044715
        %v3647 = vmul.f32 %v3643, 0.044715
        %v3648 = vadd.f32 %v3628, %v3644
        %v3649 = vadd.f32 %v3630, %v3645
        %v3650 = vadd.f32 %v3632, %v3646
        %v3651 = vadd.f32 %v3634, %v3647
        %v3652 = vmul.f32 %v3648, 0.7978846
        %v3653 = vmul.f32 %v3649, 0.7978846
        %v3654 = vmul.f32 %v3650, 0.7978846
        %v3655 = vmul.f32 %v3651, 0.7978846
        %v3656 = vtanh.pop %v3652
        %v3657 = vtanh.pop %v3653
        %v3658 = vtanh.pop %v3654
        %v3659 = vtanh.pop %v3655
        %v3660 = vadd.f32 %v3656, 1.0
        %v3661 = vadd.f32 %v3657, 1.0
        %v3662 = vadd.f32 %v3658, 1.0
        %v3663 = vadd.f32 %v3659, 1.0
        %v3664 = vmul.f32 %v3660, 0.5
        %v3665 = vmul.f32 %v3661, 0.5
        %v3666 = vmul.f32 %v3662, 0.5
        %v3667 = vmul.f32 %v3663, 0.5
        %v3668 = vmul.f32 %v3628, %v3664
        %v3669 = vmul.f32 %v3630, %v3665
        %v3670 = vmul.f32 %v3632, %v3666
        %v3671 = vmul.f32 %v3634, %v3667
        %v3672 = vpack.c.bf16 %v3670, %v3668
        %v3673 = vpack.c.bf16 %v3671, %v3669
        %v3674 = vld [vmem:[#allocation32] sm:$0xf]
        %v3675 = vld [vmem:[#allocation32 + $0x4] sm:$0xf]
        %v3676 = vld [vmem:[#allocation32 + $0x8] sm:$0xf]
        %v3677 = vld [vmem:[#allocation32 + $0xc] sm:$0xf]
        %v3678 = vld [vmem:[#allocation32 + $0x10] sm:$0xf]
        %v3679 = vld [vmem:[#allocation32 + $0x14] sm:$0xf]
        %v3680 = vld [vmem:[#allocation32 + $0x18] sm:$0xf]
        %v3681 = vld [vmem:[#allocation32 + $0x1c] sm:$0xf]
        %v3682 = vld [vmem:[#allocation32 + $0x20] sm:$0xf]
        %v3683 = vld [vmem:[#allocation32 + $0x24] sm:$0xf]
        %v3684 = vld [vmem:[#allocation32 + $0x28] sm:$0xf]
        %v3685 = vld [vmem:[#allocation32 + $0x2c] sm:$0xf]
        %v3686 = vld [vmem:[#allocation32 + $0x30] sm:$0xf]
        %v3687 = vld [vmem:[#allocation32 + $0x34] sm:$0xf]
        %v3688 = vld [vmem:[#allocation32 + $0x38] sm:$0xf]
        %v3689 = vld [vmem:[#allocation32 + $0x3c] sm:$0xf]
        %v3690 = vld [vmem:[#allocation32 + $0x40] sm:$0xf]
        %v3691 = vld [vmem:[#allocation32 + $0x44] sm:$0xf]
        %v3692 = vld [vmem:[#allocation32 + $0x48] sm:$0xf]
        %v3693 = vld [vmem:[#allocation32 + $0x4c] sm:$0xf]
        %v3694 = vld [vmem:[#allocation32 + $0x50] sm:$0xf]
        %v3695 = vld [vmem:[#allocation32 + $0x54] sm:$0xf]
        %v3696 = vld [vmem:[#allocation32 + $0x58] sm:$0xf]
        %v3697 = vld [vmem:[#allocation32 + $0x5c] sm:$0xf]
        %v3698 = vld [vmem:[#allocation32 + $0x60] sm:$0xf]
        %v3699 = vld [vmem:[#allocation32 + $0x64] sm:$0xf]
        %v3700 = vld [vmem:[#allocation32 + $0x68] sm:$0xf]
        %v3701 = vld [vmem:[#allocation32 + $0x6c] sm:$0xf]
        %v3702 = vld [vmem:[#allocation32 + $0x70] sm:$0xf]
        %v3703 = vld [vmem:[#allocation32 + $0x74] sm:$0xf]
        %v3704 = vld [vmem:[#allocation32 + $0x78] sm:$0xf]
        %v3705 = vld [vmem:[#allocation32 + $0x7c] sm:$0xf]
        %v3706 = vld [vmem:[#allocation34] sm:$0x1]
        %v3708 = vlaneseq
        %v3709 = vshrl.u32 %v3708, 7
        %v3710 = vsub.s32 0, %v3709
        %v3711 = vrot.slane %v3706, %v3710
        %v3745 = vunpack.c.l.b16 %v3674
        %v3746 = vunpack.c.l.b16 %v3675
        %v3747 = vunpack.c.l.b16 %v3676
        %v3748 = vunpack.c.l.b16 %v3677
        %v3749 = vunpack.c.l.b16 %v3678
        %v3750 = vunpack.c.l.b16 %v3679
        %v3751 = vunpack.c.l.b16 %v3680
        %v3752 = vunpack.c.l.b16 %v3681
        %v3753 = vunpack.c.l.b16 %v3682
        %v3754 = vunpack.c.l.b16 %v3683
        %v3755 = vunpack.c.l.b16 %v3684
        %v3756 = vunpack.c.l.b16 %v3685
        %v3757 = vunpack.c.l.b16 %v3686
        %v3758 = vunpack.c.l.b16 %v3687
        %v3759 = vunpack.c.l.b16 %v3688
        %v3760 = vunpack.c.l.b16 %v3689
        %v3761 = vunpack.c.l.b16 %v3690
        %v3762 = vunpack.c.l.b16 %v3691
        %v3763 = vunpack.c.l.b16 %v3692
        %v3764 = vunpack.c.l.b16 %v3693
        %v3765 = vunpack.c.l.b16 %v3694
        %v3766 = vunpack.c.l.b16 %v3695
        %v3767 = vunpack.c.l.b16 %v3696
        %v3768 = vunpack.c.l.b16 %v3697
        %v3769 = vunpack.c.l.b16 %v3698
        %v3770 = vunpack.c.l.b16 %v3699
        %v3771 = vunpack.c.l.b16 %v3700
        %v3772 = vunpack.c.l.b16 %v3701
        %v3773 = vunpack.c.l.b16 %v3702
        %v3774 = vunpack.c.l.b16 %v3703
        %v3775 = vunpack.c.l.b16 %v3704
        %v3776 = vunpack.c.l.b16 %v3705
        %v3777 = vpack.c.b16 %v3746, %v3745
        %v3778 = vpack.c.b16 %v3748, %v3747
        %v3779 = vpack.c.b16 %v3750, %v3749
        %v3780 = vpack.c.b16 %v3752, %v3751
        %v3781 = vpack.c.b16 %v3754, %v3753
        %v3782 = vpack.c.b16 %v3756, %v3755
        %v3783 = vpack.c.b16 %v3758, %v3757
        %v3784 = vpack.c.b16 %v3760, %v3759
        %v3785 = vpack.c.b16 %v3762, %v3761
        %v3786 = vpack.c.b16 %v3764, %v3763
        %v3787 = vpack.c.b16 %v3766, %v3765
        %v3788 = vpack.c.b16 %v3768, %v3767
        %v3789 = vpack.c.b16 %v3770, %v3769
        %v3790 = vpack.c.b16 %v3772, %v3771
        %v3791 = vpack.c.b16 %v3774, %v3773
        %v3792 = vpack.c.b16 %v3776, %v3775
        %3809 = vmatprep.subr.bf16.mxu0 0
        %3810 = vmatpush1.bf16.msra.mxu0 %v3777
        %3811 = vmatprep.subr.bf16.mxu0 0
        %3812 = vmatpush1.bf16.msra.mxu0 %v3778
        %3813 = vmatprep.subr.bf16.mxu0 0
        %3814 = vmatpush1.bf16.msra.mxu0 %v3779
        %3815 = vmatprep.subr.bf16.mxu0 0
        %3816 = vmatpush1.bf16.msra.mxu0 %v3780
        %3817 = vmatprep.subr.bf16.mxu0 0
        %3818 = vmatpush1.bf16.msra.mxu0 %v3781
        %3819 = vmatprep.subr.bf16.mxu0 0
        %3820 = vmatpush1.bf16.msra.mxu0 %v3782
        %3821 = vmatprep.subr.bf16.mxu0 0
        %3822 = vmatpush1.bf16.msra.mxu0 %v3783
        %3823 = vmatprep.subr.bf16.mxu0 0
        %3824 = vmatpush1.bf16.msra.mxu0 %v3784
        %3825 = vmatprep.subr.bf16.mxu0 0
        %3826 = vmatpush1.bf16.msra.mxu0 %v3785
        %3827 = vmatprep.subr.bf16.mxu0 0
        %3828 = vmatpush1.bf16.msra.mxu0 %v3786
        %3829 = vmatprep.subr.bf16.mxu0 0
        %3830 = vmatpush1.bf16.msra.mxu0 %v3787
        %3831 = vmatprep.subr.bf16.mxu0 0
        %3832 = vmatpush1.bf16.msra.mxu0 %v3788
        %3833 = vmatprep.subr.bf16.mxu0 0
        %3834 = vmatpush1.bf16.msra.mxu0 %v3789
        %3835 = vmatprep.subr.bf16.mxu0 0
        %3836 = vmatpush1.bf16.msra.mxu0 %v3790
        %3837 = vmatprep.subr.bf16.mxu0 0
        %3838 = vmatpush1.bf16.msra.mxu0 %v3791
        %3839 = vmatprep.subr.bf16.mxu0 0
        %3840 = vmatpush1.bf16.msra.mxu0 %v3792
        %3841 = vmatprep.mubr.bf16.mxu0 %v3673
        %3842 = vmatmul.mubr.bf16.gmra.mrb[0].mxu0 %v3672
        %v3843 = vpop.f32.mrb[0].mxu0
        %v3844 = vadd.f32 %v3711, %v3843
        %v3845 = vpop.f32.mrb[0].mxu0
        %v3846 = vpop.f32.mrb[0].mxu0
        %v3847 = vadd.f32 %v3711, %v3846
        %v3848 = vpop.f32.mrb[0].mxu0
        %3849 = vdwg.mxu0
        %v3850 = vadd.f32 %v3483, %v3844
        %v3851 = vadd.f32 %v3484, %v3847
        %v3852 = vpack.c.bf16 %v3851, %v3850
        %v3854 = vunpack.c.l.b16 %v3852
        %v3855 = vunpack.c.h.b16 %v3852
        %v3856 = vpack.c.b16 %v3854, %v3854
        %v3857 = vpack.c.b16 %v3855, %v3855
        %3860 = vst.msk [vmem:[%s1003] sm:$0xf] %vm2127, %v3856
        %3861 = vst.msk [vmem:[%s1003 + $0x4] sm:$0xf] %vm2127, %v3857
        %s3862 = sand.u32 %s514, 1
        %s3863 = scalar_lea.sflag [#allocation4], %s3862
        %s3864 = sand.u32 %s514, 1
        %s3865 = smul.addr %s3864, 8
        %s3866 = scalar_lea.vmem [#allocation35], %s3865
        %s3867 = sand.u32 %s540, 1
        %s3868 = scalar_lea.sflag [#allocation37], %s3867
        %s3869 = sand.u32 %s540, 1
        %s3870 = smul.addr %s3869, 8
        %s3871 = scalar_lea.vmem [#allocation36], %s3870
        // Predicated region
        $region189: #{tpu_custom_call.1} parent=103 // pred_check
          %p3872 = pneg %p524
        $region190: #{tpu_custom_call.1} parent=103 // pred_check_branch
          %3874 = sbr.rel (%p3872) target = $region192
        $region191: #{tpu_custom_call.1} parent=103 // pred_region
          %s3876 = ssub.s32 128, 128
          %3877 = vsyncadd %s3863, %s3876
          %s3878 = smul.addr %s55, 2
          %s3879 = smul.addr %s3878, 64
          %s3880 = scalar_lea.hbm %s21, %s3879
          %s3881 = sshll.u32 %s3866, 4
          %s3882 = int_to_ptr.vmem [resolvable:$true] %s3881
          %3887 = dma.vmem_to_hbm [thread:$0]  %s3882, 128, %s3880, %s3863, 64, 64, 4
        $region192: #{tpu_custom_call.1} parent=103 // pred_fallthru
          _
        // Predicated region
        $region193: #{tpu_custom_call.1} parent=103 // pred_check
          %p3888 = pneg %p550
        $region194: #{tpu_custom_call.1} parent=103 // pred_check_branch
          %3890 = sbr.rel (%p3888) target = $region196
        $region195: #{tpu_custom_call.1} parent=103 // pred_region
          %s3892 = ssub.s32 128, 128
          %3893 = vsyncadd %s3868, %s3892
          %s3894 = smul.addr %s55, 2
          %s3895 = smul.addr %s3894, 64
          %s3896 = scalar_lea.hbm %s22, %s3895
          %s3897 = sshll.u32 %s3871, 4
          %s3898 = int_to_ptr.vmem [resolvable:$true] %s3897
          %3903 = dma.vmem_to_hbm [thread:$0]  %s3898, 128, %s3896, %s3868, 64, 64, 4
        $region196: #{tpu_custom_call.1} parent=103 // pred_fallthru
          _
      $region104: #{tpu_custom_call.1} parent=5 // pred_fallthru
        _
      %p3904 = scmp.le.s32.totalorder 2, %s50
      // Predicated region
      $region197: #{tpu_custom_call.1} parent=5 // pred_check
        %p3905 = pneg %p3904
      $region198: #{tpu_custom_call.1} parent=5 // pred_check_branch
        %3907 = sbr.rel (%p3905) target = $region200
      $region199: #{tpu_custom_call.1} parent=5 // pred_region
        %s3908 = ssub.s32 %s50, 2
        // Predicated region
        $region201: #{tpu_custom_call.1} parent=199 // pred_check
          %p3909 = pneg %p530
        $region202: #{tpu_custom_call.1} parent=199 // pred_check_branch
          %3911 = sbr.rel (%p3909) target = $region204
        $region203: #{tpu_custom_call.1} parent=199 // pred_region
          %s3912 = sand.u32 %s515, 1
          %s3913 = scalar_lea.sflag [#allocation4], %s3912
          %s3914 = sand.u32 %s515, 1
          %s3915 = smul.addr %s3914, 8
          %s3916 = scalar_lea.vmem [#allocation35], %s3915
          %3917 = dma.done %s3913, 128
        $region204: #{tpu_custom_call.1} parent=199 // pred_fallthru
          _
        // Predicated region
        $region205: #{tpu_custom_call.1} parent=199 // pred_check
          %p3918 = pneg %p556
        $region206: #{tpu_custom_call.1} parent=199 // pred_check_branch
          %3920 = sbr.rel (%p3918) target = $region208
        $region207: #{tpu_custom_call.1} parent=199 // pred_region
          %s3921 = sand.u32 %s541, 1
          %s3922 = scalar_lea.sflag [#allocation37], %s3921
          %s3923 = sand.u32 %s541, 1
          %s3924 = smul.addr %s3923, 8
          %s3925 = scalar_lea.vmem [#allocation36], %s3924
          %3926 = dma.done %s3922, 128
        $region208: #{tpu_custom_call.1} parent=199 // pred_fallthru
          _
      $region200: #{tpu_custom_call.1} parent=5 // pred_fallthru
        _
    $region6: #{tpu_custom_call.1} parent=1 // loop_footer
      %s54 = sadd.s32 1, %s50
    $region7: #{tpu_custom_call.1} parent=1 // loop_footer_branch
      %49 = sbr.rel target = $region3
    $region8: #{tpu_custom_call.1} parent=1 // loop_exit
      _
    %3927 = vsyncpa [#allocation3], 1
    %s3928 = scalar_lea.sflag [#allocation3], 1
    %3929 = vsyncpa %s3928, 1
    %3930 = vsyncpa [#allocation6], 1
    %s3931 = scalar_lea.sflag [#allocation6], 1
    %3932 = vsyncpa %s3931, 1
    %3933 = vsyncpa [#allocation9], 1
    %3934 = vsyncpa [#allocation12], 1
    %3935 = vsyncpa [#allocation15], 1
    %3936 = vsyncpa [#allocation18], 1
    %3937 = vsyncpa [#allocation21], 1
    %3938 = vsyncpa [#allocation24], 1
    %3939 = vsyncpa [#allocation27], 1
    %3940 = vsyncpa [#allocation30], 1
    %3941 = vsyncpa [#allocation33], 1
    %3942 = vsyncpa [#allocation4], 1
    %s3943 = scalar_lea.sflag [#allocation4], 1
    %3944 = vsyncpa %s3943, 1
    %3945 = vsyncpa [#allocation37], 1
    %s3946 = scalar_lea.sflag [#allocation37], 1
    %3947 = vsyncpa %s3946, 1

</llo_original>
